<compile_context>
chip_gen: v7x
topology: tpu7x:2x2x1
jax: 0.10.0
libtpu: 0.0.40
codegen_flags: <defaults>
</compile_context>

<pallas_src>
import jax
import jax.numpy as jnp
from jax.experimental import pallas as pl
from jax.experimental.pallas import tpu as pltpu

IMAGE_SIZE = 784
H_DIM = 400
Z_DIM = 20

Z_PAD = 128            # lane-group stride for the fused [mu | log_var] head
MULV_W = 2 * Z_PAD     # fused head width: mu in cols [0:20], log_var in [128:148]
TM_MAX = 512           # batch-tile cap (multiple of 8)


def _round_up(n, m):
    return ((n + m - 1) // m) * m


def _choose_tm(batch):
    # >= 2 grid steps whenever the batch allows it (so the "parallel" batch axis
    # can shard across both v7x TensorCores); tile rows are a multiple of 8.
    tm = _round_up(max((batch + 1) // 2, 8), 8)
    return min(tm, TM_MAX)


def vae_kernel(x_ref, eps_ref,
               w1_ref, b1_ref, w23_ref, b23_ref,
               w4_ref, b4_ref, w5_ref, b5_ref,
               xr_ref, mu_ref, lv_ref):
    # ---- encode: h = relu(x @ W1 + b1) ----
    x = x_ref[...]                                                # bf16 (TM, 784)
    h = jnp.dot(x, w1_ref[...], preferred_element_type=jnp.float32) + b1_ref[...]
    h = jnp.maximum(h, 0.0)

    # Fused mu / log_var head: a single matmul.  mu lives in lanes [0:20] and
    # log_var in lanes [128:148], so both slices below start at lane-group
    # boundaries (no unaligned lane shifts).
    mulv = jnp.dot(h.astype(jnp.bfloat16), w23_ref[...],
                   preferred_element_type=jnp.float32) + b23_ref[...]
    mu = mulv[:, :Z_DIM]                                          # (TM, 20) f32
    log_var = mulv[:, Z_PAD:Z_PAD + Z_DIM]                        # (TM, 20) f32

    # ---- reparameterize: z = mu + eps * exp(log_var / 2)  (all f32) ----
    z = mu + eps_ref[...] * jnp.exp(log_var * 0.5)                # (TM, 20)

    # ---- decode ----
    h2 = jnp.dot(z.astype(jnp.bfloat16), w4_ref[...],
                 preferred_element_type=jnp.float32) + b4_ref[...]
    h2 = jnp.maximum(h2, 0.0)
    logits = jnp.dot(h2.astype(jnp.bfloat16), w5_ref[...],
                     preferred_element_type=jnp.float32) + b5_ref[...]

    # sigmoid(x) = 1 / (1 + exp(-x)); exp and approx reciprocal both run on EUP.
    xr_ref[...] = pl.reciprocal(1.0 + jnp.exp(-logits),
                                approx=True).astype(xr_ref.dtype)
    mu_ref[...] = mu.astype(mu_ref.dtype)
    lv_ref[...] = log_var.astype(lv_ref.dtype)


def pack_params(params):
    """Fuse mu/log_var heads + bf16-cast the raw [in, out] f32 params (once)."""
    (w1, b1, w2, b2, w3, b3, w4, b4, w5, b5) = params
    bf = jnp.bfloat16

    w1p = w1.astype(bf)                                       # (784, 400)
    b1p = b1.reshape(1, H_DIM).astype(jnp.float32)

    w23 = jnp.zeros((H_DIM, MULV_W), bf)
    w23 = w23.at[:, :Z_DIM].set(w2.astype(bf))
    w23 = w23.at[:, Z_PAD:Z_PAD + Z_DIM].set(w3.astype(bf))
    b23 = jnp.zeros((1, MULV_W), jnp.float32)
    b23 = b23.at[:, :Z_DIM].set(b2.reshape(1, -1))
    b23 = b23.at[:, Z_PAD:Z_PAD + Z_DIM].set(b3.reshape(1, -1))

    w4p = w4.astype(bf)                                       # (20, 400)
    b4p = b4.reshape(1, H_DIM).astype(jnp.float32)

    w5p = w5.astype(bf)                                       # (400, 784)
    b5p = b5.reshape(1, IMAGE_SIZE).astype(jnp.float32)

    return (w1p, b1p, w23, b23, w4p, b4p, w5p, b5p)


@jax.jit
def vae_forward(x, eps, packed):
    (w1p, b1p, w23, b23, w4p, b4p, w5p, b5p) = packed
    B = x.shape[0]
    tm = _choose_tm(B)
    grid = (pl.cdiv(B, tm),)

    # Matmul operands are bf16 anyway, so casting x here is bit-identical and
    # halves its DMA bytes.  eps stays f32 (20 lanes: negligible traffic) so the
    # reparameterization math is exact f32.
    x_bf16 = x.astype(jnp.bfloat16)
    eps_f32 = eps.astype(jnp.float32)

    def row_spec(width):
        return pl.BlockSpec((tm, width), lambda i: (i, 0))

    def pinned(shape):
        return pl.BlockSpec(shape, lambda i: (0, 0))

    in_specs = [
        row_spec(IMAGE_SIZE),                                  # x (bf16)
        row_spec(Z_DIM),                                       # eps
        pinned((IMAGE_SIZE, H_DIM)), pinned((1, H_DIM)),       # w1, b1
        pinned((H_DIM, MULV_W)), pinned((1, MULV_W)),          # w23, b23
        pinned((Z_DIM, H_DIM)), pinned((1, H_DIM)),            # w4, b4
        pinned((H_DIM, IMAGE_SIZE)), pinned((1, IMAGE_SIZE)),  # w5, b5
    ]
    out_specs = (row_spec(IMAGE_SIZE), row_spec(Z_DIM), row_spec(Z_DIM))
    out_shapes = (
        jax.ShapeDtypeStruct((B, IMAGE_SIZE), jnp.float32),    # x_reconst
        jax.ShapeDtypeStruct((B, Z_DIM), jnp.float32),         # mu
        jax.ShapeDtypeStruct((B, Z_DIM), jnp.float32),         # log_var
    )

    flops = 2 * B * (IMAGE_SIZE * H_DIM + H_DIM * MULV_W
                     + Z_DIM * H_DIM + H_DIM * IMAGE_SIZE)
    transcendentals = B * (Z_DIM + 2 * IMAGE_SIZE)             # exp, exp + rcp
    weight_bytes = 2 * (IMAGE_SIZE * H_DIM + H_DIM * MULV_W
                        + Z_DIM * H_DIM + H_DIM * IMAGE_SIZE) \
        + 4 * (H_DIM + MULV_W + H_DIM + IMAGE_SIZE)
    act_bytes = B * (2 * IMAGE_SIZE + 4 * Z_DIM                # reads: x bf16, eps f32
                     + 4 * (IMAGE_SIZE + 2 * Z_DIM))           # writes: xr, mu, lv f32
    cost = pl.CostEstimate(flops=flops, transcendentals=transcendentals,
                           bytes_accessed=weight_bytes + act_bytes)

    x_reconst, mu, log_var = pl.pallas_call(
        vae_kernel,
        out_shape=out_shapes,
        grid=grid,
        in_specs=in_specs,
        out_specs=out_specs,
        compiler_params=pltpu.CompilerParams(
            dimension_semantics=("parallel",),
            vmem_limit_bytes=48 << 20,    # safe on v7x's 64 MiB physical VMEM
        ),
        cost_estimate=cost,
    )(x_bf16, eps_f32, w1p, b1p, w23, b23, w4p, b4p, w5p, b5p)

    return x_reconst, mu, log_var


def init_linear(key, fan_in, fan_out):
    # PyTorch nn.Linear default init: U(-1/sqrt(fan_in), 1/sqrt(fan_in)).
    kw, kb = jax.random.split(key)
    bound = 1.0 / jnp.sqrt(fan_in)
    # Weight stored as [in, out] so the kernel computes x @ W (== torch x @ W.T).
    w = jax.random.uniform(kw, (fan_in, fan_out), jnp.float32, -bound, bound)
    b = jax.random.uniform(kb, (1, fan_out), jnp.float32, -bound, bound)
    return w, b


def reference_forward(x, eps, params):
    (w1, b1, w2, b2, w3, b3, w4, b4, w5, b5) = params
    h = jax.nn.relu(x @ w1 + b1)
    mu = h @ w2 + b2
    lv = h @ w3 + b3
    z = mu + eps * jnp.exp(lv * 0.5)
    h2 = jax.nn.relu(z @ w4 + b4)
    return jax.nn.sigmoid(h2 @ w5 + b5), mu, lv


if __name__ == "__main__":
    key = jax.random.PRNGKey(0)
    k_x, k_eps, k1, k2, k3, k4, k5 = jax.random.split(key, 7)

    B = 8
    x = jax.random.uniform(k_x, (B, IMAGE_SIZE), jnp.float32)   # MNIST-like pixels
    eps = jax.random.normal(k_eps, (B, Z_DIM), jnp.float32)

    w1, b1 = init_linear(k1, IMAGE_SIZE, H_DIM)
    w2, b2 = init_linear(k2, H_DIM, Z_DIM)
    w3, b3 = init_linear(k3, H_DIM, Z_DIM)
    w4, b4 = init_linear(k4, Z_DIM, H_DIM)
    w5, b5 = init_linear(k5, H_DIM, IMAGE_SIZE)
    params = (w1, b1, w2, b2, w3, b3, w4, b4, w5, b5)

    packed = jax.block_until_ready(pack_params(params))   # fuse/bf16 once

    x_reconst, mu, log_var = vae_forward(x, eps, packed)
    jax.block_until_ready((x_reconst, mu, log_var))

    # Correctness check vs. f32 pure-JAX reference (tolerance loosened for the
    # bf16 matmul path; accumulation is still f32).
    xr_ref, mu_ref, lv_ref = reference_forward(x, eps, params)
    assert x_reconst.shape == (B, IMAGE_SIZE)
    assert mu.shape == (B, Z_DIM) and log_var.shape == (B, Z_DIM)
    assert jnp.allclose(x_reconst, xr_ref, atol=5e-2, rtol=5e-2)
    assert jnp.allclose(mu, mu_ref, atol=5e-2, rtol=5e-2)
    assert jnp.allclose(log_var, lv_ref, atol=5e-2, rtol=5e-2)

    print("KERNEL_OK")
</pallas_src>

<mosaic_0001>
module attributes {stable_mosaic.version = 11 : i64} {
  func.func @vae_kernel(%arg0: i32, %arg1: memref<8x784xbf16, #tpu.memory_space<vmem>>, %arg2: memref<8x20xf32, #tpu.memory_space<vmem>>, %arg3: memref<784x400xbf16, #tpu.memory_space<vmem>>, %arg4: memref<1x400xf32, #tpu.memory_space<vmem>>, %arg5: memref<400x256xbf16, #tpu.memory_space<vmem>>, %arg6: memref<1x256xf32, #tpu.memory_space<vmem>>, %arg7: memref<20x400xbf16, #tpu.memory_space<vmem>>, %arg8: memref<1x400xf32, #tpu.memory_space<vmem>>, %arg9: memref<400x784xbf16, #tpu.memory_space<vmem>>, %arg10: memref<1x784xf32, #tpu.memory_space<vmem>>, %arg11: memref<8x784xf32, #tpu.memory_space<vmem>>, %arg12: memref<8x20xf32, #tpu.memory_space<vmem>>, %arg13: memref<8x20xf32, #tpu.memory_space<vmem>>) attributes {dimension_semantics = [#tpu.dimension_semantics<parallel>], iteration_bounds = array<i64: 1>, scalar_prefetch = 0 : i64, scratch_operands = 0 : i64, tpu.core_type = #tpu.core_type<tc>, window_params = [{transform_indices = @transform_0, window_bounds = array<i64: 8, 784>}, {transform_indices = @transform_1, window_bounds = array<i64: 8, 20>}, {pipeline_mode = #tpu.pipeline_mode<synchronous>, transform_indices = @transform_2, window_bounds = array<i64: 784, 400>}, {pipeline_mode = #tpu.pipeline_mode<synchronous>, transform_indices = @transform_3, window_bounds = array<i64: 1, 400>}, {pipeline_mode = #tpu.pipeline_mode<synchronous>, transform_indices = @transform_4, window_bounds = array<i64: 400, 256>}, {pipeline_mode = #tpu.pipeline_mode<synchronous>, transform_indices = @transform_5, window_bounds = array<i64: 1, 256>}, {pipeline_mode = #tpu.pipeline_mode<synchronous>, transform_indices = @transform_6, window_bounds = array<i64: 20, 400>}, {pipeline_mode = #tpu.pipeline_mode<synchronous>, transform_indices = @transform_7, window_bounds = array<i64: 1, 400>}, {pipeline_mode = #tpu.pipeline_mode<synchronous>, transform_indices = @transform_8, window_bounds = array<i64: 400, 784>}, {pipeline_mode = #tpu.pipeline_mode<synchronous>, transform_indices = @transform_9, window_bounds = array<i64: 1, 784>}, {transform_indices = @transform_10, window_bounds = array<i64: 8, 784>}, {transform_indices = @transform_11, window_bounds = array<i64: 8, 20>}, {transform_indices = @transform_12, window_bounds = array<i64: 8, 20>}]} {
    %c0 = arith.constant 0 : index
    %c0_0 = arith.constant 0 : index
    %0 = vector.load %arg1[%c0, %c0_0] : memref<8x784xbf16, #tpu.memory_space<vmem>>, vector<8x784xbf16>
    %c0_1 = arith.constant 0 : index
    %c0_2 = arith.constant 0 : index
    %1 = vector.load %arg3[%c0_1, %c0_2] : memref<784x400xbf16, #tpu.memory_space<vmem>>, vector<784x400xbf16>
    %cst = arith.constant dense<0.000000e+00> : vector<8x400xf32>
    %2 = tpu.matmul %0, %1, %cst {dimension_numbers = #tpu.dot_dimension_numbers<[1], [0], [0], [1], [0, 0, 1, 1], [], []>} : vector<8x784xbf16>, vector<784x400xbf16>, vector<8x400xf32> -> vector<8x400xf32>
    %c0_3 = arith.constant 0 : index
    %c0_4 = arith.constant 0 : index
    %3 = vector.load %arg4[%c0_3, %c0_4] : memref<1x400xf32, #tpu.memory_space<vmem>>, vector<1x400xf32>
    %4 = vector.broadcast %3 : vector<1x400xf32> to vector<8x400xf32>
    %5 = arith.addf %2, %4 : vector<8x400xf32>
    %cst_5 = arith.constant 0.000000e+00 : f32
    %6 = vector.broadcast %cst_5 : f32 to vector<8x400xf32>
    %7 = arith.maximumf %5, %6 : vector<8x400xf32>
    %8 = arith.truncf %7 : vector<8x400xf32> to vector<8x400xbf16>
    %c0_6 = arith.constant 0 : index
    %c0_7 = arith.constant 0 : index
    %9 = vector.load %arg5[%c0_6, %c0_7] : memref<400x256xbf16, #tpu.memory_space<vmem>>, vector<400x256xbf16>
    %cst_8 = arith.constant dense<0.000000e+00> : vector<8x256xf32>
    %10 = tpu.matmul %8, %9, %cst_8 {dimension_numbers = #tpu.dot_dimension_numbers<[1], [0], [0], [1], [0, 0, 1, 1], [], []>} : vector<8x400xbf16>, vector<400x256xbf16>, vector<8x256xf32> -> vector<8x256xf32>
    %c0_9 = arith.constant 0 : index
    %c0_10 = arith.constant 0 : index
    %11 = vector.load %arg6[%c0_9, %c0_10] : memref<1x256xf32, #tpu.memory_space<vmem>>, vector<1x256xf32>
    %12 = vector.broadcast %11 : vector<1x256xf32> to vector<8x256xf32>
    %13 = arith.addf %10, %12 : vector<8x256xf32>
    %14 = vector.extract_strided_slice %13 {offsets = [0, 0], sizes = [8, 20], strides = [1, 1]} : vector<8x256xf32> to vector<8x20xf32>
    %15 = vector.extract_strided_slice %13 {offsets = [0, 128], sizes = [8, 20], strides = [1, 1]} : vector<8x256xf32> to vector<8x20xf32>
    %c0_11 = arith.constant 0 : index
    %c0_12 = arith.constant 0 : index
    %16 = vector.load %arg2[%c0_11, %c0_12] : memref<8x20xf32, #tpu.memory_space<vmem>>, vector<8x20xf32>
    %cst_13 = arith.constant 5.000000e-01 : f32
    %17 = vector.broadcast %cst_13 : f32 to vector<8x20xf32>
    %18 = arith.mulf %15, %17 : vector<8x20xf32>
    %19 = math.exp %18 : vector<8x20xf32>
    %20 = arith.mulf %16, %19 : vector<8x20xf32>
    %21 = arith.addf %14, %20 : vector<8x20xf32>
    %22 = arith.truncf %21 : vector<8x20xf32> to vector<8x20xbf16>
    %c0_14 = arith.constant 0 : index
    %c0_15 = arith.constant 0 : index
    %23 = vector.load %arg7[%c0_14, %c0_15] : memref<20x400xbf16, #tpu.memory_space<vmem>>, vector<20x400xbf16>
    %cst_16 = arith.constant dense<0.000000e+00> : vector<8x400xf32>
    %24 = tpu.matmul %22, %23, %cst_16 {dimension_numbers = #tpu.dot_dimension_numbers<[1], [0], [0], [1], [0, 0, 1, 1], [], []>} : vector<8x20xbf16>, vector<20x400xbf16>, vector<8x400xf32> -> vector<8x400xf32>
    %c0_17 = arith.constant 0 : index
    %c0_18 = arith.constant 0 : index
    %25 = vector.load %arg8[%c0_17, %c0_18] : memref<1x400xf32, #tpu.memory_space<vmem>>, vector<1x400xf32>
    %26 = vector.broadcast %25 : vector<1x400xf32> to vector<8x400xf32>
    %27 = arith.addf %24, %26 : vector<8x400xf32>
    %cst_19 = arith.constant 0.000000e+00 : f32
    %28 = vector.broadcast %cst_19 : f32 to vector<8x400xf32>
    %29 = arith.maximumf %27, %28 : vector<8x400xf32>
    %30 = arith.truncf %29 : vector<8x400xf32> to vector<8x400xbf16>
    %c0_20 = arith.constant 0 : index
    %c0_21 = arith.constant 0 : index
    %31 = vector.load %arg9[%c0_20, %c0_21] : memref<400x784xbf16, #tpu.memory_space<vmem>>, vector<400x784xbf16>
    %cst_22 = arith.constant dense<0.000000e+00> : vector<8x784xf32>
    %32 = tpu.matmul %30, %31, %cst_22 {dimension_numbers = #tpu.dot_dimension_numbers<[1], [0], [0], [1], [0, 0, 1, 1], [], []>} : vector<8x400xbf16>, vector<400x784xbf16>, vector<8x784xf32> -> vector<8x784xf32>
    %c0_23 = arith.constant 0 : index
    %c0_24 = arith.constant 0 : index
    %33 = vector.load %arg10[%c0_23, %c0_24] : memref<1x784xf32, #tpu.memory_space<vmem>>, vector<1x784xf32>
    %34 = vector.broadcast %33 : vector<1x784xf32> to vector<8x784xf32>
    %35 = arith.addf %32, %34 : vector<8x784xf32>
    %cst_25 = arith.constant 0.000000e+00 : f32
    %36 = vector.broadcast %cst_25 : f32 to vector<8x784xf32>
    %37 = arith.subf %36, %35 : vector<8x784xf32>
    %38 = math.exp %37 : vector<8x784xf32>
    %cst_26 = arith.constant 1.000000e+00 : f32
    %39 = vector.broadcast %cst_26 : f32 to vector<8x784xf32>
    %40 = arith.addf %39, %38 : vector<8x784xf32>
    %41 = tpu.reciprocal %40 {approx = true} : vector<8x784xf32> -> vector<8x784xf32>
    %c0_27 = arith.constant 0 : index
    %c0_28 = arith.constant 0 : index
    %42 = vector.load %arg11[%c0_27, %c0_28] : memref<8x784xf32, #tpu.memory_space<vmem>>, vector<8x784xf32>
    tpu.vector_store %arg11[%c0_27, %c0_28], %41 {strides = array<i32>} : memref<8x784xf32, #tpu.memory_space<vmem>>, vector<8x784xf32>,
    %c0_29 = arith.constant 0 : index
    %c0_30 = arith.constant 0 : index
    %43 = vector.load %arg12[%c0_29, %c0_30] : memref<8x20xf32, #tpu.memory_space<vmem>>, vector<8x20xf32>
    tpu.vector_store %arg12[%c0_29, %c0_30], %14 {strides = array<i32>} : memref<8x20xf32, #tpu.memory_space<vmem>>, vector<8x20xf32>,
    %c0_31 = arith.constant 0 : index
    %c0_32 = arith.constant 0 : index
    %44 = vector.load %arg13[%c0_31, %c0_32] : memref<8x20xf32, #tpu.memory_space<vmem>>, vector<8x20xf32>
    tpu.vector_store %arg13[%c0_31, %c0_32], %15 {strides = array<i32>} : memref<8x20xf32, #tpu.memory_space<vmem>>, vector<8x20xf32>,
    return
  }
  func.func @transform_0(%arg0: i32) -> (i32, i32) {
    %c0_i32 = arith.constant 0 : i32
    %c0_i32_0 = arith.constant 0 : i32
    return %arg0, %c0_i32 : i32, i32
  }
  func.func @transform_1(%arg0: i32) -> (i32, i32) {
    %c0_i32 = arith.constant 0 : i32
    %c0_i32_0 = arith.constant 0 : i32
    return %arg0, %c0_i32 : i32, i32
  }
  func.func @transform_2(%arg0: i32) -> (i32, i32) {
    %c0_i32 = arith.constant 0 : i32
    %c0_i32_0 = arith.constant 0 : i32
    %c0_i32_1 = arith.constant 0 : i32
    return %c0_i32, %c0_i32_0 : i32, i32
  }
  func.func @transform_3(%arg0: i32) -> (i32, i32) {
    %c0_i32 = arith.constant 0 : i32
    %c0_i32_0 = arith.constant 0 : i32
    %c0_i32_1 = arith.constant 0 : i32
    return %c0_i32, %c0_i32_0 : i32, i32
  }
  func.func @transform_4(%arg0: i32) -> (i32, i32) {
    %c0_i32 = arith.constant 0 : i32
    %c0_i32_0 = arith.constant 0 : i32
    %c0_i32_1 = arith.constant 0 : i32
    return %c0_i32, %c0_i32_0 : i32, i32
  }
  func.func @transform_5(%arg0: i32) -> (i32, i32) {
    %c0_i32 = arith.constant 0 : i32
    %c0_i32_0 = arith.constant 0 : i32
    %c0_i32_1 = arith.constant 0 : i32
    return %c0_i32, %c0_i32_0 : i32, i32
  }
  func.func @transform_6(%arg0: i32) -> (i32, i32) {
    %c0_i32 = arith.constant 0 : i32
    %c0_i32_0 = arith.constant 0 : i32
    %c0_i32_1 = arith.constant 0 : i32
    return %c0_i32, %c0_i32_0 : i32, i32
  }
  func.func @transform_7(%arg0: i32) -> (i32, i32) {
    %c0_i32 = arith.constant 0 : i32
    %c0_i32_0 = arith.constant 0 : i32
    %c0_i32_1 = arith.constant 0 : i32
    return %c0_i32, %c0_i32_0 : i32, i32
  }
  func.func @transform_8(%arg0: i32) -> (i32, i32) {
    %c0_i32 = arith.constant 0 : i32
    %c0_i32_0 = arith.constant 0 : i32
    %c0_i32_1 = arith.constant 0 : i32
    return %c0_i32, %c0_i32_0 : i32, i32
  }
  func.func @transform_9(%arg0: i32) -> (i32, i32) {
    %c0_i32 = arith.constant 0 : i32
    %c0_i32_0 = arith.constant 0 : i32
    %c0_i32_1 = arith.constant 0 : i32
    return %c0_i32, %c0_i32_0 : i32, i32
  }
  func.func @transform_10(%arg0: i32) -> (i32, i32) {
    %c0_i32 = arith.constant 0 : i32
    %c0_i32_0 = arith.constant 0 : i32
    return %arg0, %c0_i32 : i32, i32
  }
  func.func @transform_11(%arg0: i32) -> (i32, i32) {
    %c0_i32 = arith.constant 0 : i32
    %c0_i32_0 = arith.constant 0 : i32
    return %arg0, %c0_i32 : i32, i32
  }
  func.func @transform_12(%arg0: i32) -> (i32, i32) {
    %c0_i32 = arith.constant 0 : i32
    %c0_i32_0 = arith.constant 0 : i32
    return %arg0, %c0_i32 : i32, i32
  }
}

</mosaic_0001>

<llo_original>
// kernel: vae_forward.1
$region0: #{vae_forward.1}
  #allocation0 [shape = 'u32[]', space=smem, size = 0x4, offset = 0x4, fixed_abs, tag = 'smem constant byte address 0x4 - core index']
  #allocation1 [shape = 'u32[144,128]{1,0:T(1,128)}', space=vmem, size = 0x12000, scoped, tag = 'internal scratch']
  %s0 = inlined_call_operand.vmem [shape: bf16[8,784], index: 0, kind: input, shape index: {}]
  %s1 = inlined_call_operand.vmem [shape: f32[8,20], index: 1, kind: input, shape index: {}]
  %s2 = inlined_call_operand.vmem [shape: bf16[784,400], index: 2, kind: input, shape index: {}]
  %s3 = inlined_call_operand.vmem [shape: f32[1,400], index: 3, kind: input, shape index: {}]
  %s4 = inlined_call_operand.vmem [shape: bf16[400,256], index: 4, kind: input, shape index: {}]
  %s5 = inlined_call_operand.vmem [shape: f32[1,256], index: 5, kind: input, shape index: {}]
  %s6 = inlined_call_operand.vmem [shape: bf16[20,400], index: 6, kind: input, shape index: {}]
  %s7 = inlined_call_operand.vmem [shape: f32[1,400], index: 7, kind: input, shape index: {}]
  %s8 = inlined_call_operand.vmem [shape: bf16[400,784], index: 8, kind: input, shape index: {}]
  %s9 = inlined_call_operand.vmem [shape: f32[1,784], index: 9, kind: input, shape index: {}]
  %s10 = inlined_call_operand.hbm [shape: f32[8,784], index: 10, kind: output, shape index: {0}]
  %s11 = inlined_call_operand.hbm [shape: f32[8,20], index: 11, kind: output, shape index: {1}]
  %s12 = inlined_call_operand.hbm [shape: f32[8,20], index: 12, kind: output, shape index: {2}]
  %13 = xla_tuple %s10, %s11, %s12
  %s14 = sld [smem:[#allocation0]]
  $region66: #{vae_forward.1} parent=0
    _
  %s16 = ssub.s32 1, %s14
  %s17 = scalar_select 0, %s16, %s14
  $region1: #{vae_forward.1} parent=0
    #allocation2 [shape = 'u8[28672]{0}', space=vmem, size = 0x7000, scoped, tag = 'output window, operand 0, single buffered']
    #allocation3 [shape = 's32[1]{0}', space=sflag, size = 0x4, scoped, tag = 'scoped memory for vae_forward.1']
    #allocation4 [shape = 'u8[4096]{0}', space=vmem, size = 0x1000, scoped, tag = 'output window, operand 1, single buffered']
    #allocation5 [shape = 's32[1]{0}', space=sflag, size = 0x4, scoped, tag = 'scoped memory for vae_forward.1']
    #allocation6 [shape = 'u8[4096]{0}', space=vmem, size = 0x1000, scoped, tag = 'output window, operand 2, single buffered']
    %18 = vsyncpa [#allocation3], 0
    %19 = vsyncpa [#allocation5], 0
    // Predicated region
    $region2: #{vae_forward.1} parent=1 // pred_check
      _
    $region3: #{vae_forward.1} parent=1 // pred_check_branch
      %21 = sbr.rel (0) target = $region5
    $region4: #{vae_forward.1} parent=1 // pred_region
      _
    $region5: #{vae_forward.1} parent=1 // pred_fallthru
      _
    // Predicated region
    $region6: #{vae_forward.1} parent=1 // pred_check
      _
    $region7: #{vae_forward.1} parent=1 // pred_check_branch
      %23 = sbr.rel (0) target = $region9
    $region8: #{vae_forward.1} parent=1 // pred_region
      _
    $region9: #{vae_forward.1} parent=1 // pred_fallthru
      _
    // Predicated region
    $region10: #{vae_forward.1} parent=1 // pred_check
      _
    $region11: #{vae_forward.1} parent=1 // pred_check_branch
      %25 = sbr.rel (0) target = $region13
    $region12: #{vae_forward.1} parent=1 // pred_region
      _
    $region13: #{vae_forward.1} parent=1 // pred_fallthru
      _
    // Predicated region
    $region14: #{vae_forward.1} parent=1 // pred_check
      _
    $region15: #{vae_forward.1} parent=1 // pred_check_branch
      %27 = sbr.rel (0) target = $region17
    $region16: #{vae_forward.1} parent=1 // pred_region
      _
    $region17: #{vae_forward.1} parent=1 // pred_fallthru
      _
    // Predicated region
    $region18: #{vae_forward.1} parent=1 // pred_check
      _
    $region19: #{vae_forward.1} parent=1 // pred_check_branch
      %29 = sbr.rel (0) target = $region21
    $region20: #{vae_forward.1} parent=1 // pred_region
      _
    $region21: #{vae_forward.1} parent=1 // pred_fallthru
      _
    // Predicated region
    $region22: #{vae_forward.1} parent=1 // pred_check
      _
    $region23: #{vae_forward.1} parent=1 // pred_check_branch
      %31 = sbr.rel (0) target = $region25
    $region24: #{vae_forward.1} parent=1 // pred_region
      _
    $region25: #{vae_forward.1} parent=1 // pred_fallthru
      _
    // Predicated region
    $region26: #{vae_forward.1} parent=1 // pred_check
      _
    $region27: #{vae_forward.1} parent=1 // pred_check_branch
      %33 = sbr.rel (0) target = $region29
    $region28: #{vae_forward.1} parent=1 // pred_region
      _
    $region29: #{vae_forward.1} parent=1 // pred_fallthru
      _
    // Predicated region
    $region30: #{vae_forward.1} parent=1 // pred_check
      _
    $region31: #{vae_forward.1} parent=1 // pred_check_branch
      %35 = sbr.rel (0) target = $region33
    $region32: #{vae_forward.1} parent=1 // pred_region
      _
    $region33: #{vae_forward.1} parent=1 // pred_fallthru
      _
    // Predicated region
    $region34: #{vae_forward.1} parent=1 // pred_check
      _
    $region35: #{vae_forward.1} parent=1 // pred_check_branch
      %37 = sbr.rel (0) target = $region37
    $region36: #{vae_forward.1} parent=1 // pred_region
      _
    $region37: #{vae_forward.1} parent=1 // pred_fallthru
      _
    // Predicated region
    $region38: #{vae_forward.1} parent=1 // pred_check
      _
    $region39: #{vae_forward.1} parent=1 // pred_check_branch
      %39 = sbr.rel (0) target = $region41
    $region40: #{vae_forward.1} parent=1 // pred_region
      _
    $region41: #{vae_forward.1} parent=1 // pred_fallthru
      _
    %v41 = vld [vmem:[%s0] sm:$0xff]
    %v42 = vld [vmem:[%s0 + $0x8] sm:$0xff]
    %v43 = vld [vmem:[%s0 + $0x10] sm:$0xff]
    %v44 = vld [vmem:[%s0 + $0x18] sm:$0xf]
    %v45 = vld [vmem:[%s2] sm:$0xff]
    %v46 = vld [vmem:[%s2 + $0x8] sm:$0xff]
    %v47 = vld [vmem:[%s2 + $0x10] sm:$0xff]
    %v48 = vld [vmem:[%s2 + $0x18] sm:$0xff]
    %v49 = vld [vmem:[%s2 + $0x20] sm:$0xff]
    %v50 = vld [vmem:[%s2 + $0x28] sm:$0xff]
    %v51 = vld [vmem:[%s2 + $0x30] sm:$0xff]
    %v52 = vld [vmem:[%s2 + $0x38] sm:$0xff]
    %v53 = vld [vmem:[%s2 + $0x40] sm:$0xff]
    %v54 = vld [vmem:[%s2 + $0x48] sm:$0xff]
    %v55 = vld [vmem:[%s2 + $0x50] sm:$0xff]
    %v56 = vld [vmem:[%s2 + $0x58] sm:$0xff]
    %v57 = vld [vmem:[%s2 + $0x60] sm:$0xff]
    %v58 = vld [vmem:[%s2 + $0x68] sm:$0xff]
    %v59 = vld [vmem:[%s2 + $0x70] sm:$0xff]
    %v60 = vld [vmem:[%s2 + $0x78] sm:$0xff]
    %v61 = vld [vmem:[%s2 + $0x80] sm:$0xff]
    %v62 = vld [vmem:[%s2 + $0x88] sm:$0xff]
    %v63 = vld [vmem:[%s2 + $0x90] sm:$0xff]
    %v64 = vld [vmem:[%s2 + $0x98] sm:$0xff]
    %v65 = vld [vmem:[%s2 + $0xa0] sm:$0xff]
    %v66 = vld [vmem:[%s2 + $0xa8] sm:$0xff]
    %v67 = vld [vmem:[%s2 + $0xb0] sm:$0xff]
    %v68 = vld [vmem:[%s2 + $0xb8] sm:$0xff]
    %v69 = vld [vmem:[%s2 + $0xc0] sm:$0xff]
    %v70 = vld [vmem:[%s2 + $0xc8] sm:$0xff]
    %v71 = vld [vmem:[%s2 + $0xd0] sm:$0xff]
    %v72 = vld [vmem:[%s2 + $0xd8] sm:$0xff]
    %v73 = vld [vmem:[%s2 + $0xe0] sm:$0xff]
    %v74 = vld [vmem:[%s2 + $0xe8] sm:$0xff]
    %v75 = vld [vmem:[%s2 + $0xf0] sm:$0xff]
    %v76 = vld [vmem:[%s2 + $0xf8] sm:$0xff]
    %v77 = vld [vmem:[%s2 + $0x100] sm:$0xff]
    %v78 = vld [vmem:[%s2 + $0x108] sm:$0xff]
    %v79 = vld [vmem:[%s2 + $0x110] sm:$0xff]
    %v80 = vld [vmem:[%s2 + $0x118] sm:$0xff]
    %v81 = vld [vmem:[%s2 + $0x120] sm:$0xff]
    %v82 = vld [vmem:[%s2 + $0x128] sm:$0xff]
    %v83 = vld [vmem:[%s2 + $0x130] sm:$0xff]
    %v84 = vld [vmem:[%s2 + $0x138] sm:$0xff]
    %v85 = vld [vmem:[%s2 + $0x140] sm:$0xff]
    %v86 = vld [vmem:[%s2 + $0x148] sm:$0xff]
    %v87 = vld [vmem:[%s2 + $0x150] sm:$0xff]
    %v88 = vld [vmem:[%s2 + $0x158] sm:$0xff]
    %v89 = vld [vmem:[%s2 + $0x160] sm:$0xff]
    %v90 = vld [vmem:[%s2 + $0x168] sm:$0xff]
    %v91 = vld [vmem:[%s2 + $0x170] sm:$0xff]
    %v92 = vld [vmem:[%s2 + $0x178] sm:$0xff]
    %v93 = vld [vmem:[%s2 + $0x180] sm:$0xff]
    %v94 = vld [vmem:[%s2 + $0x188] sm:$0xff]
    %v95 = vld [vmem:[%s2 + $0x190] sm:$0xff]
    %v96 = vld [vmem:[%s2 + $0x198] sm:$0xff]
    %v97 = vld [vmem:[%s2 + $0x1a0] sm:$0xff]
    %v98 = vld [vmem:[%s2 + $0x1a8] sm:$0xff]
    %v99 = vld [vmem:[%s2 + $0x1b0] sm:$0xff]
    %v100 = vld [vmem:[%s2 + $0x1b8] sm:$0xff]
    %v101 = vld [vmem:[%s2 + $0x1c0] sm:$0xff]
    %v102 = vld [vmem:[%s2 + $0x1c8] sm:$0xff]
    %v103 = vld [vmem:[%s2 + $0x1d0] sm:$0xff]
    %v104 = vld [vmem:[%s2 + $0x1d8] sm:$0xff]
    %v105 = vld [vmem:[%s2 + $0x1e0] sm:$0xff]
    %v106 = vld [vmem:[%s2 + $0x1e8] sm:$0xff]
    %v107 = vld [vmem:[%s2 + $0x1f0] sm:$0xff]
    %v108 = vld [vmem:[%s2 + $0x1f8] sm:$0xff]
    %v109 = vld [vmem:[%s2 + $0x200] sm:$0xff]
    %v110 = vld [vmem:[%s2 + $0x208] sm:$0xff]
    %v111 = vld [vmem:[%s2 + $0x210] sm:$0xff]
    %v112 = vld [vmem:[%s2 + $0x218] sm:$0xff]
    %v113 = vld [vmem:[%s2 + $0x220] sm:$0xff]
    %v114 = vld [vmem:[%s2 + $0x228] sm:$0xff]
    %v115 = vld [vmem:[%s2 + $0x230] sm:$0xff]
    %v116 = vld [vmem:[%s2 + $0x238] sm:$0xff]
    %v117 = vld [vmem:[%s2 + $0x240] sm:$0xff]
    %v118 = vld [vmem:[%s2 + $0x248] sm:$0xff]
    %v119 = vld [vmem:[%s2 + $0x250] sm:$0xff]
    %v120 = vld [vmem:[%s2 + $0x258] sm:$0xff]
    %v121 = vld [vmem:[%s2 + $0x260] sm:$0xff]
    %v122 = vld [vmem:[%s2 + $0x268] sm:$0xff]
    %v123 = vld [vmem:[%s2 + $0x270] sm:$0xff]
    %v124 = vld [vmem:[%s2 + $0x278] sm:$0xff]
    %v125 = vld [vmem:[%s2 + $0x280] sm:$0xff]
    %v126 = vld [vmem:[%s2 + $0x288] sm:$0xff]
    %v127 = vld [vmem:[%s2 + $0x290] sm:$0xff]
    %v128 = vld [vmem:[%s2 + $0x298] sm:$0xff]
    %v129 = vld [vmem:[%s2 + $0x2a0] sm:$0xff]
    %v130 = vld [vmem:[%s2 + $0x2a8] sm:$0xff]
    %v131 = vld [vmem:[%s2 + $0x2b0] sm:$0xff]
    %v132 = vld [vmem:[%s2 + $0x2b8] sm:$0xff]
    %v133 = vld [vmem:[%s2 + $0x2c0] sm:$0xff]
    %v134 = vld [vmem:[%s2 + $0x2c8] sm:$0xff]
    %v135 = vld [vmem:[%s2 + $0x2d0] sm:$0xff]
    %v136 = vld [vmem:[%s2 + $0x2d8] sm:$0xff]
    %v137 = vld [vmem:[%s2 + $0x2e0] sm:$0xff]
    %v138 = vld [vmem:[%s2 + $0x2e8] sm:$0xff]
    %v139 = vld [vmem:[%s2 + $0x2f0] sm:$0xff]
    %v140 = vld [vmem:[%s2 + $0x2f8] sm:$0xff]
    %v141 = vld [vmem:[%s2 + $0x300] sm:$0xff]
    %v142 = vld [vmem:[%s2 + $0x308] sm:$0xff]
    %v143 = vld [vmem:[%s2 + $0x310] sm:$0xff]
    %v144 = vld [vmem:[%s2 + $0x318] sm:$0xff]
    %v145 = vld [vmem:[%s2 + $0x320] sm:$0xff]
    %v146 = vld [vmem:[%s2 + $0x328] sm:$0xff]
    %v147 = vld [vmem:[%s2 + $0x330] sm:$0xff]
    %v148 = vld [vmem:[%s2 + $0x338] sm:$0xff]
    %v149 = vld [vmem:[%s2 + $0x340] sm:$0xff]
    %v150 = vld [vmem:[%s2 + $0x348] sm:$0xff]
    %v151 = vld [vmem:[%s2 + $0x350] sm:$0xff]
    %v152 = vld [vmem:[%s2 + $0x358] sm:$0xff]
    %v153 = vld [vmem:[%s2 + $0x360] sm:$0xff]
    %v154 = vld [vmem:[%s2 + $0x368] sm:$0xff]
    %v155 = vld [vmem:[%s2 + $0x370] sm:$0xff]
    %v156 = vld [vmem:[%s2 + $0x378] sm:$0xff]
    %v157 = vld [vmem:[%s2 + $0x380] sm:$0xff]
    %v158 = vld [vmem:[%s2 + $0x388] sm:$0xff]
    %v159 = vld [vmem:[%s2 + $0x390] sm:$0xff]
    %v160 = vld [vmem:[%s2 + $0x398] sm:$0xff]
    %v161 = vld [vmem:[%s2 + $0x3a0] sm:$0xff]
    %v162 = vld [vmem:[%s2 + $0x3a8] sm:$0xff]
    %v163 = vld [vmem:[%s2 + $0x3b0] sm:$0xff]
    %v164 = vld [vmem:[%s2 + $0x3b8] sm:$0xff]
    %v165 = vld [vmem:[%s2 + $0x3c0] sm:$0xff]
    %v166 = vld [vmem:[%s2 + $0x3c8] sm:$0xff]
    %v167 = vld [vmem:[%s2 + $0x3d0] sm:$0xff]
    %v168 = vld [vmem:[%s2 + $0x3d8] sm:$0xff]
    %v169 = vld [vmem:[%s2 + $0x3e0] sm:$0xff]
    %v170 = vld [vmem:[%s2 + $0x3e8] sm:$0xff]
    %v171 = vld [vmem:[%s2 + $0x3f0] sm:$0xff]
    %v172 = vld [vmem:[%s2 + $0x3f8] sm:$0xff]
    %v173 = vld [vmem:[%s2 + $0x400] sm:$0xff]
    %v174 = vld [vmem:[%s2 + $0x408] sm:$0xff]
    %v175 = vld [vmem:[%s2 + $0x410] sm:$0xff]
    %v176 = vld [vmem:[%s2 + $0x418] sm:$0xff]
    %v177 = vld [vmem:[%s2 + $0x420] sm:$0xff]
    %v178 = vld [vmem:[%s2 + $0x428] sm:$0xff]
    %v179 = vld [vmem:[%s2 + $0x430] sm:$0xff]
    %v180 = vld [vmem:[%s2 + $0x438] sm:$0xff]
    %v181 = vld [vmem:[%s2 + $0x440] sm:$0xff]
    %v182 = vld [vmem:[%s2 + $0x448] sm:$0xff]
    %v183 = vld [vmem:[%s2 + $0x450] sm:$0xff]
    %v184 = vld [vmem:[%s2 + $0x458] sm:$0xff]
    %v185 = vld [vmem:[%s2 + $0x460] sm:$0xff]
    %v186 = vld [vmem:[%s2 + $0x468] sm:$0xff]
    %v187 = vld [vmem:[%s2 + $0x470] sm:$0xff]
    %v188 = vld [vmem:[%s2 + $0x478] sm:$0xff]
    %v189 = vld [vmem:[%s2 + $0x480] sm:$0xff]
    %v190 = vld [vmem:[%s2 + $0x488] sm:$0xff]
    %v191 = vld [vmem:[%s2 + $0x490] sm:$0xff]
    %v192 = vld [vmem:[%s2 + $0x498] sm:$0xff]
    %v193 = vld [vmem:[%s2 + $0x4a0] sm:$0xff]
    %v194 = vld [vmem:[%s2 + $0x4a8] sm:$0xff]
    %v195 = vld [vmem:[%s2 + $0x4b0] sm:$0xff]
    %v196 = vld [vmem:[%s2 + $0x4b8] sm:$0xff]
    %v197 = vld [vmem:[%s2 + $0x4c0] sm:$0xff]
    %v198 = vld [vmem:[%s2 + $0x4c8] sm:$0xff]
    %v199 = vld [vmem:[%s2 + $0x4d0] sm:$0xff]
    %v200 = vld [vmem:[%s2 + $0x4d8] sm:$0xff]
    %v201 = vld [vmem:[%s2 + $0x4e0] sm:$0xff]
    %v202 = vld [vmem:[%s2 + $0x4e8] sm:$0xff]
    %v203 = vld [vmem:[%s2 + $0x4f0] sm:$0xff]
    %v204 = vld [vmem:[%s2 + $0x4f8] sm:$0xff]
    %v205 = vld [vmem:[%s2 + $0x500] sm:$0xff]
    %v206 = vld [vmem:[%s2 + $0x508] sm:$0xff]
    %v207 = vld [vmem:[%s2 + $0x510] sm:$0xff]
    %v208 = vld [vmem:[%s2 + $0x518] sm:$0xff]
    %v209 = vld [vmem:[%s2 + $0x520] sm:$0xff]
    %v210 = vld [vmem:[%s2 + $0x528] sm:$0xff]
    %v211 = vld [vmem:[%s2 + $0x530] sm:$0xff]
    %v212 = vld [vmem:[%s2 + $0x538] sm:$0xff]
    %v213 = vld [vmem:[%s2 + $0x540] sm:$0xff]
    %v214 = vld [vmem:[%s2 + $0x548] sm:$0xff]
    %v215 = vld [vmem:[%s2 + $0x550] sm:$0xff]
    %v216 = vld [vmem:[%s2 + $0x558] sm:$0xff]
    %v217 = vld [vmem:[%s2 + $0x560] sm:$0xff]
    %v218 = vld [vmem:[%s2 + $0x568] sm:$0xff]
    %v219 = vld [vmem:[%s2 + $0x570] sm:$0xff]
    %v220 = vld [vmem:[%s2 + $0x578] sm:$0xff]
    %v221 = vld [vmem:[%s2 + $0x580] sm:$0xff]
    %v222 = vld [vmem:[%s2 + $0x588] sm:$0xff]
    %v223 = vld [vmem:[%s2 + $0x590] sm:$0xff]
    %v224 = vld [vmem:[%s2 + $0x598] sm:$0xff]
    %v225 = vld [vmem:[%s2 + $0x5a0] sm:$0xff]
    %v226 = vld [vmem:[%s2 + $0x5a8] sm:$0xff]
    %v227 = vld [vmem:[%s2 + $0x5b0] sm:$0xff]
    %v228 = vld [vmem:[%s2 + $0x5b8] sm:$0xff]
    %v229 = vld [vmem:[%s2 + $0x5c0] sm:$0xff]
    %v230 = vld [vmem:[%s2 + $0x5c8] sm:$0xff]
    %v231 = vld [vmem:[%s2 + $0x5d0] sm:$0xff]
    %v232 = vld [vmem:[%s2 + $0x5d8] sm:$0xff]
    %v233 = vld [vmem:[%s2 + $0x5e0] sm:$0xff]
    %v234 = vld [vmem:[%s2 + $0x5e8] sm:$0xff]
    %v235 = vld [vmem:[%s2 + $0x5f0] sm:$0xff]
    %v236 = vld [vmem:[%s2 + $0x5f8] sm:$0xff]
    %v237 = vld [vmem:[%s2 + $0x600] sm:$0xff]
    %v238 = vld [vmem:[%s2 + $0x608] sm:$0xff]
    %v239 = vld [vmem:[%s2 + $0x610] sm:$0xff]
    %v240 = vld [vmem:[%s2 + $0x618] sm:$0xff]
    %v241 = vld [vmem:[%s3] sm:$0xf]
    %v243 = vlaneseq
    %v244 = vshrl.u32 %v243, 7
    %v245 = vsub.s32 0, %v244
    %v246 = vrot.slane %v241, %v245
    %v247 = vlaneseq
    %v248 = vshrl.u32 %v247, 7
    %v249 = vsub.s32 1, %v248
    %v250 = vrot.slane %v241, %v249
    %v251 = vlaneseq
    %v252 = vshrl.u32 %v251, 7
    %v253 = vsub.s32 2, %v252
    %v254 = vrot.slane %v241, %v253
    %v255 = vlaneseq
    %v256 = vshrl.u32 %v255, 7
    %v257 = vsub.s32 3, %v256
    %v258 = vrot.slane %v241, %v257
    %v267 = vunpack.c.l.b16 %v41
    %v268 = vunpack.c.h.b16 %v41
    %v269 = vunpack.c.l.b16 %v42
    %v270 = vunpack.c.h.b16 %v42
    %v271 = vunpack.c.l.b16 %v43
    %v272 = vunpack.c.h.b16 %v43
    %v273 = vunpack.c.l.b16 %v44
    %v274 = vpack.c.b16 %v267, %v267
    %v275 = vpack.c.b16 %v268, %v268
    %v276 = vpack.c.b16 %v269, %v269
    %v277 = vpack.c.b16 %v270, %v270
    %v278 = vpack.c.b16 %v271, %v271
    %v279 = vpack.c.b16 %v272, %v272
    %v280 = vpack.c.b16 %v273, %v273
    %v483 = vunpack.c.l.b16 %v45
    %v484 = vunpack.c.h.b16 %v45
    %v485 = vunpack.c.l.b16 %v46
    %v486 = vunpack.c.h.b16 %v46
    %v487 = vunpack.c.l.b16 %v47
    %v488 = vunpack.c.h.b16 %v47
    %v489 = vunpack.c.l.b16 %v48
    %v490 = vunpack.c.h.b16 %v48
    %v491 = vunpack.c.l.b16 %v49
    %v492 = vunpack.c.h.b16 %v49
    %v493 = vunpack.c.l.b16 %v50
    %v494 = vunpack.c.h.b16 %v50
    %v495 = vunpack.c.l.b16 %v51
    %v496 = vunpack.c.h.b16 %v51
    %v497 = vunpack.c.l.b16 %v52
    %v498 = vunpack.c.h.b16 %v52
    %v499 = vunpack.c.l.b16 %v53
    %v500 = vunpack.c.h.b16 %v53
    %v501 = vunpack.c.l.b16 %v54
    %v502 = vunpack.c.h.b16 %v54
    %v503 = vunpack.c.l.b16 %v55
    %v504 = vunpack.c.h.b16 %v55
    %v505 = vunpack.c.l.b16 %v56
    %v506 = vunpack.c.h.b16 %v56
    %v507 = vunpack.c.l.b16 %v57
    %v508 = vunpack.c.h.b16 %v57
    %v509 = vunpack.c.l.b16 %v58
    %v510 = vunpack.c.h.b16 %v58
    %v511 = vunpack.c.l.b16 %v59
    %v512 = vunpack.c.h.b16 %v59
    %v513 = vunpack.c.l.b16 %v60
    %v514 = vunpack.c.h.b16 %v60
    %v515 = vunpack.c.l.b16 %v61
    %v516 = vunpack.c.h.b16 %v61
    %v517 = vunpack.c.l.b16 %v62
    %v518 = vunpack.c.h.b16 %v62
    %v519 = vunpack.c.l.b16 %v63
    %v520 = vunpack.c.h.b16 %v63
    %v521 = vunpack.c.l.b16 %v64
    %v522 = vunpack.c.h.b16 %v64
    %v523 = vunpack.c.l.b16 %v65
    %v524 = vunpack.c.h.b16 %v65
    %v525 = vunpack.c.l.b16 %v66
    %v526 = vunpack.c.h.b16 %v66
    %v527 = vunpack.c.l.b16 %v67
    %v528 = vunpack.c.h.b16 %v67
    %v529 = vunpack.c.l.b16 %v68
    %v530 = vunpack.c.h.b16 %v68
    %v531 = vunpack.c.l.b16 %v69
    %v532 = vunpack.c.h.b16 %v69
    %v533 = vunpack.c.l.b16 %v70
    %v534 = vunpack.c.h.b16 %v70
    %v535 = vunpack.c.l.b16 %v71
    %v536 = vunpack.c.h.b16 %v71
    %v537 = vunpack.c.l.b16 %v72
    %v538 = vunpack.c.h.b16 %v72
    %v539 = vunpack.c.l.b16 %v73
    %v540 = vunpack.c.h.b16 %v73
    %v541 = vunpack.c.l.b16 %v74
    %v542 = vunpack.c.h.b16 %v74
    %v543 = vunpack.c.l.b16 %v75
    %v544 = vunpack.c.h.b16 %v75
    %v545 = vunpack.c.l.b16 %v76
    %v546 = vunpack.c.h.b16 %v76
    %v547 = vunpack.c.l.b16 %v77
    %v548 = vunpack.c.h.b16 %v77
    %v549 = vunpack.c.l.b16 %v78
    %v550 = vunpack.c.h.b16 %v78
    %v551 = vunpack.c.l.b16 %v79
    %v552 = vunpack.c.h.b16 %v79
    %v553 = vunpack.c.l.b16 %v80
    %v554 = vunpack.c.h.b16 %v80
    %v555 = vunpack.c.l.b16 %v81
    %v556 = vunpack.c.h.b16 %v81
    %v557 = vunpack.c.l.b16 %v82
    %v558 = vunpack.c.h.b16 %v82
    %v559 = vunpack.c.l.b16 %v83
    %v560 = vunpack.c.h.b16 %v83
    %v561 = vunpack.c.l.b16 %v84
    %v562 = vunpack.c.h.b16 %v84
    %v563 = vunpack.c.l.b16 %v85
    %v564 = vunpack.c.h.b16 %v85
    %v565 = vunpack.c.l.b16 %v86
    %v566 = vunpack.c.h.b16 %v86
    %v567 = vunpack.c.l.b16 %v87
    %v568 = vunpack.c.h.b16 %v87
    %v569 = vunpack.c.l.b16 %v88
    %v570 = vunpack.c.h.b16 %v88
    %v571 = vunpack.c.l.b16 %v89
    %v572 = vunpack.c.h.b16 %v89
    %v573 = vunpack.c.l.b16 %v90
    %v574 = vunpack.c.h.b16 %v90
    %v575 = vunpack.c.l.b16 %v91
    %v576 = vunpack.c.h.b16 %v91
    %v577 = vunpack.c.l.b16 %v92
    %v578 = vunpack.c.h.b16 %v92
    %v579 = vunpack.c.l.b16 %v93
    %v580 = vunpack.c.h.b16 %v93
    %v581 = vunpack.c.l.b16 %v94
    %v582 = vunpack.c.h.b16 %v94
    %v583 = vunpack.c.l.b16 %v95
    %v584 = vunpack.c.h.b16 %v95
    %v585 = vunpack.c.l.b16 %v96
    %v586 = vunpack.c.h.b16 %v96
    %v587 = vunpack.c.l.b16 %v97
    %v588 = vunpack.c.h.b16 %v97
    %v589 = vunpack.c.l.b16 %v98
    %v590 = vunpack.c.h.b16 %v98
    %v591 = vunpack.c.l.b16 %v99
    %v592 = vunpack.c.h.b16 %v99
    %v593 = vunpack.c.l.b16 %v100
    %v594 = vunpack.c.h.b16 %v100
    %v595 = vunpack.c.l.b16 %v101
    %v596 = vunpack.c.h.b16 %v101
    %v597 = vunpack.c.l.b16 %v102
    %v598 = vunpack.c.h.b16 %v102
    %v599 = vunpack.c.l.b16 %v103
    %v600 = vunpack.c.h.b16 %v103
    %v601 = vunpack.c.l.b16 %v104
    %v602 = vunpack.c.h.b16 %v104
    %v603 = vunpack.c.l.b16 %v105
    %v604 = vunpack.c.h.b16 %v105
    %v605 = vunpack.c.l.b16 %v106
    %v606 = vunpack.c.h.b16 %v106
    %v607 = vunpack.c.l.b16 %v107
    %v608 = vunpack.c.h.b16 %v107
    %v609 = vunpack.c.l.b16 %v108
    %v610 = vunpack.c.h.b16 %v108
    %v611 = vunpack.c.l.b16 %v109
    %v612 = vunpack.c.h.b16 %v109
    %v613 = vunpack.c.l.b16 %v110
    %v614 = vunpack.c.h.b16 %v110
    %v615 = vunpack.c.l.b16 %v111
    %v616 = vunpack.c.h.b16 %v111
    %v617 = vunpack.c.l.b16 %v112
    %v618 = vunpack.c.h.b16 %v112
    %v619 = vunpack.c.l.b16 %v113
    %v620 = vunpack.c.h.b16 %v113
    %v621 = vunpack.c.l.b16 %v114
    %v622 = vunpack.c.h.b16 %v114
    %v623 = vunpack.c.l.b16 %v115
    %v624 = vunpack.c.h.b16 %v115
    %v625 = vunpack.c.l.b16 %v116
    %v626 = vunpack.c.h.b16 %v116
    %v627 = vunpack.c.l.b16 %v117
    %v628 = vunpack.c.h.b16 %v117
    %v629 = vunpack.c.l.b16 %v118
    %v630 = vunpack.c.h.b16 %v118
    %v631 = vunpack.c.l.b16 %v119
    %v632 = vunpack.c.h.b16 %v119
    %v633 = vunpack.c.l.b16 %v120
    %v634 = vunpack.c.h.b16 %v120
    %v635 = vunpack.c.l.b16 %v121
    %v636 = vunpack.c.h.b16 %v121
    %v637 = vunpack.c.l.b16 %v122
    %v638 = vunpack.c.h.b16 %v122
    %v639 = vunpack.c.l.b16 %v123
    %v640 = vunpack.c.h.b16 %v123
    %v641 = vunpack.c.l.b16 %v124
    %v642 = vunpack.c.h.b16 %v124
    %v643 = vunpack.c.l.b16 %v125
    %v644 = vunpack.c.h.b16 %v125
    %v645 = vunpack.c.l.b16 %v126
    %v646 = vunpack.c.h.b16 %v126
    %v647 = vunpack.c.l.b16 %v127
    %v648 = vunpack.c.h.b16 %v127
    %v649 = vunpack.c.l.b16 %v128
    %v650 = vunpack.c.h.b16 %v128
    %v651 = vunpack.c.l.b16 %v129
    %v652 = vunpack.c.h.b16 %v129
    %v653 = vunpack.c.l.b16 %v130
    %v654 = vunpack.c.h.b16 %v130
    %v655 = vunpack.c.l.b16 %v131
    %v656 = vunpack.c.h.b16 %v131
    %v657 = vunpack.c.l.b16 %v132
    %v658 = vunpack.c.h.b16 %v132
    %v659 = vunpack.c.l.b16 %v133
    %v660 = vunpack.c.h.b16 %v133
    %v661 = vunpack.c.l.b16 %v134
    %v662 = vunpack.c.h.b16 %v134
    %v663 = vunpack.c.l.b16 %v135
    %v664 = vunpack.c.h.b16 %v135
    %v665 = vunpack.c.l.b16 %v136
    %v666 = vunpack.c.h.b16 %v136
    %v667 = vunpack.c.l.b16 %v137
    %v668 = vunpack.c.h.b16 %v137
    %v669 = vunpack.c.l.b16 %v138
    %v670 = vunpack.c.h.b16 %v138
    %v671 = vunpack.c.l.b16 %v139
    %v672 = vunpack.c.h.b16 %v139
    %v673 = vunpack.c.l.b16 %v140
    %v674 = vunpack.c.h.b16 %v140
    %v675 = vunpack.c.l.b16 %v141
    %v676 = vunpack.c.h.b16 %v141
    %v677 = vunpack.c.l.b16 %v142
    %v678 = vunpack.c.h.b16 %v142
    %v679 = vunpack.c.l.b16 %v143
    %v680 = vunpack.c.h.b16 %v143
    %v681 = vunpack.c.l.b16 %v144
    %v682 = vunpack.c.h.b16 %v144
    %v683 = vunpack.c.l.b16 %v145
    %v684 = vunpack.c.h.b16 %v145
    %v685 = vunpack.c.l.b16 %v146
    %v686 = vunpack.c.h.b16 %v146
    %v687 = vunpack.c.l.b16 %v147
    %v688 = vunpack.c.h.b16 %v147
    %v689 = vunpack.c.l.b16 %v148
    %v690 = vunpack.c.h.b16 %v148
    %v691 = vunpack.c.l.b16 %v149
    %v692 = vunpack.c.h.b16 %v149
    %v693 = vunpack.c.l.b16 %v150
    %v694 = vunpack.c.h.b16 %v150
    %v695 = vunpack.c.l.b16 %v151
    %v696 = vunpack.c.h.b16 %v151
    %v697 = vunpack.c.l.b16 %v152
    %v698 = vunpack.c.h.b16 %v152
    %v699 = vunpack.c.l.b16 %v153
    %v700 = vunpack.c.h.b16 %v153
    %v701 = vunpack.c.l.b16 %v154
    %v702 = vunpack.c.h.b16 %v154
    %v703 = vunpack.c.l.b16 %v155
    %v704 = vunpack.c.h.b16 %v155
    %v705 = vunpack.c.l.b16 %v156
    %v706 = vunpack.c.h.b16 %v156
    %v707 = vunpack.c.l.b16 %v157
    %v708 = vunpack.c.h.b16 %v157
    %v709 = vunpack.c.l.b16 %v158
    %v710 = vunpack.c.h.b16 %v158
    %v711 = vunpack.c.l.b16 %v159
    %v712 = vunpack.c.h.b16 %v159
    %v713 = vunpack.c.l.b16 %v160
    %v714 = vunpack.c.h.b16 %v160
    %v715 = vunpack.c.l.b16 %v161
    %v716 = vunpack.c.h.b16 %v161
    %v717 = vunpack.c.l.b16 %v162
    %v718 = vunpack.c.h.b16 %v162
    %v719 = vunpack.c.l.b16 %v163
    %v720 = vunpack.c.h.b16 %v163
    %v721 = vunpack.c.l.b16 %v164
    %v722 = vunpack.c.h.b16 %v164
    %v723 = vunpack.c.l.b16 %v165
    %v724 = vunpack.c.h.b16 %v165
    %v725 = vunpack.c.l.b16 %v166
    %v726 = vunpack.c.h.b16 %v166
    %v727 = vunpack.c.l.b16 %v167
    %v728 = vunpack.c.h.b16 %v167
    %v729 = vunpack.c.l.b16 %v168
    %v730 = vunpack.c.h.b16 %v168
    %v731 = vunpack.c.l.b16 %v169
    %v732 = vunpack.c.h.b16 %v169
    %v733 = vunpack.c.l.b16 %v170
    %v734 = vunpack.c.h.b16 %v170
    %v735 = vunpack.c.l.b16 %v171
    %v736 = vunpack.c.h.b16 %v171
    %v737 = vunpack.c.l.b16 %v172
    %v738 = vunpack.c.h.b16 %v172
    %v739 = vunpack.c.l.b16 %v173
    %v740 = vunpack.c.h.b16 %v173
    %v741 = vunpack.c.l.b16 %v174
    %v742 = vunpack.c.h.b16 %v174
    %v743 = vunpack.c.l.b16 %v175
    %v744 = vunpack.c.h.b16 %v175
    %v745 = vunpack.c.l.b16 %v176
    %v746 = vunpack.c.h.b16 %v176
    %v747 = vunpack.c.l.b16 %v177
    %v748 = vunpack.c.h.b16 %v177
    %v749 = vunpack.c.l.b16 %v178
    %v750 = vunpack.c.h.b16 %v178
    %v751 = vunpack.c.l.b16 %v179
    %v752 = vunpack.c.h.b16 %v179
    %v753 = vunpack.c.l.b16 %v180
    %v754 = vunpack.c.h.b16 %v180
    %v755 = vunpack.c.l.b16 %v181
    %v756 = vunpack.c.h.b16 %v181
    %v757 = vunpack.c.l.b16 %v182
    %v758 = vunpack.c.h.b16 %v182
    %v759 = vunpack.c.l.b16 %v183
    %v760 = vunpack.c.h.b16 %v183
    %v761 = vunpack.c.l.b16 %v184
    %v762 = vunpack.c.h.b16 %v184
    %v763 = vunpack.c.l.b16 %v185
    %v764 = vunpack.c.h.b16 %v185
    %v765 = vunpack.c.l.b16 %v186
    %v766 = vunpack.c.h.b16 %v186
    %v767 = vunpack.c.l.b16 %v187
    %v768 = vunpack.c.h.b16 %v187
    %v769 = vunpack.c.l.b16 %v188
    %v770 = vunpack.c.h.b16 %v188
    %v771 = vunpack.c.l.b16 %v189
    %v772 = vunpack.c.h.b16 %v189
    %v773 = vunpack.c.l.b16 %v190
    %v774 = vunpack.c.h.b16 %v190
    %v775 = vunpack.c.l.b16 %v191
    %v776 = vunpack.c.h.b16 %v191
    %v777 = vunpack.c.l.b16 %v192
    %v778 = vunpack.c.h.b16 %v192
    %v779 = vunpack.c.l.b16 %v193
    %v780 = vunpack.c.h.b16 %v193
    %v781 = vunpack.c.l.b16 %v194
    %v782 = vunpack.c.h.b16 %v194
    %v783 = vunpack.c.l.b16 %v195
    %v784 = vunpack.c.h.b16 %v195
    %v785 = vunpack.c.l.b16 %v196
    %v786 = vunpack.c.h.b16 %v196
    %v787 = vunpack.c.l.b16 %v197
    %v788 = vunpack.c.h.b16 %v197
    %v789 = vunpack.c.l.b16 %v198
    %v790 = vunpack.c.h.b16 %v198
    %v791 = vunpack.c.l.b16 %v199
    %v792 = vunpack.c.h.b16 %v199
    %v793 = vunpack.c.l.b16 %v200
    %v794 = vunpack.c.h.b16 %v200
    %v795 = vunpack.c.l.b16 %v201
    %v796 = vunpack.c.h.b16 %v201
    %v797 = vunpack.c.l.b16 %v202
    %v798 = vunpack.c.h.b16 %v202
    %v799 = vunpack.c.l.b16 %v203
    %v800 = vunpack.c.h.b16 %v203
    %v801 = vunpack.c.l.b16 %v204
    %v802 = vunpack.c.h.b16 %v204
    %v803 = vunpack.c.l.b16 %v205
    %v804 = vunpack.c.h.b16 %v205
    %v805 = vunpack.c.l.b16 %v206
    %v806 = vunpack.c.h.b16 %v206
    %v807 = vunpack.c.l.b16 %v207
    %v808 = vunpack.c.h.b16 %v207
    %v809 = vunpack.c.l.b16 %v208
    %v810 = vunpack.c.h.b16 %v208
    %v811 = vunpack.c.l.b16 %v209
    %v812 = vunpack.c.h.b16 %v209
    %v813 = vunpack.c.l.b16 %v210
    %v814 = vunpack.c.h.b16 %v210
    %v815 = vunpack.c.l.b16 %v211
    %v816 = vunpack.c.h.b16 %v211
    %v817 = vunpack.c.l.b16 %v212
    %v818 = vunpack.c.h.b16 %v212
    %v819 = vunpack.c.l.b16 %v213
    %v820 = vunpack.c.h.b16 %v213
    %v821 = vunpack.c.l.b16 %v214
    %v822 = vunpack.c.h.b16 %v214
    %v823 = vunpack.c.l.b16 %v215
    %v824 = vunpack.c.h.b16 %v215
    %v825 = vunpack.c.l.b16 %v216
    %v826 = vunpack.c.h.b16 %v216
    %v827 = vunpack.c.l.b16 %v217
    %v828 = vunpack.c.h.b16 %v217
    %v829 = vunpack.c.l.b16 %v218
    %v830 = vunpack.c.h.b16 %v218
    %v831 = vunpack.c.l.b16 %v219
    %v832 = vunpack.c.h.b16 %v219
    %v833 = vunpack.c.l.b16 %v220
    %v834 = vunpack.c.h.b16 %v220
    %v835 = vunpack.c.l.b16 %v221
    %v836 = vunpack.c.h.b16 %v221
    %v837 = vunpack.c.l.b16 %v222
    %v838 = vunpack.c.h.b16 %v222
    %v839 = vunpack.c.l.b16 %v223
    %v840 = vunpack.c.h.b16 %v223
    %v841 = vunpack.c.l.b16 %v224
    %v842 = vunpack.c.h.b16 %v224
    %v843 = vunpack.c.l.b16 %v225
    %v844 = vunpack.c.h.b16 %v225
    %v845 = vunpack.c.l.b16 %v226
    %v846 = vunpack.c.h.b16 %v226
    %v847 = vunpack.c.l.b16 %v227
    %v848 = vunpack.c.h.b16 %v227
    %v849 = vunpack.c.l.b16 %v228
    %v850 = vunpack.c.h.b16 %v228
    %v851 = vunpack.c.l.b16 %v229
    %v852 = vunpack.c.h.b16 %v229
    %v853 = vunpack.c.l.b16 %v230
    %v854 = vunpack.c.h.b16 %v230
    %v855 = vunpack.c.l.b16 %v231
    %v856 = vunpack.c.h.b16 %v231
    %v857 = vunpack.c.l.b16 %v232
    %v858 = vunpack.c.h.b16 %v232
    %v859 = vunpack.c.l.b16 %v233
    %v860 = vunpack.c.h.b16 %v233
    %v861 = vunpack.c.l.b16 %v234
    %v862 = vunpack.c.h.b16 %v234
    %v863 = vunpack.c.l.b16 %v235
    %v864 = vunpack.c.h.b16 %v235
    %v865 = vunpack.c.l.b16 %v236
    %v866 = vunpack.c.h.b16 %v236
    %v867 = vunpack.c.l.b16 %v237
    %v868 = vunpack.c.h.b16 %v237
    %v869 = vunpack.c.l.b16 %v238
    %v870 = vunpack.c.h.b16 %v238
    %v871 = vunpack.c.l.b16 %v239
    %v872 = vunpack.c.h.b16 %v239
    %v873 = vunpack.c.l.b16 %v240
    %v874 = vunpack.c.h.b16 %v240
    %v875 = vpack.c.b16 %v487, %v483
    %v876 = vpack.c.b16 %v488, %v484
    %v877 = vpack.c.b16 %v489, %v485
    %v878 = vpack.c.b16 %v490, %v486
    %v879 = vpack.c.b16 %v495, %v491
    %v880 = vpack.c.b16 %v496, %v492
    %v881 = vpack.c.b16 %v497, %v493
    %v882 = vpack.c.b16 %v498, %v494
    %v883 = vpack.c.b16 %v503, %v499
    %v884 = vpack.c.b16 %v504, %v500
    %v885 = vpack.c.b16 %v505, %v501
    %v886 = vpack.c.b16 %v506, %v502
    %v887 = vpack.c.b16 %v511, %v507
    %v888 = vpack.c.b16 %v512, %v508
    %v889 = vpack.c.b16 %v513, %v509
    %v890 = vpack.c.b16 %v514, %v510
    %v891 = vpack.c.b16 %v519, %v515
    %v892 = vpack.c.b16 %v520, %v516
    %v893 = vpack.c.b16 %v521, %v517
    %v894 = vpack.c.b16 %v522, %v518
    %v895 = vpack.c.b16 %v527, %v523
    %v896 = vpack.c.b16 %v528, %v524
    %v897 = vpack.c.b16 %v529, %v525
    %v898 = vpack.c.b16 %v530, %v526
    %v899 = vpack.c.b16 %v535, %v531
    %v900 = vpack.c.b16 %v536, %v532
    %v901 = vpack.c.b16 %v537, %v533
    %v902 = vpack.c.b16 %v538, %v534
    %v903 = vpack.c.b16 %v543, %v539
    %v904 = vpack.c.b16 %v544, %v540
    %v905 = vpack.c.b16 %v545, %v541
    %v906 = vpack.c.b16 %v546, %v542
    %v907 = vpack.c.b16 %v551, %v547
    %v908 = vpack.c.b16 %v552, %v548
    %v909 = vpack.c.b16 %v553, %v549
    %v910 = vpack.c.b16 %v554, %v550
    %v911 = vpack.c.b16 %v559, %v555
    %v912 = vpack.c.b16 %v560, %v556
    %v913 = vpack.c.b16 %v561, %v557
    %v914 = vpack.c.b16 %v562, %v558
    %v915 = vpack.c.b16 %v567, %v563
    %v916 = vpack.c.b16 %v568, %v564
    %v917 = vpack.c.b16 %v569, %v565
    %v918 = vpack.c.b16 %v570, %v566
    %v919 = vpack.c.b16 %v575, %v571
    %v920 = vpack.c.b16 %v576, %v572
    %v921 = vpack.c.b16 %v577, %v573
    %v922 = vpack.c.b16 %v578, %v574
    %v923 = vpack.c.b16 %v583, %v579
    %v924 = vpack.c.b16 %v584, %v580
    %v925 = vpack.c.b16 %v585, %v581
    %v926 = vpack.c.b16 %v586, %v582
    %v927 = vpack.c.b16 %v591, %v587
    %v928 = vpack.c.b16 %v592, %v588
    %v929 = vpack.c.b16 %v593, %v589
    %v930 = vpack.c.b16 %v594, %v590
    %v931 = vpack.c.b16 %v599, %v595
    %v932 = vpack.c.b16 %v600, %v596
    %v933 = vpack.c.b16 %v601, %v597
    %v934 = vpack.c.b16 %v602, %v598
    %v935 = vpack.c.b16 %v607, %v603
    %v936 = vpack.c.b16 %v608, %v604
    %v937 = vpack.c.b16 %v609, %v605
    %v938 = vpack.c.b16 %v610, %v606
    %v939 = vpack.c.b16 %v615, %v611
    %v940 = vpack.c.b16 %v616, %v612
    %v941 = vpack.c.b16 %v617, %v613
    %v942 = vpack.c.b16 %v618, %v614
    %v943 = vpack.c.b16 %v623, %v619
    %v944 = vpack.c.b16 %v624, %v620
    %v945 = vpack.c.b16 %v625, %v621
    %v946 = vpack.c.b16 %v626, %v622
    %v947 = vpack.c.b16 %v631, %v627
    %v948 = vpack.c.b16 %v632, %v628
    %v949 = vpack.c.b16 %v633, %v629
    %v950 = vpack.c.b16 %v634, %v630
    %v951 = vpack.c.b16 %v639, %v635
    %v952 = vpack.c.b16 %v640, %v636
    %v953 = vpack.c.b16 %v641, %v637
    %v954 = vpack.c.b16 %v642, %v638
    %v955 = vpack.c.b16 %v647, %v643
    %v956 = vpack.c.b16 %v648, %v644
    %v957 = vpack.c.b16 %v649, %v645
    %v958 = vpack.c.b16 %v650, %v646
    %v959 = vpack.c.b16 %v655, %v651
    %v960 = vpack.c.b16 %v656, %v652
    %v961 = vpack.c.b16 %v657, %v653
    %v962 = vpack.c.b16 %v658, %v654
    %v963 = vpack.c.b16 %v663, %v659
    %v964 = vpack.c.b16 %v664, %v660
    %v965 = vpack.c.b16 %v665, %v661
    %v966 = vpack.c.b16 %v666, %v662
    %v967 = vpack.c.b16 %v671, %v667
    %v968 = vpack.c.b16 %v672, %v668
    %v969 = vpack.c.b16 %v673, %v669
    %v970 = vpack.c.b16 %v674, %v670
    %v971 = vpack.c.b16 %v679, %v675
    %v972 = vpack.c.b16 %v680, %v676
    %v973 = vpack.c.b16 %v681, %v677
    %v974 = vpack.c.b16 %v682, %v678
    %v975 = vpack.c.b16 %v687, %v683
    %v976 = vpack.c.b16 %v688, %v684
    %v977 = vpack.c.b16 %v689, %v685
    %v978 = vpack.c.b16 %v690, %v686
    %v979 = vpack.c.b16 %v695, %v691
    %v980 = vpack.c.b16 %v696, %v692
    %v981 = vpack.c.b16 %v697, %v693
    %v982 = vpack.c.b16 %v698, %v694
    %v983 = vpack.c.b16 %v703, %v699
    %v984 = vpack.c.b16 %v704, %v700
    %v985 = vpack.c.b16 %v705, %v701
    %v986 = vpack.c.b16 %v706, %v702
    %v987 = vpack.c.b16 %v711, %v707
    %v988 = vpack.c.b16 %v712, %v708
    %v989 = vpack.c.b16 %v713, %v709
    %v990 = vpack.c.b16 %v714, %v710
    %v991 = vpack.c.b16 %v719, %v715
    %v992 = vpack.c.b16 %v720, %v716
    %v993 = vpack.c.b16 %v721, %v717
    %v994 = vpack.c.b16 %v722, %v718
    %v995 = vpack.c.b16 %v727, %v723
    %v996 = vpack.c.b16 %v728, %v724
    %v997 = vpack.c.b16 %v729, %v725
    %v998 = vpack.c.b16 %v730, %v726
    %v999 = vpack.c.b16 %v735, %v731
    %v1000 = vpack.c.b16 %v736, %v732
    %v1001 = vpack.c.b16 %v737, %v733
    %v1002 = vpack.c.b16 %v738, %v734
    %v1003 = vpack.c.b16 %v743, %v739
    %v1004 = vpack.c.b16 %v744, %v740
    %v1005 = vpack.c.b16 %v745, %v741
    %v1006 = vpack.c.b16 %v746, %v742
    %v1007 = vpack.c.b16 %v751, %v747
    %v1008 = vpack.c.b16 %v752, %v748
    %v1009 = vpack.c.b16 %v753, %v749
    %v1010 = vpack.c.b16 %v754, %v750
    %v1011 = vpack.c.b16 %v759, %v755
    %v1012 = vpack.c.b16 %v760, %v756
    %v1013 = vpack.c.b16 %v761, %v757
    %v1014 = vpack.c.b16 %v762, %v758
    %v1015 = vpack.c.b16 %v767, %v763
    %v1016 = vpack.c.b16 %v768, %v764
    %v1017 = vpack.c.b16 %v769, %v765
    %v1018 = vpack.c.b16 %v770, %v766
    %v1019 = vpack.c.b16 %v775, %v771
    %v1020 = vpack.c.b16 %v776, %v772
    %v1021 = vpack.c.b16 %v777, %v773
    %v1022 = vpack.c.b16 %v778, %v774
    %v1023 = vpack.c.b16 %v783, %v779
    %v1024 = vpack.c.b16 %v784, %v780
    %v1025 = vpack.c.b16 %v785, %v781
    %v1026 = vpack.c.b16 %v786, %v782
    %v1027 = vpack.c.b16 %v791, %v787
    %v1028 = vpack.c.b16 %v792, %v788
    %v1029 = vpack.c.b16 %v793, %v789
    %v1030 = vpack.c.b16 %v794, %v790
    %v1031 = vpack.c.b16 %v799, %v795
    %v1032 = vpack.c.b16 %v800, %v796
    %v1033 = vpack.c.b16 %v801, %v797
    %v1034 = vpack.c.b16 %v802, %v798
    %v1035 = vpack.c.b16 %v807, %v803
    %v1036 = vpack.c.b16 %v808, %v804
    %v1037 = vpack.c.b16 %v809, %v805
    %v1038 = vpack.c.b16 %v810, %v806
    %v1039 = vpack.c.b16 %v815, %v811
    %v1040 = vpack.c.b16 %v816, %v812
    %v1041 = vpack.c.b16 %v817, %v813
    %v1042 = vpack.c.b16 %v818, %v814
    %v1043 = vpack.c.b16 %v823, %v819
    %v1044 = vpack.c.b16 %v824, %v820
    %v1045 = vpack.c.b16 %v825, %v821
    %v1046 = vpack.c.b16 %v826, %v822
    %v1047 = vpack.c.b16 %v831, %v827
    %v1048 = vpack.c.b16 %v832, %v828
    %v1049 = vpack.c.b16 %v833, %v829
    %v1050 = vpack.c.b16 %v834, %v830
    %v1051 = vpack.c.b16 %v839, %v835
    %v1052 = vpack.c.b16 %v840, %v836
    %v1053 = vpack.c.b16 %v841, %v837
    %v1054 = vpack.c.b16 %v842, %v838
    %v1055 = vpack.c.b16 %v847, %v843
    %v1056 = vpack.c.b16 %v848, %v844
    %v1057 = vpack.c.b16 %v849, %v845
    %v1058 = vpack.c.b16 %v850, %v846
    %v1059 = vpack.c.b16 %v855, %v851
    %v1060 = vpack.c.b16 %v856, %v852
    %v1061 = vpack.c.b16 %v857, %v853
    %v1062 = vpack.c.b16 %v858, %v854
    %v1063 = vpack.c.b16 %v863, %v859
    %v1064 = vpack.c.b16 %v864, %v860
    %v1065 = vpack.c.b16 %v865, %v861
    %v1066 = vpack.c.b16 %v866, %v862
    %v1067 = vpack.c.b16 %v871, %v867
    %v1068 = vpack.c.b16 %v872, %v868
    %v1069 = vpack.c.b16 %v873, %v869
    %v1070 = vpack.c.b16 %v874, %v870
    %vm1267 = vcmask 130048
    %v1269 = vsel %vm1267, %v280, 0
    %1271 = vmatprep.subr.bf16.mxu0 %v876
    %1272 = vmatpush1.bf16.msra.mxu0 %v875
    %1273 = vmatprep.subr.bf16.mxu0 %v880
    %1274 = vmatpush1.bf16.msra.mxu0 %v879
    %1275 = vmatprep.subr.bf16.mxu0 %v884
    %1276 = vmatpush1.bf16.msra.mxu0 %v883
    %1277 = vmatprep.subr.bf16.mxu0 %v888
    %1278 = vmatpush1.bf16.msra.mxu0 %v887
    %1279 = vmatprep.subr.bf16.mxu0 %v892
    %1280 = vmatpush1.bf16.msra.mxu0 %v891
    %1281 = vmatprep.subr.bf16.mxu0 %v896
    %1282 = vmatpush1.bf16.msra.mxu0 %v895
    %1283 = vmatprep.subr.bf16.mxu0 %v900
    %1284 = vmatpush1.bf16.msra.mxu0 %v899
    %1285 = vmatprep.subr.bf16.mxu0 %v904
    %1286 = vmatpush1.bf16.msra.mxu0 %v903
    %1287 = vmatprep.subr.bf16.mxu0 %v908
    %1288 = vmatpush1.bf16.msra.mxu0 %v907
    %1289 = vmatprep.subr.bf16.mxu0 %v912
    %1290 = vmatpush1.bf16.msra.mxu0 %v911
    %1291 = vmatprep.subr.bf16.mxu0 %v916
    %1292 = vmatpush1.bf16.msra.mxu0 %v915
    %1293 = vmatprep.subr.bf16.mxu0 %v920
    %1294 = vmatpush1.bf16.msra.mxu0 %v919
    %1295 = vmatprep.subr.bf16.mxu0 %v924
    %1296 = vmatpush1.bf16.msra.mxu0 %v923
    %1297 = vmatprep.subr.bf16.mxu0 %v928
    %1298 = vmatpush1.bf16.msra.mxu0 %v927
    %1299 = vmatprep.subr.bf16.mxu0 %v932
    %1300 = vmatpush1.bf16.msra.mxu0 %v931
    %1301 = vmatprep.subr.bf16.mxu0 %v936
    %1302 = vmatpush1.bf16.msra.mxu0 %v935
    %1303 = vmatprep.mubr.bf16.mxu0 %v275
    %1304 = vmatmul.mubr.bf16.gmra.mrb[0].mxu0 %v274
    %v1305 = vpop.f32.mrb[0].mxu0
    %v1306 = vadd.f32 %v246, %v1305
    %v1307 = vpop.f32.mrb[0].mxu0
    %v1308 = vadd.f32 %v250, %v1307
    %v1309 = vpop.f32.mrb[0].mxu0
    %v1310 = vpop.f32.mrb[0].mxu0
    %1311 = vdwg.mxu0
    %1312 = vmatprep.subr.bf16.mxu0 %v940
    %1313 = vmatpush1.bf16.msra.mxu0 %v939
    %1314 = vmatprep.subr.bf16.mxu0 %v944
    %1315 = vmatpush1.bf16.msra.mxu0 %v943
    %1316 = vmatprep.subr.bf16.mxu0 %v948
    %1317 = vmatpush1.bf16.msra.mxu0 %v947
    %1318 = vmatprep.subr.bf16.mxu0 %v952
    %1319 = vmatpush1.bf16.msra.mxu0 %v951
    %1320 = vmatprep.subr.bf16.mxu0 %v956
    %1321 = vmatpush1.bf16.msra.mxu0 %v955
    %1322 = vmatprep.subr.bf16.mxu0 %v960
    %1323 = vmatpush1.bf16.msra.mxu0 %v959
    %1324 = vmatprep.subr.bf16.mxu0 %v964
    %1325 = vmatpush1.bf16.msra.mxu0 %v963
    %1326 = vmatprep.subr.bf16.mxu0 %v968
    %1327 = vmatpush1.bf16.msra.mxu0 %v967
    %1328 = vmatprep.subr.bf16.mxu0 %v972
    %1329 = vmatpush1.bf16.msra.mxu0 %v971
    %1330 = vmatprep.subr.bf16.mxu0 %v976
    %1331 = vmatpush1.bf16.msra.mxu0 %v975
    %1332 = vmatprep.subr.bf16.mxu0 %v980
    %1333 = vmatpush1.bf16.msra.mxu0 %v979
    %1334 = vmatprep.subr.bf16.mxu0 %v984
    %1335 = vmatpush1.bf16.msra.mxu0 %v983
    %1336 = vmatprep.subr.bf16.mxu0 %v988
    %1337 = vmatpush1.bf16.msra.mxu0 %v987
    %1338 = vmatprep.subr.bf16.mxu0 %v992
    %1339 = vmatpush1.bf16.msra.mxu0 %v991
    %1340 = vmatprep.subr.bf16.mxu0 %v996
    %1341 = vmatpush1.bf16.msra.mxu0 %v995
    %1342 = vmatprep.subr.bf16.mxu0 %v1000
    %1343 = vmatpush1.bf16.msra.mxu0 %v999
    %1344 = vmatprep.mubr.bf16.mxu0 %v277
    %1345 = vmatmul.mubr.bf16.gmra.mrb[0].mxu0 %v276
    %v1346 = vpop.f32.mrb[0].mxu0
    %v1347 = vadd.f32 %v1306, %v1346
    %v1348 = vpop.f32.mrb[0].mxu0
    %v1349 = vadd.f32 %v1308, %v1348
    %v1350 = vpop.f32.mrb[0].mxu0
    %v1351 = vpop.f32.mrb[0].mxu0
    %1352 = vdwg.mxu0
    %1353 = vmatprep.subr.bf16.mxu0 %v1004
    %1354 = vmatpush1.bf16.msra.mxu0 %v1003
    %1355 = vmatprep.subr.bf16.mxu0 %v1008
    %1356 = vmatpush1.bf16.msra.mxu0 %v1007
    %1357 = vmatprep.subr.bf16.mxu0 %v1012
    %1358 = vmatpush1.bf16.msra.mxu0 %v1011
    %1359 = vmatprep.subr.bf16.mxu0 %v1016
    %1360 = vmatpush1.bf16.msra.mxu0 %v1015
    %1361 = vmatprep.subr.bf16.mxu0 %v1020
    %1362 = vmatpush1.bf16.msra.mxu0 %v1019
    %1363 = vmatprep.subr.bf16.mxu0 %v1024
    %1364 = vmatpush1.bf16.msra.mxu0 %v1023
    %1365 = vmatprep.subr.bf16.mxu0 %v1028
    %1366 = vmatpush1.bf16.msra.mxu0 %v1027
    %1367 = vmatprep.subr.bf16.mxu0 %v1032
    %1368 = vmatpush1.bf16.msra.mxu0 %v1031
    %1369 = vmatprep.subr.bf16.mxu0 %v1036
    %1370 = vmatpush1.bf16.msra.mxu0 %v1035
    %1371 = vmatprep.subr.bf16.mxu0 %v1040
    %1372 = vmatpush1.bf16.msra.mxu0 %v1039
    %1373 = vmatprep.subr.bf16.mxu0 %v1044
    %1374 = vmatpush1.bf16.msra.mxu0 %v1043
    %1375 = vmatprep.subr.bf16.mxu0 %v1048
    %1376 = vmatpush1.bf16.msra.mxu0 %v1047
    %1377 = vmatprep.subr.bf16.mxu0 %v1052
    %1378 = vmatpush1.bf16.msra.mxu0 %v1051
    %1379 = vmatprep.subr.bf16.mxu0 %v1056
    %1380 = vmatpush1.bf16.msra.mxu0 %v1055
    %1381 = vmatprep.subr.bf16.mxu0 %v1060
    %1382 = vmatpush1.bf16.msra.mxu0 %v1059
    %1383 = vmatprep.subr.bf16.mxu0 %v1064
    %1384 = vmatpush1.bf16.msra.mxu0 %v1063
    %1385 = vmatprep.mubr.bf16.mxu0 %v279
    %1386 = vmatmul.mubr.bf16.gmra.mrb[0].mxu0 %v278
    %v1387 = vpop.f32.mrb[0].mxu0
    %v1388 = vadd.f32 %v1347, %v1387
    %v1389 = vpop.f32.mrb[0].mxu0
    %v1390 = vadd.f32 %v1349, %v1389
    %v1391 = vpop.f32.mrb[0].mxu0
    %v1392 = vpop.f32.mrb[0].mxu0
    %1393 = vdwg.mxu0
    %1394 = vmatprep.subr.bf16.mxu0 %v1068
    %1395 = vmatpush1.bf16.msra.mxu0 %v1067
    %1396 = vmatprep.subr.bf16.mxu0 0
    %1397 = vmatpush1.bf16.msra.mxu0 0
    %1398 = vmatprep.subr.bf16.mxu0 0
    %1399 = vmatpush1.bf16.msra.mxu0 0
    %1400 = vmatprep.subr.bf16.mxu0 0
    %1401 = vmatpush1.bf16.msra.mxu0 0
    %1402 = vmatprep.subr.bf16.mxu0 0
    %1403 = vmatpush1.bf16.msra.mxu0 0
    %1404 = vmatprep.subr.bf16.mxu0 0
    %1405 = vmatpush1.bf16.msra.mxu0 0
    %1406 = vmatprep.subr.bf16.mxu0 0
    %1407 = vmatpush1.bf16.msra.mxu0 0
    %1408 = vmatprep.subr.bf16.mxu0 0
    %1409 = vmatpush1.bf16.msra.mxu0 0
    %1410 = vmatprep.subr.bf16.mxu0 0
    %1411 = vmatpush1.bf16.msra.mxu0 0
    %1412 = vmatprep.subr.bf16.mxu0 0
    %1413 = vmatpush1.bf16.msra.mxu0 0
    %1414 = vmatprep.subr.bf16.mxu0 0
    %1415 = vmatpush1.bf16.msra.mxu0 0
    %1416 = vmatprep.subr.bf16.mxu0 0
    %1417 = vmatpush1.bf16.msra.mxu0 0
    %1418 = vmatprep.subr.bf16.mxu0 0
    %1419 = vmatpush1.bf16.msra.mxu0 0
    %1420 = vmatprep.subr.bf16.mxu0 0
    %1421 = vmatpush1.bf16.msra.mxu0 0
    %1422 = vmatprep.subr.bf16.mxu0 0
    %1423 = vmatpush1.bf16.msra.mxu0 0
    %1424 = vmatprep.subr.bf16.mxu0 0
    %1425 = vmatpush1.bf16.msra.mxu0 0
    %1426 = vmatprep.mubr.bf16.mxu0 0
    %1427 = vmatmul.mubr.bf16.gmra.mrb[0].mxu0 %v1269
    %v1428 = vpop.f32.mrb[0].mxu0
    %v1429 = vadd.f32 %v1388, %v1428
    %v1430 = vpop.f32.mrb[0].mxu0
    %v1431 = vadd.f32 %v1390, %v1430
    %v1432 = vpop.f32.mrb[0].mxu0
    %v1433 = vpop.f32.mrb[0].mxu0
    %1434 = vdwg.mxu0
    %1435 = vmatprep.subr.bf16.mxu0 %v878
    %1436 = vmatpush1.bf16.msra.mxu0 %v877
    %1437 = vmatprep.subr.bf16.mxu0 %v882
    %1438 = vmatpush1.bf16.msra.mxu0 %v881
    %1439 = vmatprep.subr.bf16.mxu0 %v886
    %1440 = vmatpush1.bf16.msra.mxu0 %v885
    %1441 = vmatprep.subr.bf16.mxu0 %v890
    %1442 = vmatpush1.bf16.msra.mxu0 %v889
    %1443 = vmatprep.subr.bf16.mxu0 %v894
    %1444 = vmatpush1.bf16.msra.mxu0 %v893
    %1445 = vmatprep.subr.bf16.mxu0 %v898
    %1446 = vmatpush1.bf16.msra.mxu0 %v897
    %1447 = vmatprep.subr.bf16.mxu0 %v902
    %1448 = vmatpush1.bf16.msra.mxu0 %v901
    %1449 = vmatprep.subr.bf16.mxu0 %v906
    %1450 = vmatpush1.bf16.msra.mxu0 %v905
    %1451 = vmatprep.subr.bf16.mxu0 %v910
    %1452 = vmatpush1.bf16.msra.mxu0 %v909
    %1453 = vmatprep.subr.bf16.mxu0 %v914
    %1454 = vmatpush1.bf16.msra.mxu0 %v913
    %1455 = vmatprep.subr.bf16.mxu0 %v918
    %1456 = vmatpush1.bf16.msra.mxu0 %v917
    %1457 = vmatprep.subr.bf16.mxu0 %v922
    %1458 = vmatpush1.bf16.msra.mxu0 %v921
    %1459 = vmatprep.subr.bf16.mxu0 %v926
    %1460 = vmatpush1.bf16.msra.mxu0 %v925
    %1461 = vmatprep.subr.bf16.mxu0 %v930
    %1462 = vmatpush1.bf16.msra.mxu0 %v929
    %1463 = vmatprep.subr.bf16.mxu0 %v934
    %1464 = vmatpush1.bf16.msra.mxu0 %v933
    %1465 = vmatprep.subr.bf16.mxu0 %v938
    %1466 = vmatpush1.bf16.msra.mxu0 %v937
    %1467 = vmatprep.mubr.bf16.mxu0 %v275
    %1468 = vmatmul.mubr.bf16.gmra.mrb[0].mxu0 %v274
    %v1469 = vpop.f32.mrb[0].mxu0
    %v1470 = vadd.f32 %v254, %v1469
    %v1471 = vpop.f32.mrb[0].mxu0
    %v1472 = vadd.f32 %v258, %v1471
    %v1473 = vpop.f32.mrb[0].mxu0
    %v1474 = vpop.f32.mrb[0].mxu0
    %1475 = vdwg.mxu0
    %1476 = vmatprep.subr.bf16.mxu0 %v942
    %1477 = vmatpush1.bf16.msra.mxu0 %v941
    %1478 = vmatprep.subr.bf16.mxu0 %v946
    %1479 = vmatpush1.bf16.msra.mxu0 %v945
    %1480 = vmatprep.subr.bf16.mxu0 %v950
    %1481 = vmatpush1.bf16.msra.mxu0 %v949
    %1482 = vmatprep.subr.bf16.mxu0 %v954
    %1483 = vmatpush1.bf16.msra.mxu0 %v953
    %1484 = vmatprep.subr.bf16.mxu0 %v958
    %1485 = vmatpush1.bf16.msra.mxu0 %v957
    %1486 = vmatprep.subr.bf16.mxu0 %v962
    %1487 = vmatpush1.bf16.msra.mxu0 %v961
    %1488 = vmatprep.subr.bf16.mxu0 %v966
    %1489 = vmatpush1.bf16.msra.mxu0 %v965
    %1490 = vmatprep.subr.bf16.mxu0 %v970
    %1491 = vmatpush1.bf16.msra.mxu0 %v969
    %1492 = vmatprep.subr.bf16.mxu0 %v974
    %1493 = vmatpush1.bf16.msra.mxu0 %v973
    %1494 = vmatprep.subr.bf16.mxu0 %v978
    %1495 = vmatpush1.bf16.msra.mxu0 %v977
    %1496 = vmatprep.subr.bf16.mxu0 %v982
    %1497 = vmatpush1.bf16.msra.mxu0 %v981
    %1498 = vmatprep.subr.bf16.mxu0 %v986
    %1499 = vmatpush1.bf16.msra.mxu0 %v985
    %1500 = vmatprep.subr.bf16.mxu0 %v990
    %1501 = vmatpush1.bf16.msra.mxu0 %v989
    %1502 = vmatprep.subr.bf16.mxu0 %v994
    %1503 = vmatpush1.bf16.msra.mxu0 %v993
    %1504 = vmatprep.subr.bf16.mxu0 %v998
    %1505 = vmatpush1.bf16.msra.mxu0 %v997
    %1506 = vmatprep.subr.bf16.mxu0 %v1002
    %1507 = vmatpush1.bf16.msra.mxu0 %v1001
    %1508 = vmatprep.mubr.bf16.mxu0 %v277
    %1509 = vmatmul.mubr.bf16.gmra.mrb[0].mxu0 %v276
    %v1510 = vpop.f32.mrb[0].mxu0
    %v1511 = vadd.f32 %v1470, %v1510
    %v1512 = vpop.f32.mrb[0].mxu0
    %v1513 = vadd.f32 %v1472, %v1512
    %v1514 = vpop.f32.mrb[0].mxu0
    %v1515 = vpop.f32.mrb[0].mxu0
    %1516 = vdwg.mxu0
    %1517 = vmatprep.subr.bf16.mxu0 %v1006
    %1518 = vmatpush1.bf16.msra.mxu0 %v1005
    %1519 = vmatprep.subr.bf16.mxu0 %v1010
    %1520 = vmatpush1.bf16.msra.mxu0 %v1009
    %1521 = vmatprep.subr.bf16.mxu0 %v1014
    %1522 = vmatpush1.bf16.msra.mxu0 %v1013
    %1523 = vmatprep.subr.bf16.mxu0 %v1018
    %1524 = vmatpush1.bf16.msra.mxu0 %v1017
    %1525 = vmatprep.subr.bf16.mxu0 %v1022
    %1526 = vmatpush1.bf16.msra.mxu0 %v1021
    %1527 = vmatprep.subr.bf16.mxu0 %v1026
    %1528 = vmatpush1.bf16.msra.mxu0 %v1025
    %1529 = vmatprep.subr.bf16.mxu0 %v1030
    %1530 = vmatpush1.bf16.msra.mxu0 %v1029
    %1531 = vmatprep.subr.bf16.mxu0 %v1034
    %1532 = vmatpush1.bf16.msra.mxu0 %v1033
    %1533 = vmatprep.subr.bf16.mxu0 %v1038
    %1534 = vmatpush1.bf16.msra.mxu0 %v1037
    %1535 = vmatprep.subr.bf16.mxu0 %v1042
    %1536 = vmatpush1.bf16.msra.mxu0 %v1041
    %1537 = vmatprep.subr.bf16.mxu0 %v1046
    %1538 = vmatpush1.bf16.msra.mxu0 %v1045
    %1539 = vmatprep.subr.bf16.mxu0 %v1050
    %1540 = vmatpush1.bf16.msra.mxu0 %v1049
    %1541 = vmatprep.subr.bf16.mxu0 %v1054
    %1542 = vmatpush1.bf16.msra.mxu0 %v1053
    %1543 = vmatprep.subr.bf16.mxu0 %v1058
    %1544 = vmatpush1.bf16.msra.mxu0 %v1057
    %1545 = vmatprep.subr.bf16.mxu0 %v1062
    %1546 = vmatpush1.bf16.msra.mxu0 %v1061
    %1547 = vmatprep.subr.bf16.mxu0 %v1066
    %1548 = vmatpush1.bf16.msra.mxu0 %v1065
    %1549 = vmatprep.mubr.bf16.mxu0 %v279
    %1550 = vmatmul.mubr.bf16.gmra.mrb[0].mxu0 %v278
    %v1551 = vpop.f32.mrb[0].mxu0
    %v1552 = vadd.f32 %v1511, %v1551
    %v1553 = vpop.f32.mrb[0].mxu0
    %v1554 = vadd.f32 %v1513, %v1553
    %v1555 = vpop.f32.mrb[0].mxu0
    %v1556 = vpop.f32.mrb[0].mxu0
    %1557 = vdwg.mxu0
    %1558 = vmatprep.subr.bf16.mxu0 %v1070
    %1559 = vmatpush1.bf16.msra.mxu0 %v1069
    %1560 = vmatprep.subr.bf16.mxu0 0
    %1561 = vmatpush1.bf16.msra.mxu0 0
    %1562 = vmatprep.subr.bf16.mxu0 0
    %1563 = vmatpush1.bf16.msra.mxu0 0
    %1564 = vmatprep.subr.bf16.mxu0 0
    %1565 = vmatpush1.bf16.msra.mxu0 0
    %1566 = vmatprep.subr.bf16.mxu0 0
    %1567 = vmatpush1.bf16.msra.mxu0 0
    %1568 = vmatprep.subr.bf16.mxu0 0
    %1569 = vmatpush1.bf16.msra.mxu0 0
    %1570 = vmatprep.subr.bf16.mxu0 0
    %1571 = vmatpush1.bf16.msra.mxu0 0
    %1572 = vmatprep.subr.bf16.mxu0 0
    %1573 = vmatpush1.bf16.msra.mxu0 0
    %1574 = vmatprep.subr.bf16.mxu0 0
    %1575 = vmatpush1.bf16.msra.mxu0 0
    %1576 = vmatprep.subr.bf16.mxu0 0
    %1577 = vmatpush1.bf16.msra.mxu0 0
    %1578 = vmatprep.subr.bf16.mxu0 0
    %1579 = vmatpush1.bf16.msra.mxu0 0
    %1580 = vmatprep.subr.bf16.mxu0 0
    %1581 = vmatpush1.bf16.msra.mxu0 0
    %1582 = vmatprep.subr.bf16.mxu0 0
    %1583 = vmatpush1.bf16.msra.mxu0 0
    %1584 = vmatprep.subr.bf16.mxu0 0
    %1585 = vmatpush1.bf16.msra.mxu0 0
    %1586 = vmatprep.subr.bf16.mxu0 0
    %1587 = vmatpush1.bf16.msra.mxu0 0
    %1588 = vmatprep.subr.bf16.mxu0 0
    %1589 = vmatpush1.bf16.msra.mxu0 0
    %1590 = vmatprep.mubr.bf16.mxu0 0
    %1591 = vmatmul.mubr.bf16.gmra.mrb[0].mxu0 %v1269
    %v1592 = vpop.f32.mrb[0].mxu0
    %v1593 = vadd.f32 %v1552, %v1592
    %v1594 = vpop.f32.mrb[0].mxu0
    %v1595 = vadd.f32 %v1554, %v1594
    %v1596 = vpop.f32.mrb[0].mxu0
    %v1597 = vpop.f32.mrb[0].mxu0
    %1598 = vdwg.mxu0
    %v1599 = vmax.f32 %v1429, 0.0
    %v1600 = vmax.f32 %v1431, 0.0
    %v1601 = vmax.f32 %v1593, 0.0
    %v1602 = vmax.f32 %v1595, 0.0
    %v1603 = vpack.c.bf16 %v1599, %v1599
    %v1604 = vpack.c.bf16 %v1600, %v1600
    %v1605 = vpack.c.bf16 %v1601, %v1601
    %v1606 = vpack.c.bf16 %v1602, %v1602
    %v1607 = vld [vmem:[%s4] sm:$0xff]
    %v1608 = vld [vmem:[%s4 + $0x8] sm:$0xff]
    %v1609 = vld [vmem:[%s4 + $0x10] sm:$0xff]
    %v1610 = vld [vmem:[%s4 + $0x18] sm:$0xff]
    %v1611 = vld [vmem:[%s4 + $0x20] sm:$0xff]
    %v1612 = vld [vmem:[%s4 + $0x28] sm:$0xff]
    %v1613 = vld [vmem:[%s4 + $0x30] sm:$0xff]
    %v1614 = vld [vmem:[%s4 + $0x38] sm:$0xff]
    %v1615 = vld [vmem:[%s4 + $0x40] sm:$0xff]
    %v1616 = vld [vmem:[%s4 + $0x48] sm:$0xff]
    %v1617 = vld [vmem:[%s4 + $0x50] sm:$0xff]
    %v1618 = vld [vmem:[%s4 + $0x58] sm:$0xff]
    %v1619 = vld [vmem:[%s4 + $0x60] sm:$0xff]
    %v1620 = vld [vmem:[%s4 + $0x68] sm:$0xff]
    %v1621 = vld [vmem:[%s4 + $0x70] sm:$0xff]
    %v1622 = vld [vmem:[%s4 + $0x78] sm:$0xff]
    %v1623 = vld [vmem:[%s4 + $0x80] sm:$0xff]
    %v1624 = vld [vmem:[%s4 + $0x88] sm:$0xff]
    %v1625 = vld [vmem:[%s4 + $0x90] sm:$0xff]
    %v1626 = vld [vmem:[%s4 + $0x98] sm:$0xff]
    %v1627 = vld [vmem:[%s4 + $0xa0] sm:$0xff]
    %v1628 = vld [vmem:[%s4 + $0xa8] sm:$0xff]
    %v1629 = vld [vmem:[%s4 + $0xb0] sm:$0xff]
    %v1630 = vld [vmem:[%s4 + $0xb8] sm:$0xff]
    %v1631 = vld [vmem:[%s4 + $0xc0] sm:$0xff]
    %v1632 = vld [vmem:[%s4 + $0xc8] sm:$0xff]
    %v1633 = vld [vmem:[%s4 + $0xd0] sm:$0xff]
    %v1634 = vld [vmem:[%s4 + $0xd8] sm:$0xff]
    %v1635 = vld [vmem:[%s4 + $0xe0] sm:$0xff]
    %v1636 = vld [vmem:[%s4 + $0xe8] sm:$0xff]
    %v1637 = vld [vmem:[%s4 + $0xf0] sm:$0xff]
    %v1638 = vld [vmem:[%s4 + $0xf8] sm:$0xff]
    %v1639 = vld [vmem:[%s4 + $0x100] sm:$0xff]
    %v1640 = vld [vmem:[%s4 + $0x108] sm:$0xff]
    %v1641 = vld [vmem:[%s4 + $0x110] sm:$0xff]
    %v1642 = vld [vmem:[%s4 + $0x118] sm:$0xff]
    %v1643 = vld [vmem:[%s4 + $0x120] sm:$0xff]
    %v1644 = vld [vmem:[%s4 + $0x128] sm:$0xff]
    %v1645 = vld [vmem:[%s4 + $0x130] sm:$0xff]
    %v1646 = vld [vmem:[%s4 + $0x138] sm:$0xff]
    %v1647 = vld [vmem:[%s4 + $0x140] sm:$0xff]
    %v1648 = vld [vmem:[%s4 + $0x148] sm:$0xff]
    %v1649 = vld [vmem:[%s4 + $0x150] sm:$0xff]
    %v1650 = vld [vmem:[%s4 + $0x158] sm:$0xff]
    %v1651 = vld [vmem:[%s4 + $0x160] sm:$0xff]
    %v1652 = vld [vmem:[%s4 + $0x168] sm:$0xff]
    %v1653 = vld [vmem:[%s4 + $0x170] sm:$0xff]
    %v1654 = vld [vmem:[%s4 + $0x178] sm:$0xff]
    %v1655 = vld [vmem:[%s4 + $0x180] sm:$0xff]
    %v1656 = vld [vmem:[%s4 + $0x188] sm:$0xff]
    %v1657 = vld [vmem:[%s5] sm:$0x3]
    %v1659 = vlaneseq
    %v1660 = vshrl.u32 %v1659, 7
    %v1661 = vsub.s32 0, %v1660
    %v1662 = vrot.slane %v1657, %v1661
    %v1663 = vlaneseq
    %v1664 = vshrl.u32 %v1663, 7
    %v1665 = vsub.s32 1, %v1664
    %v1666 = vrot.slane %v1657, %v1665
    %v1719 = vunpack.c.l.b16 %v1607
    %v1720 = vunpack.c.h.b16 %v1607
    %v1721 = vunpack.c.l.b16 %v1608
    %v1722 = vunpack.c.h.b16 %v1608
    %v1723 = vunpack.c.l.b16 %v1609
    %v1724 = vunpack.c.h.b16 %v1609
    %v1725 = vunpack.c.l.b16 %v1610
    %v1726 = vunpack.c.h.b16 %v1610
    %v1727 = vunpack.c.l.b16 %v1611
    %v1728 = vunpack.c.h.b16 %v1611
    %v1729 = vunpack.c.l.b16 %v1612
    %v1730 = vunpack.c.h.b16 %v1612
    %v1731 = vunpack.c.l.b16 %v1613
    %v1732 = vunpack.c.h.b16 %v1613
    %v1733 = vunpack.c.l.b16 %v1614
    %v1734 = vunpack.c.h.b16 %v1614
    %v1735 = vunpack.c.l.b16 %v1615
    %v1736 = vunpack.c.h.b16 %v1615
    %v1737 = vunpack.c.l.b16 %v1616
    %v1738 = vunpack.c.h.b16 %v1616
    %v1739 = vunpack.c.l.b16 %v1617
    %v1740 = vunpack.c.h.b16 %v1617
    %v1741 = vunpack.c.l.b16 %v1618
    %v1742 = vunpack.c.h.b16 %v1618
    %v1743 = vunpack.c.l.b16 %v1619
    %v1744 = vunpack.c.h.b16 %v1619
    %v1745 = vunpack.c.l.b16 %v1620
    %v1746 = vunpack.c.h.b16 %v1620
    %v1747 = vunpack.c.l.b16 %v1621
    %v1748 = vunpack.c.h.b16 %v1621
    %v1749 = vunpack.c.l.b16 %v1622
    %v1750 = vunpack.c.h.b16 %v1622
    %v1751 = vunpack.c.l.b16 %v1623
    %v1752 = vunpack.c.h.b16 %v1623
    %v1753 = vunpack.c.l.b16 %v1624
    %v1754 = vunpack.c.h.b16 %v1624
    %v1755 = vunpack.c.l.b16 %v1625
    %v1756 = vunpack.c.h.b16 %v1625
    %v1757 = vunpack.c.l.b16 %v1626
    %v1758 = vunpack.c.h.b16 %v1626
    %v1759 = vunpack.c.l.b16 %v1627
    %v1760 = vunpack.c.h.b16 %v1627
    %v1761 = vunpack.c.l.b16 %v1628
    %v1762 = vunpack.c.h.b16 %v1628
    %v1763 = vunpack.c.l.b16 %v1629
    %v1764 = vunpack.c.h.b16 %v1629
    %v1765 = vunpack.c.l.b16 %v1630
    %v1766 = vunpack.c.h.b16 %v1630
    %v1767 = vunpack.c.l.b16 %v1631
    %v1768 = vunpack.c.h.b16 %v1631
    %v1769 = vunpack.c.l.b16 %v1632
    %v1770 = vunpack.c.h.b16 %v1632
    %v1771 = vunpack.c.l.b16 %v1633
    %v1772 = vunpack.c.h.b16 %v1633
    %v1773 = vunpack.c.l.b16 %v1634
    %v1774 = vunpack.c.h.b16 %v1634
    %v1775 = vunpack.c.l.b16 %v1635
    %v1776 = vunpack.c.h.b16 %v1635
    %v1777 = vunpack.c.l.b16 %v1636
    %v1778 = vunpack.c.h.b16 %v1636
    %v1779 = vunpack.c.l.b16 %v1637
    %v1780 = vunpack.c.h.b16 %v1637
    %v1781 = vunpack.c.l.b16 %v1638
    %v1782 = vunpack.c.h.b16 %v1638
    %v1783 = vunpack.c.l.b16 %v1639
    %v1784 = vunpack.c.h.b16 %v1639
    %v1785 = vunpack.c.l.b16 %v1640
    %v1786 = vunpack.c.h.b16 %v1640
    %v1787 = vunpack.c.l.b16 %v1641
    %v1788 = vunpack.c.h.b16 %v1641
    %v1789 = vunpack.c.l.b16 %v1642
    %v1790 = vunpack.c.h.b16 %v1642
    %v1791 = vunpack.c.l.b16 %v1643
    %v1792 = vunpack.c.h.b16 %v1643
    %v1793 = vunpack.c.l.b16 %v1644
    %v1794 = vunpack.c.h.b16 %v1644
    %v1795 = vunpack.c.l.b16 %v1645
    %v1796 = vunpack.c.h.b16 %v1645
    %v1797 = vunpack.c.l.b16 %v1646
    %v1798 = vunpack.c.h.b16 %v1646
    %v1799 = vunpack.c.l.b16 %v1647
    %v1800 = vunpack.c.h.b16 %v1647
    %v1801 = vunpack.c.l.b16 %v1648
    %v1802 = vunpack.c.h.b16 %v1648
    %v1803 = vunpack.c.l.b16 %v1649
    %v1804 = vunpack.c.h.b16 %v1649
    %v1805 = vunpack.c.l.b16 %v1650
    %v1806 = vunpack.c.h.b16 %v1650
    %v1807 = vunpack.c.l.b16 %v1651
    %v1808 = vunpack.c.h.b16 %v1651
    %v1809 = vunpack.c.l.b16 %v1652
    %v1810 = vunpack.c.h.b16 %v1652
    %v1811 = vunpack.c.l.b16 %v1653
    %v1812 = vunpack.c.h.b16 %v1653
    %v1813 = vunpack.c.l.b16 %v1654
    %v1814 = vunpack.c.h.b16 %v1654
    %v1815 = vunpack.c.l.b16 %v1655
    %v1816 = vunpack.c.h.b16 %v1655
    %v1817 = vunpack.c.l.b16 %v1656
    %v1818 = vunpack.c.h.b16 %v1656
    %v1819 = vpack.c.b16 %v1721, %v1719
    %v1820 = vpack.c.b16 %v1722, %v1720
    %v1821 = vpack.c.b16 %v1725, %v1723
    %v1822 = vpack.c.b16 %v1726, %v1724
    %v1823 = vpack.c.b16 %v1729, %v1727
    %v1824 = vpack.c.b16 %v1730, %v1728
    %v1825 = vpack.c.b16 %v1733, %v1731
    %v1826 = vpack.c.b16 %v1734, %v1732
    %v1827 = vpack.c.b16 %v1737, %v1735
    %v1828 = vpack.c.b16 %v1738, %v1736
    %v1829 = vpack.c.b16 %v1741, %v1739
    %v1830 = vpack.c.b16 %v1742, %v1740
    %v1831 = vpack.c.b16 %v1745, %v1743
    %v1832 = vpack.c.b16 %v1746, %v1744
    %v1833 = vpack.c.b16 %v1749, %v1747
    %v1834 = vpack.c.b16 %v1750, %v1748
    %v1835 = vpack.c.b16 %v1753, %v1751
    %v1836 = vpack.c.b16 %v1754, %v1752
    %v1837 = vpack.c.b16 %v1757, %v1755
    %v1838 = vpack.c.b16 %v1758, %v1756
    %v1839 = vpack.c.b16 %v1761, %v1759
    %v1840 = vpack.c.b16 %v1762, %v1760
    %v1841 = vpack.c.b16 %v1765, %v1763
    %v1842 = vpack.c.b16 %v1766, %v1764
    %v1843 = vpack.c.b16 %v1769, %v1767
    %v1844 = vpack.c.b16 %v1770, %v1768
    %v1845 = vpack.c.b16 %v1773, %v1771
    %v1846 = vpack.c.b16 %v1774, %v1772
    %v1847 = vpack.c.b16 %v1777, %v1775
    %v1848 = vpack.c.b16 %v1778, %v1776
    %v1849 = vpack.c.b16 %v1781, %v1779
    %v1850 = vpack.c.b16 %v1782, %v1780
    %v1851 = vpack.c.b16 %v1785, %v1783
    %v1852 = vpack.c.b16 %v1786, %v1784
    %v1853 = vpack.c.b16 %v1789, %v1787
    %v1854 = vpack.c.b16 %v1790, %v1788
    %v1855 = vpack.c.b16 %v1793, %v1791
    %v1856 = vpack.c.b16 %v1794, %v1792
    %v1857 = vpack.c.b16 %v1797, %v1795
    %v1858 = vpack.c.b16 %v1798, %v1796
    %v1859 = vpack.c.b16 %v1801, %v1799
    %v1860 = vpack.c.b16 %v1802, %v1800
    %v1861 = vpack.c.b16 %v1805, %v1803
    %v1862 = vpack.c.b16 %v1806, %v1804
    %v1863 = vpack.c.b16 %v1809, %v1807
    %v1864 = vpack.c.b16 %v1810, %v1808
    %v1865 = vpack.c.b16 %v1813, %v1811
    %v1866 = vpack.c.b16 %v1814, %v1812
    %v1867 = vpack.c.b16 %v1817, %v1815
    %v1868 = vpack.c.b16 %v1818, %v1816
    %v1920 = vsel %vm1267, %v1606, 0
    %1922 = vmatprep.subr.bf16.mxu0 %v1820
    %1923 = vmatpush1.bf16.msra.mxu0 %v1819
    %1924 = vmatprep.subr.bf16.mxu0 %v1822
    %1925 = vmatpush1.bf16.msra.mxu0 %v1821
    %1926 = vmatprep.subr.bf16.mxu0 %v1824
    %1927 = vmatpush1.bf16.msra.mxu0 %v1823
    %1928 = vmatprep.subr.bf16.mxu0 %v1826
    %1929 = vmatpush1.bf16.msra.mxu0 %v1825
    %1930 = vmatprep.subr.bf16.mxu0 %v1828
    %1931 = vmatpush1.bf16.msra.mxu0 %v1827
    %1932 = vmatprep.subr.bf16.mxu0 %v1830
    %1933 = vmatpush1.bf16.msra.mxu0 %v1829
    %1934 = vmatprep.subr.bf16.mxu0 %v1832
    %1935 = vmatpush1.bf16.msra.mxu0 %v1831
    %1936 = vmatprep.subr.bf16.mxu0 %v1834
    %1937 = vmatpush1.bf16.msra.mxu0 %v1833
    %1938 = vmatprep.subr.bf16.mxu0 %v1836
    %1939 = vmatpush1.bf16.msra.mxu0 %v1835
    %1940 = vmatprep.subr.bf16.mxu0 %v1838
    %1941 = vmatpush1.bf16.msra.mxu0 %v1837
    %1942 = vmatprep.subr.bf16.mxu0 %v1840
    %1943 = vmatpush1.bf16.msra.mxu0 %v1839
    %1944 = vmatprep.subr.bf16.mxu0 %v1842
    %1945 = vmatpush1.bf16.msra.mxu0 %v1841
    %1946 = vmatprep.subr.bf16.mxu0 %v1844
    %1947 = vmatpush1.bf16.msra.mxu0 %v1843
    %1948 = vmatprep.subr.bf16.mxu0 %v1846
    %1949 = vmatpush1.bf16.msra.mxu0 %v1845
    %1950 = vmatprep.subr.bf16.mxu0 %v1848
    %1951 = vmatpush1.bf16.msra.mxu0 %v1847
    %1952 = vmatprep.subr.bf16.mxu0 %v1850
    %1953 = vmatpush1.bf16.msra.mxu0 %v1849
    %1954 = vmatprep.mubr.bf16.mxu0 %v1604
    %1955 = vmatmul.mubr.bf16.gmra.mrb[0].mxu0 %v1603
    %v1956 = vpop.f32.mrb[0].mxu0
    %v1957 = vadd.f32 %v1662, %v1956
    %v1958 = vpop.f32.mrb[0].mxu0
    %v1959 = vadd.f32 %v1666, %v1958
    %v1960 = vpop.f32.mrb[0].mxu0
    %v1961 = vpop.f32.mrb[0].mxu0
    %1962 = vdwg.mxu0
    %1963 = vmatprep.subr.bf16.mxu0 %v1852
    %1964 = vmatpush1.bf16.msra.mxu0 %v1851
    %1965 = vmatprep.subr.bf16.mxu0 %v1854
    %1966 = vmatpush1.bf16.msra.mxu0 %v1853
    %1967 = vmatprep.subr.bf16.mxu0 %v1856
    %1968 = vmatpush1.bf16.msra.mxu0 %v1855
    %1969 = vmatprep.subr.bf16.mxu0 %v1858
    %1970 = vmatpush1.bf16.msra.mxu0 %v1857
    %1971 = vmatprep.subr.bf16.mxu0 %v1860
    %1972 = vmatpush1.bf16.msra.mxu0 %v1859
    %1973 = vmatprep.subr.bf16.mxu0 %v1862
    %1974 = vmatpush1.bf16.msra.mxu0 %v1861
    %1975 = vmatprep.subr.bf16.mxu0 %v1864
    %1976 = vmatpush1.bf16.msra.mxu0 %v1863
    %1977 = vmatprep.subr.bf16.mxu0 %v1866
    %1978 = vmatpush1.bf16.msra.mxu0 %v1865
    %1979 = vmatprep.subr.bf16.mxu0 %v1868
    %1980 = vmatpush1.bf16.msra.mxu0 %v1867
    %1981 = vmatprep.subr.bf16.mxu0 0
    %1982 = vmatpush1.bf16.msra.mxu0 0
    %1983 = vmatprep.subr.bf16.mxu0 0
    %1984 = vmatpush1.bf16.msra.mxu0 0
    %1985 = vmatprep.subr.bf16.mxu0 0
    %1986 = vmatpush1.bf16.msra.mxu0 0
    %1987 = vmatprep.subr.bf16.mxu0 0
    %1988 = vmatpush1.bf16.msra.mxu0 0
    %1989 = vmatprep.subr.bf16.mxu0 0
    %1990 = vmatpush1.bf16.msra.mxu0 0
    %1991 = vmatprep.subr.bf16.mxu0 0
    %1992 = vmatpush1.bf16.msra.mxu0 0
    %1993 = vmatprep.subr.bf16.mxu0 0
    %1994 = vmatpush1.bf16.msra.mxu0 0
    %1995 = vmatprep.mubr.bf16.mxu0 %v1920
    %1996 = vmatmul.mubr.bf16.gmra.mrb[0].mxu0 %v1605
    %v1997 = vpop.f32.mrb[0].mxu0
    %v1998 = vadd.f32 %v1957, %v1997
    %v1999 = vpop.f32.mrb[0].mxu0
    %v2000 = vadd.f32 %v1959, %v1999
    %v2001 = vpop.f32.mrb[0].mxu0
    %v2002 = vpop.f32.mrb[0].mxu0
    %2003 = vdwg.mxu0
    %v2004 = vld [vmem:[%s1] sm:$0xff]
    %v2005 = vmul.f32 %v2000, 0.5
    %v2006 = vmul.f32 %v2005, 1.442695
    %v2007 = vpow.pop %v2006
    %v2008 = vmul.f32 %v2004, %v2007
    %v2009 = vadd.f32 %v1998, %v2008
    %v2010 = vpack.c.bf16 %v2009, %v2009
    %v2011 = vld [vmem:[%s6] sm:$0xff]
    %v2012 = vld [vmem:[%s6 + $0x8] sm:$0xff]
    %v2013 = vld [vmem:[%s6 + $0x10] sm:$0xff]
    %v2014 = vld [vmem:[%s6 + $0x18] sm:$0xff]
    %v2015 = vld [vmem:[%s6 + $0x20] sm:$0x33]
    %v2016 = vld [vmem:[%s6 + $0x28] sm:$0x33]
    %v2017 = vld [vmem:[%s7] sm:$0xf]
    %v2019 = vlaneseq
    %v2020 = vshrl.u32 %v2019, 7
    %v2021 = vsub.s32 0, %v2020
    %v2022 = vrot.slane %v2017, %v2021
    %v2023 = vlaneseq
    %v2024 = vshrl.u32 %v2023, 7
    %v2025 = vsub.s32 1, %v2024
    %v2026 = vrot.slane %v2017, %v2025
    %v2027 = vlaneseq
    %v2028 = vshrl.u32 %v2027, 7
    %v2029 = vsub.s32 2, %v2028
    %v2030 = vrot.slane %v2017, %v2029
    %v2031 = vlaneseq
    %v2032 = vshrl.u32 %v2031, 7
    %v2033 = vsub.s32 3, %v2032
    %v2034 = vrot.slane %v2017, %v2033
    %v2045 = vunpack.c.l.b16 %v2011
    %v2046 = vunpack.c.h.b16 %v2011
    %v2047 = vunpack.c.l.b16 %v2012
    %v2048 = vunpack.c.h.b16 %v2012
    %v2049 = vunpack.c.l.b16 %v2013
    %v2050 = vunpack.c.h.b16 %v2013
    %v2051 = vunpack.c.l.b16 %v2014
    %v2052 = vunpack.c.h.b16 %v2014
    %v2053 = vunpack.c.l.b16 %v2015
    %v2054 = vunpack.c.h.b16 %v2015
    %v2055 = vunpack.c.l.b16 %v2016
    %v2056 = vunpack.c.h.b16 %v2016
    %v2057 = vpack.c.b16 %v2049, %v2045
    %v2058 = vpack.c.b16 %v2050, %v2046
    %v2059 = vpack.c.b16 %v2051, %v2047
    %v2060 = vpack.c.b16 %v2052, %v2048
    %v2061 = vpack.c.b16 %v2053, %v2053
    %v2062 = vpack.c.b16 %v2054, %v2054
    %v2063 = vpack.c.b16 %v2055, %v2055
    %v2064 = vpack.c.b16 %v2056, %v2056
    %vm2069 = vcmask 162816
    %v2071 = vsel %vm2069, %v2010, 0
    %vm2073 = vcmask 1041408
    %v2075 = vsel %vm2073, %v2061, 0
    %v2078 = vsel %vm2073, %v2062, 0
    %v2081 = vsel %vm2073, %v2063, 0
    %v2084 = vsel %vm2073, %v2064, 0
    %2086 = vmatprep.subr.bf16.mxu0 %v2058
    %2087 = vmatpush1.bf16.msra.mxu0 %v2057
    %2088 = vmatprep.subr.bf16.mxu0 %v2078
    %2089 = vmatpush1.bf16.msra.mxu0 %v2075
    %2090 = vmatprep.subr.bf16.mxu0 0
    %2091 = vmatpush1.bf16.msra.mxu0 0
    %2092 = vmatprep.subr.bf16.mxu0 0
    %2093 = vmatpush1.bf16.msra.mxu0 0
    %2094 = vmatprep.subr.bf16.mxu0 0
    %2095 = vmatpush1.bf16.msra.mxu0 0
    %2096 = vmatprep.subr.bf16.mxu0 0
    %2097 = vmatpush1.bf16.msra.mxu0 0
    %2098 = vmatprep.subr.bf16.mxu0 0
    %2099 = vmatpush1.bf16.msra.mxu0 0
    %2100 = vmatprep.subr.bf16.mxu0 0
    %2101 = vmatpush1.bf16.msra.mxu0 0
    %2102 = vmatprep.subr.bf16.mxu0 0
    %2103 = vmatpush1.bf16.msra.mxu0 0
    %2104 = vmatprep.subr.bf16.mxu0 0
    %2105 = vmatpush1.bf16.msra.mxu0 0
    %2106 = vmatprep.subr.bf16.mxu0 0
    %2107 = vmatpush1.bf16.msra.mxu0 0
    %2108 = vmatprep.subr.bf16.mxu0 0
    %2109 = vmatpush1.bf16.msra.mxu0 0
    %2110 = vmatprep.subr.bf16.mxu0 0
    %2111 = vmatpush1.bf16.msra.mxu0 0
    %2112 = vmatprep.subr.bf16.mxu0 0
    %2113 = vmatpush1.bf16.msra.mxu0 0
    %2114 = vmatprep.subr.bf16.mxu0 0
    %2115 = vmatpush1.bf16.msra.mxu0 0
    %2116 = vmatprep.subr.bf16.mxu0 0
    %2117 = vmatpush1.bf16.msra.mxu0 0
    %2118 = vmatprep.mubr.bf16.mxu0 0
    %2119 = vmatmul.mubr.bf16.gmra.mrb[0].mxu0 %v2071
    %v2120 = vpop.f32.mrb[0].mxu0
    %v2121 = vadd.f32 %v2022, %v2120
    %v2122 = vpop.f32.mrb[0].mxu0
    %v2123 = vadd.f32 %v2026, %v2122
    %v2124 = vpop.f32.mrb[0].mxu0
    %v2125 = vpop.f32.mrb[0].mxu0
    %2126 = vdwg.mxu0
    %2127 = vmatprep.subr.bf16.mxu0 %v2060
    %2128 = vmatpush1.bf16.msra.mxu0 %v2059
    %2129 = vmatprep.subr.bf16.mxu0 %v2084
    %2130 = vmatpush1.bf16.msra.mxu0 %v2081
    %2131 = vmatprep.subr.bf16.mxu0 0
    %2132 = vmatpush1.bf16.msra.mxu0 0
    %2133 = vmatprep.subr.bf16.mxu0 0
    %2134 = vmatpush1.bf16.msra.mxu0 0
    %2135 = vmatprep.subr.bf16.mxu0 0
    %2136 = vmatpush1.bf16.msra.mxu0 0
    %2137 = vmatprep.subr.bf16.mxu0 0
    %2138 = vmatpush1.bf16.msra.mxu0 0
    %2139 = vmatprep.subr.bf16.mxu0 0
    %2140 = vmatpush1.bf16.msra.mxu0 0
    %2141 = vmatprep.subr.bf16.mxu0 0
    %2142 = vmatpush1.bf16.msra.mxu0 0
    %2143 = vmatprep.subr.bf16.mxu0 0
    %2144 = vmatpush1.bf16.msra.mxu0 0
    %2145 = vmatprep.subr.bf16.mxu0 0
    %2146 = vmatpush1.bf16.msra.mxu0 0
    %2147 = vmatprep.subr.bf16.mxu0 0
    %2148 = vmatpush1.bf16.msra.mxu0 0
    %2149 = vmatprep.subr.bf16.mxu0 0
    %2150 = vmatpush1.bf16.msra.mxu0 0
    %2151 = vmatprep.subr.bf16.mxu0 0
    %2152 = vmatpush1.bf16.msra.mxu0 0
    %2153 = vmatprep.subr.bf16.mxu0 0
    %2154 = vmatpush1.bf16.msra.mxu0 0
    %2155 = vmatprep.subr.bf16.mxu0 0
    %2156 = vmatpush1.bf16.msra.mxu0 0
    %2157 = vmatprep.subr.bf16.mxu0 0
    %2158 = vmatpush1.bf16.msra.mxu0 0
    %2159 = vmatprep.mubr.bf16.mxu0 0
    %2160 = vmatmul.mubr.bf16.gmra.mrb[0].mxu0 %v2071
    %v2161 = vpop.f32.mrb[0].mxu0
    %v2162 = vadd.f32 %v2030, %v2161
    %v2163 = vpop.f32.mrb[0].mxu0
    %v2164 = vadd.f32 %v2034, %v2163
    %v2165 = vpop.f32.mrb[0].mxu0
    %v2166 = vpop.f32.mrb[0].mxu0
    %2167 = vdwg.mxu0
    %v2168 = vmax.f32 %v2121, 0.0
    %v2169 = vmax.f32 %v2123, 0.0
    %v2170 = vmax.f32 %v2162, 0.0
    %v2171 = vmax.f32 %v2164, 0.0
    %v2172 = vpack.c.bf16 %v2168, %v2168
    %v2173 = vpack.c.bf16 %v2169, %v2169
    %v2174 = vpack.c.bf16 %v2170, %v2170
    %v2175 = vpack.c.bf16 %v2171, %v2171
    %v2176 = vld [vmem:[%s8] sm:$0xff]
    %v2177 = vld [vmem:[%s8 + $0x8] sm:$0xff]
    %v2178 = vld [vmem:[%s8 + $0x10] sm:$0xff]
    %v2179 = vld [vmem:[%s8 + $0x18] sm:$0xf]
    %v2180 = vld [vmem:[%s8 + $0x1c] sm:$0xff]
    %v2181 = vld [vmem:[%s8 + $0x24] sm:$0xff]
    %v2182 = vld [vmem:[%s8 + $0x2c] sm:$0xff]
    %v2183 = vld [vmem:[%s8 + $0x34] sm:$0xf]
    %v2184 = vld [vmem:[%s8 + $0x38] sm:$0xff]
    %v2185 = vld [vmem:[%s8 + $0x40] sm:$0xff]
    %v2186 = vld [vmem:[%s8 + $0x48] sm:$0xff]
    %v2187 = vld [vmem:[%s8 + $0x50] sm:$0xf]
    %v2188 = vld [vmem:[%s8 + $0x54] sm:$0xff]
    %v2189 = vld [vmem:[%s8 + $0x5c] sm:$0xff]
    %v2190 = vld [vmem:[%s8 + $0x64] sm:$0xff]
    %v2191 = vld [vmem:[%s8 + $0x6c] sm:$0xf]
    %v2192 = vld [vmem:[%s8 + $0x70] sm:$0xff]
    %v2193 = vld [vmem:[%s8 + $0x78] sm:$0xff]
    %v2194 = vld [vmem:[%s8 + $0x80] sm:$0xff]
    %v2195 = vld [vmem:[%s8 + $0x88] sm:$0xf]
    %v2196 = vld [vmem:[%s8 + $0x8c] sm:$0xff]
    %v2197 = vld [vmem:[%s8 + $0x94] sm:$0xff]
    %v2198 = vld [vmem:[%s8 + $0x9c] sm:$0xff]
    %v2199 = vld [vmem:[%s8 + $0xa4] sm:$0xf]
    %v2200 = vld [vmem:[%s8 + $0xa8] sm:$0xff]
    %v2201 = vld [vmem:[%s8 + $0xb0] sm:$0xff]
    %v2202 = vld [vmem:[%s8 + $0xb8] sm:$0xff]
    %v2203 = vld [vmem:[%s8 + $0xc0] sm:$0xf]
    %v2204 = vld [vmem:[%s8 + $0xc4] sm:$0xff]
    %v2205 = vld [vmem:[%s8 + $0xcc] sm:$0xff]
    %v2206 = vld [vmem:[%s8 + $0xd4] sm:$0xff]
    %v2207 = vld [vmem:[%s8 + $0xdc] sm:$0xf]
    %v2208 = vld [vmem:[%s8 + $0xe0] sm:$0xff]
    %v2209 = vld [vmem:[%s8 + $0xe8] sm:$0xff]
    %v2210 = vld [vmem:[%s8 + $0xf0] sm:$0xff]
    %v2211 = vld [vmem:[%s8 + $0xf8] sm:$0xf]
    %v2212 = vld [vmem:[%s8 + $0xfc] sm:$0xff]
    %v2213 = vld [vmem:[%s8 + $0x104] sm:$0xff]
    %v2214 = vld [vmem:[%s8 + $0x10c] sm:$0xff]
    %v2215 = vld [vmem:[%s8 + $0x114] sm:$0xf]
    %v2216 = vld [vmem:[%s8 + $0x118] sm:$0xff]
    %v2217 = vld [vmem:[%s8 + $0x120] sm:$0xff]
    %v2218 = vld [vmem:[%s8 + $0x128] sm:$0xff]
    %v2219 = vld [vmem:[%s8 + $0x130] sm:$0xf]
    %v2220 = vld [vmem:[%s8 + $0x134] sm:$0xff]
    %v2221 = vld [vmem:[%s8 + $0x13c] sm:$0xff]
    %v2222 = vld [vmem:[%s8 + $0x144] sm:$0xff]
    %v2223 = vld [vmem:[%s8 + $0x14c] sm:$0xf]
    %v2224 = vld [vmem:[%s8 + $0x150] sm:$0xff]
    %v2225 = vld [vmem:[%s8 + $0x158] sm:$0xff]
    %v2226 = vld [vmem:[%s8 + $0x160] sm:$0xff]
    %v2227 = vld [vmem:[%s8 + $0x168] sm:$0xf]
    %v2228 = vld [vmem:[%s8 + $0x16c] sm:$0xff]
    %v2229 = vld [vmem:[%s8 + $0x174] sm:$0xff]
    %v2230 = vld [vmem:[%s8 + $0x17c] sm:$0xff]
    %v2231 = vld [vmem:[%s8 + $0x184] sm:$0xf]
    %v2232 = vld [vmem:[%s8 + $0x188] sm:$0xff]
    %v2233 = vld [vmem:[%s8 + $0x190] sm:$0xff]
    %v2234 = vld [vmem:[%s8 + $0x198] sm:$0xff]
    %v2235 = vld [vmem:[%s8 + $0x1a0] sm:$0xf]
    %v2236 = vld [vmem:[%s8 + $0x1a4] sm:$0xff]
    %v2237 = vld [vmem:[%s8 + $0x1ac] sm:$0xff]
    %v2238 = vld [vmem:[%s8 + $0x1b4] sm:$0xff]
    %v2239 = vld [vmem:[%s8 + $0x1bc] sm:$0xf]
    %v2240 = vld [vmem:[%s8 + $0x1c0] sm:$0xff]
    %v2241 = vld [vmem:[%s8 + $0x1c8] sm:$0xff]
    %v2242 = vld [vmem:[%s8 + $0x1d0] sm:$0xff]
    %v2243 = vld [vmem:[%s8 + $0x1d8] sm:$0xf]
    %v2244 = vld [vmem:[%s8 + $0x1dc] sm:$0xff]
    %v2245 = vld [vmem:[%s8 + $0x1e4] sm:$0xff]
    %v2246 = vld [vmem:[%s8 + $0x1ec] sm:$0xff]
    %v2247 = vld [vmem:[%s8 + $0x1f4] sm:$0xf]
    %v2248 = vld [vmem:[%s8 + $0x1f8] sm:$0xff]
    %v2249 = vld [vmem:[%s8 + $0x200] sm:$0xff]
    %v2250 = vld [vmem:[%s8 + $0x208] sm:$0xff]
    %v2251 = vld [vmem:[%s8 + $0x210] sm:$0xf]
    %v2252 = vld [vmem:[%s8 + $0x214] sm:$0xff]
    %v2253 = vld [vmem:[%s8 + $0x21c] sm:$0xff]
    %v2254 = vld [vmem:[%s8 + $0x224] sm:$0xff]
    %v2255 = vld [vmem:[%s8 + $0x22c] sm:$0xf]
    %v2256 = vld [vmem:[%s8 + $0x230] sm:$0xff]
    %v2257 = vld [vmem:[%s8 + $0x238] sm:$0xff]
    %v2258 = vld [vmem:[%s8 + $0x240] sm:$0xff]
    %v2259 = vld [vmem:[%s8 + $0x248] sm:$0xf]
    %v2260 = vld [vmem:[%s8 + $0x24c] sm:$0xff]
    %v2261 = vld [vmem:[%s8 + $0x254] sm:$0xff]
    %v2262 = vld [vmem:[%s8 + $0x25c] sm:$0xff]
    %v2263 = vld [vmem:[%s8 + $0x264] sm:$0xf]
    %v2264 = vld [vmem:[%s8 + $0x268] sm:$0xff]
    %v2265 = vld [vmem:[%s8 + $0x270] sm:$0xff]
    %v2266 = vld [vmem:[%s8 + $0x278] sm:$0xff]
    %v2267 = vld [vmem:[%s8 + $0x280] sm:$0xf]
    %v2268 = vld [vmem:[%s8 + $0x284] sm:$0xff]
    %v2269 = vld [vmem:[%s8 + $0x28c] sm:$0xff]
    %v2270 = vld [vmem:[%s8 + $0x294] sm:$0xff]
    %v2271 = vld [vmem:[%s8 + $0x29c] sm:$0xf]
    %v2272 = vld [vmem:[%s8 + $0x2a0] sm:$0xff]
    %v2273 = vld [vmem:[%s8 + $0x2a8] sm:$0xff]
    %v2274 = vld [vmem:[%s8 + $0x2b0] sm:$0xff]
    %v2275 = vld [vmem:[%s8 + $0x2b8] sm:$0xf]
    %v2276 = vld [vmem:[%s8 + $0x2bc] sm:$0xff]
    %v2277 = vld [vmem:[%s8 + $0x2c4] sm:$0xff]
    %v2278 = vld [vmem:[%s8 + $0x2cc] sm:$0xff]
    %v2279 = vld [vmem:[%s8 + $0x2d4] sm:$0xf]
    %v2280 = vld [vmem:[%s8 + $0x2d8] sm:$0xff]
    %v2281 = vld [vmem:[%s8 + $0x2e0] sm:$0xff]
    %v2282 = vld [vmem:[%s8 + $0x2e8] sm:$0xff]
    %v2283 = vld [vmem:[%s8 + $0x2f0] sm:$0xf]
    %v2284 = vld [vmem:[%s8 + $0x2f4] sm:$0xff]
    %v2285 = vld [vmem:[%s8 + $0x2fc] sm:$0xff]
    %v2286 = vld [vmem:[%s8 + $0x304] sm:$0xff]
    %v2287 = vld [vmem:[%s8 + $0x30c] sm:$0xf]
    %v2288 = vld [vmem:[%s8 + $0x310] sm:$0xff]
    %v2289 = vld [vmem:[%s8 + $0x318] sm:$0xff]
    %v2290 = vld [vmem:[%s8 + $0x320] sm:$0xff]
    %v2291 = vld [vmem:[%s8 + $0x328] sm:$0xf]
    %v2292 = vld [vmem:[%s8 + $0x32c] sm:$0xff]
    %v2293 = vld [vmem:[%s8 + $0x334] sm:$0xff]
    %v2294 = vld [vmem:[%s8 + $0x33c] sm:$0xff]
    %v2295 = vld [vmem:[%s8 + $0x344] sm:$0xf]
    %v2296 = vld [vmem:[%s8 + $0x348] sm:$0xff]
    %v2297 = vld [vmem:[%s8 + $0x350] sm:$0xff]
    %v2298 = vld [vmem:[%s8 + $0x358] sm:$0xff]
    %v2299 = vld [vmem:[%s8 + $0x360] sm:$0xf]
    %v2300 = vld [vmem:[%s8 + $0x364] sm:$0xff]
    %v2301 = vld [vmem:[%s8 + $0x36c] sm:$0xff]
    %v2302 = vld [vmem:[%s8 + $0x374] sm:$0xff]
    %v2303 = vld [vmem:[%s8 + $0x37c] sm:$0xf]
    %v2304 = vld [vmem:[%s8 + $0x380] sm:$0xff]
    %v2305 = vld [vmem:[%s8 + $0x388] sm:$0xff]
    %v2306 = vld [vmem:[%s8 + $0x390] sm:$0xff]
    %v2307 = vld [vmem:[%s8 + $0x398] sm:$0xf]
    %v2308 = vld [vmem:[%s8 + $0x39c] sm:$0xff]
    %v2309 = vld [vmem:[%s8 + $0x3a4] sm:$0xff]
    %v2310 = vld [vmem:[%s8 + $0x3ac] sm:$0xff]
    %v2311 = vld [vmem:[%s8 + $0x3b4] sm:$0xf]
    %v2312 = vld [vmem:[%s8 + $0x3b8] sm:$0xff]
    %v2313 = vld [vmem:[%s8 + $0x3c0] sm:$0xff]
    %v2314 = vld [vmem:[%s8 + $0x3c8] sm:$0xff]
    %v2315 = vld [vmem:[%s8 + $0x3d0] sm:$0xf]
    %v2316 = vld [vmem:[%s8 + $0x3d4] sm:$0xff]
    %v2317 = vld [vmem:[%s8 + $0x3dc] sm:$0xff]
    %v2318 = vld [vmem:[%s8 + $0x3e4] sm:$0xff]
    %v2319 = vld [vmem:[%s8 + $0x3ec] sm:$0xf]
    %v2320 = vld [vmem:[%s8 + $0x3f0] sm:$0xff]
    %v2321 = vld [vmem:[%s8 + $0x3f8] sm:$0xff]
    %v2322 = vld [vmem:[%s8 + $0x400] sm:$0xff]
    %v2323 = vld [vmem:[%s8 + $0x408] sm:$0xf]
    %v2324 = vld [vmem:[%s8 + $0x40c] sm:$0xff]
    %v2325 = vld [vmem:[%s8 + $0x414] sm:$0xff]
    %v2326 = vld [vmem:[%s8 + $0x41c] sm:$0xff]
    %v2327 = vld [vmem:[%s8 + $0x424] sm:$0xf]
    %v2328 = vld [vmem:[%s8 + $0x428] sm:$0xff]
    %v2329 = vld [vmem:[%s8 + $0x430] sm:$0xff]
    %v2330 = vld [vmem:[%s8 + $0x438] sm:$0xff]
    %v2331 = vld [vmem:[%s8 + $0x440] sm:$0xf]
    %v2332 = vld [vmem:[%s8 + $0x444] sm:$0xff]
    %v2333 = vld [vmem:[%s8 + $0x44c] sm:$0xff]
    %v2334 = vld [vmem:[%s8 + $0x454] sm:$0xff]
    %v2335 = vld [vmem:[%s8 + $0x45c] sm:$0xf]
    %v2336 = vld [vmem:[%s8 + $0x460] sm:$0xff]
    %v2337 = vld [vmem:[%s8 + $0x468] sm:$0xff]
    %v2338 = vld [vmem:[%s8 + $0x470] sm:$0xff]
    %v2339 = vld [vmem:[%s8 + $0x478] sm:$0xf]
    %v2340 = vld [vmem:[%s8 + $0x47c] sm:$0xff]
    %v2341 = vld [vmem:[%s8 + $0x484] sm:$0xff]
    %v2342 = vld [vmem:[%s8 + $0x48c] sm:$0xff]
    %v2343 = vld [vmem:[%s8 + $0x494] sm:$0xf]
    %v2344 = vld [vmem:[%s8 + $0x498] sm:$0xff]
    %v2345 = vld [vmem:[%s8 + $0x4a0] sm:$0xff]
    %v2346 = vld [vmem:[%s8 + $0x4a8] sm:$0xff]
    %v2347 = vld [vmem:[%s8 + $0x4b0] sm:$0xf]
    %v2348 = vld [vmem:[%s8 + $0x4b4] sm:$0xff]
    %v2349 = vld [vmem:[%s8 + $0x4bc] sm:$0xff]
    %v2350 = vld [vmem:[%s8 + $0x4c4] sm:$0xff]
    %v2351 = vld [vmem:[%s8 + $0x4cc] sm:$0xf]
    %v2352 = vld [vmem:[%s8 + $0x4d0] sm:$0xff]
    %v2353 = vld [vmem:[%s8 + $0x4d8] sm:$0xff]
    %v2354 = vld [vmem:[%s8 + $0x4e0] sm:$0xff]
    %v2355 = vld [vmem:[%s8 + $0x4e8] sm:$0xf]
    %v2356 = vld [vmem:[%s8 + $0x4ec] sm:$0xff]
    %v2357 = vld [vmem:[%s8 + $0x4f4] sm:$0xff]
    %v2358 = vld [vmem:[%s8 + $0x4fc] sm:$0xff]
    %v2359 = vld [vmem:[%s8 + $0x504] sm:$0xf]
    %v2360 = vld [vmem:[%s8 + $0x508] sm:$0xff]
    %v2361 = vld [vmem:[%s8 + $0x510] sm:$0xff]
    %v2362 = vld [vmem:[%s8 + $0x518] sm:$0xff]
    %v2363 = vld [vmem:[%s8 + $0x520] sm:$0xf]
    %v2364 = vld [vmem:[%s8 + $0x524] sm:$0xff]
    %v2365 = vld [vmem:[%s8 + $0x52c] sm:$0xff]
    %v2366 = vld [vmem:[%s8 + $0x534] sm:$0xff]
    %v2367 = vld [vmem:[%s8 + $0x53c] sm:$0xf]
    %v2368 = vld [vmem:[%s8 + $0x540] sm:$0xff]
    %v2369 = vld [vmem:[%s8 + $0x548] sm:$0xff]
    %v2370 = vld [vmem:[%s8 + $0x550] sm:$0xff]
    %v2371 = vld [vmem:[%s8 + $0x558] sm:$0xf]
    %v2372 = vld [vmem:[%s8 + $0x55c] sm:$0xff]
    %v2373 = vld [vmem:[%s8 + $0x564] sm:$0xff]
    %v2374 = vld [vmem:[%s8 + $0x56c] sm:$0xff]
    %v2375 = vld [vmem:[%s8 + $0x574] sm:$0xf]
    %v2376 = vld [vmem:[%s9] sm:$0x7f]
    %v2378 = vlaneseq
    %v2379 = vshrl.u32 %v2378, 7
    %v2380 = vsub.s32 0, %v2379
    %v2381 = vrot.slane %v2376, %v2380
    %v2382 = vlaneseq
    %v2383 = vshrl.u32 %v2382, 7
    %v2384 = vsub.s32 1, %v2383
    %v2385 = vrot.slane %v2376, %v2384
    %v2386 = vlaneseq
    %v2387 = vshrl.u32 %v2386, 7
    %v2388 = vsub.s32 2, %v2387
    %v2389 = vrot.slane %v2376, %v2388
    %v2390 = vlaneseq
    %v2391 = vshrl.u32 %v2390, 7
    %v2392 = vsub.s32 3, %v2391
    %v2393 = vrot.slane %v2376, %v2392
    %v2394 = vlaneseq
    %v2395 = vshrl.u32 %v2394, 7
    %v2396 = vsub.s32 4, %v2395
    %v2397 = vrot.slane %v2376, %v2396
    %v2398 = vlaneseq
    %v2399 = vshrl.u32 %v2398, 7
    %v2400 = vsub.s32 5, %v2399
    %v2401 = vrot.slane %v2376, %v2400
    %v2402 = vlaneseq
    %v2403 = vshrl.u32 %v2402, 7
    %v2404 = vsub.s32 6, %v2403
    %v2405 = vrot.slane %v2376, %v2404
    %v2613 = vunpack.c.l.b16 %v2176
    %v2614 = vunpack.c.h.b16 %v2176
    %v2615 = vunpack.c.l.b16 %v2177
    %v2616 = vunpack.c.h.b16 %v2177
    %v2617 = vunpack.c.l.b16 %v2178
    %v2618 = vunpack.c.h.b16 %v2178
    %v2619 = vunpack.c.l.b16 %v2179
    %v2620 = vunpack.c.l.b16 %v2180
    %v2621 = vunpack.c.h.b16 %v2180
    %v2622 = vunpack.c.l.b16 %v2181
    %v2623 = vunpack.c.h.b16 %v2181
    %v2624 = vunpack.c.l.b16 %v2182
    %v2625 = vunpack.c.h.b16 %v2182
    %v2626 = vunpack.c.l.b16 %v2183
    %v2627 = vunpack.c.l.b16 %v2184
    %v2628 = vunpack.c.h.b16 %v2184
    %v2629 = vunpack.c.l.b16 %v2185
    %v2630 = vunpack.c.h.b16 %v2185
    %v2631 = vunpack.c.l.b16 %v2186
    %v2632 = vunpack.c.h.b16 %v2186
    %v2633 = vunpack.c.l.b16 %v2187
    %v2634 = vunpack.c.l.b16 %v2188
    %v2635 = vunpack.c.h.b16 %v2188
    %v2636 = vunpack.c.l.b16 %v2189
    %v2637 = vunpack.c.h.b16 %v2189
    %v2638 = vunpack.c.l.b16 %v2190
    %v2639 = vunpack.c.h.b16 %v2190
    %v2640 = vunpack.c.l.b16 %v2191
    %v2641 = vunpack.c.l.b16 %v2192
    %v2642 = vunpack.c.h.b16 %v2192
    %v2643 = vunpack.c.l.b16 %v2193
    %v2644 = vunpack.c.h.b16 %v2193
    %v2645 = vunpack.c.l.b16 %v2194
    %v2646 = vunpack.c.h.b16 %v2194
    %v2647 = vunpack.c.l.b16 %v2195
    %v2648 = vunpack.c.l.b16 %v2196
    %v2649 = vunpack.c.h.b16 %v2196
    %v2650 = vunpack.c.l.b16 %v2197
    %v2651 = vunpack.c.h.b16 %v2197
    %v2652 = vunpack.c.l.b16 %v2198
    %v2653 = vunpack.c.h.b16 %v2198
    %v2654 = vunpack.c.l.b16 %v2199
    %v2655 = vunpack.c.l.b16 %v2200
    %v2656 = vunpack.c.h.b16 %v2200
    %v2657 = vunpack.c.l.b16 %v2201
    %v2658 = vunpack.c.h.b16 %v2201
    %v2659 = vunpack.c.l.b16 %v2202
    %v2660 = vunpack.c.h.b16 %v2202
    %v2661 = vunpack.c.l.b16 %v2203
    %v2662 = vunpack.c.l.b16 %v2204
    %v2663 = vunpack.c.h.b16 %v2204
    %v2664 = vunpack.c.l.b16 %v2205
    %v2665 = vunpack.c.h.b16 %v2205
    %v2666 = vunpack.c.l.b16 %v2206
    %v2667 = vunpack.c.h.b16 %v2206
    %v2668 = vunpack.c.l.b16 %v2207
    %v2669 = vunpack.c.l.b16 %v2208
    %v2670 = vunpack.c.h.b16 %v2208
    %v2671 = vunpack.c.l.b16 %v2209
    %v2672 = vunpack.c.h.b16 %v2209
    %v2673 = vunpack.c.l.b16 %v2210
    %v2674 = vunpack.c.h.b16 %v2210
    %v2675 = vunpack.c.l.b16 %v2211
    %v2676 = vunpack.c.l.b16 %v2212
    %v2677 = vunpack.c.h.b16 %v2212
    %v2678 = vunpack.c.l.b16 %v2213
    %v2679 = vunpack.c.h.b16 %v2213
    %v2680 = vunpack.c.l.b16 %v2214
    %v2681 = vunpack.c.h.b16 %v2214
    %v2682 = vunpack.c.l.b16 %v2215
    %v2683 = vunpack.c.l.b16 %v2216
    %v2684 = vunpack.c.h.b16 %v2216
    %v2685 = vunpack.c.l.b16 %v2217
    %v2686 = vunpack.c.h.b16 %v2217
    %v2687 = vunpack.c.l.b16 %v2218
    %v2688 = vunpack.c.h.b16 %v2218
    %v2689 = vunpack.c.l.b16 %v2219
    %v2690 = vunpack.c.l.b16 %v2220
    %v2691 = vunpack.c.h.b16 %v2220
    %v2692 = vunpack.c.l.b16 %v2221
    %v2693 = vunpack.c.h.b16 %v2221
    %v2694 = vunpack.c.l.b16 %v2222
    %v2695 = vunpack.c.h.b16 %v2222
    %v2696 = vunpack.c.l.b16 %v2223
    %v2697 = vunpack.c.l.b16 %v2224
    %v2698 = vunpack.c.h.b16 %v2224
    %v2699 = vunpack.c.l.b16 %v2225
    %v2700 = vunpack.c.h.b16 %v2225
    %v2701 = vunpack.c.l.b16 %v2226
    %v2702 = vunpack.c.h.b16 %v2226
    %v2703 = vunpack.c.l.b16 %v2227
    %v2704 = vunpack.c.l.b16 %v2228
    %v2705 = vunpack.c.h.b16 %v2228
    %v2706 = vunpack.c.l.b16 %v2229
    %v2707 = vunpack.c.h.b16 %v2229
    %v2708 = vunpack.c.l.b16 %v2230
    %v2709 = vunpack.c.h.b16 %v2230
    %v2710 = vunpack.c.l.b16 %v2231
    %v2711 = vunpack.c.l.b16 %v2232
    %v2712 = vunpack.c.h.b16 %v2232
    %v2713 = vunpack.c.l.b16 %v2233
    %v2714 = vunpack.c.h.b16 %v2233
    %v2715 = vunpack.c.l.b16 %v2234
    %v2716 = vunpack.c.h.b16 %v2234
    %v2717 = vunpack.c.l.b16 %v2235
    %v2718 = vunpack.c.l.b16 %v2236
    %v2719 = vunpack.c.h.b16 %v2236
    %v2720 = vunpack.c.l.b16 %v2237
    %v2721 = vunpack.c.h.b16 %v2237
    %v2722 = vunpack.c.l.b16 %v2238
    %v2723 = vunpack.c.h.b16 %v2238
    %v2724 = vunpack.c.l.b16 %v2239
    %v2725 = vunpack.c.l.b16 %v2240
    %v2726 = vunpack.c.h.b16 %v2240
    %v2727 = vunpack.c.l.b16 %v2241
    %v2728 = vunpack.c.h.b16 %v2241
    %v2729 = vunpack.c.l.b16 %v2242
    %v2730 = vunpack.c.h.b16 %v2242
    %v2731 = vunpack.c.l.b16 %v2243
    %v2732 = vunpack.c.l.b16 %v2244
    %v2733 = vunpack.c.h.b16 %v2244
    %v2734 = vunpack.c.l.b16 %v2245
    %v2735 = vunpack.c.h.b16 %v2245
    %v2736 = vunpack.c.l.b16 %v2246
    %v2737 = vunpack.c.h.b16 %v2246
    %v2738 = vunpack.c.l.b16 %v2247
    %v2739 = vunpack.c.l.b16 %v2248
    %v2740 = vunpack.c.h.b16 %v2248
    %v2741 = vunpack.c.l.b16 %v2249
    %v2742 = vunpack.c.h.b16 %v2249
    %v2743 = vunpack.c.l.b16 %v2250
    %v2744 = vunpack.c.h.b16 %v2250
    %v2745 = vunpack.c.l.b16 %v2251
    %v2746 = vunpack.c.l.b16 %v2252
    %v2747 = vunpack.c.h.b16 %v2252
    %v2748 = vunpack.c.l.b16 %v2253
    %v2749 = vunpack.c.h.b16 %v2253
    %v2750 = vunpack.c.l.b16 %v2254
    %v2751 = vunpack.c.h.b16 %v2254
    %v2752 = vunpack.c.l.b16 %v2255
    %v2753 = vunpack.c.l.b16 %v2256
    %v2754 = vunpack.c.h.b16 %v2256
    %v2755 = vunpack.c.l.b16 %v2257
    %v2756 = vunpack.c.h.b16 %v2257
    %v2757 = vunpack.c.l.b16 %v2258
    %v2758 = vunpack.c.h.b16 %v2258
    %v2759 = vunpack.c.l.b16 %v2259
    %v2760 = vunpack.c.l.b16 %v2260
    %v2761 = vunpack.c.h.b16 %v2260
    %v2762 = vunpack.c.l.b16 %v2261
    %v2763 = vunpack.c.h.b16 %v2261
    %v2764 = vunpack.c.l.b16 %v2262
    %v2765 = vunpack.c.h.b16 %v2262
    %v2766 = vunpack.c.l.b16 %v2263
    %v2767 = vunpack.c.l.b16 %v2264
    %v2768 = vunpack.c.h.b16 %v2264
    %v2769 = vunpack.c.l.b16 %v2265
    %v2770 = vunpack.c.h.b16 %v2265
    %v2771 = vunpack.c.l.b16 %v2266
    %v2772 = vunpack.c.h.b16 %v2266
    %v2773 = vunpack.c.l.b16 %v2267
    %v2774 = vunpack.c.l.b16 %v2268
    %v2775 = vunpack.c.h.b16 %v2268
    %v2776 = vunpack.c.l.b16 %v2269
    %v2777 = vunpack.c.h.b16 %v2269
    %v2778 = vunpack.c.l.b16 %v2270
    %v2779 = vunpack.c.h.b16 %v2270
    %v2780 = vunpack.c.l.b16 %v2271
    %v2781 = vunpack.c.l.b16 %v2272
    %v2782 = vunpack.c.h.b16 %v2272
    %v2783 = vunpack.c.l.b16 %v2273
    %v2784 = vunpack.c.h.b16 %v2273
    %v2785 = vunpack.c.l.b16 %v2274
    %v2786 = vunpack.c.h.b16 %v2274
    %v2787 = vunpack.c.l.b16 %v2275
    %v2788 = vunpack.c.l.b16 %v2276
    %v2789 = vunpack.c.h.b16 %v2276
    %v2790 = vunpack.c.l.b16 %v2277
    %v2791 = vunpack.c.h.b16 %v2277
    %v2792 = vunpack.c.l.b16 %v2278
    %v2793 = vunpack.c.h.b16 %v2278
    %v2794 = vunpack.c.l.b16 %v2279
    %v2795 = vunpack.c.l.b16 %v2280
    %v2796 = vunpack.c.h.b16 %v2280
    %v2797 = vunpack.c.l.b16 %v2281
    %v2798 = vunpack.c.h.b16 %v2281
    %v2799 = vunpack.c.l.b16 %v2282
    %v2800 = vunpack.c.h.b16 %v2282
    %v2801 = vunpack.c.l.b16 %v2283
    %v2802 = vunpack.c.l.b16 %v2284
    %v2803 = vunpack.c.h.b16 %v2284
    %v2804 = vunpack.c.l.b16 %v2285
    %v2805 = vunpack.c.h.b16 %v2285
    %v2806 = vunpack.c.l.b16 %v2286
    %v2807 = vunpack.c.h.b16 %v2286
    %v2808 = vunpack.c.l.b16 %v2287
    %v2809 = vunpack.c.l.b16 %v2288
    %v2810 = vunpack.c.h.b16 %v2288
    %v2811 = vunpack.c.l.b16 %v2289
    %v2812 = vunpack.c.h.b16 %v2289
    %v2813 = vunpack.c.l.b16 %v2290
    %v2814 = vunpack.c.h.b16 %v2290
    %v2815 = vunpack.c.l.b16 %v2291
    %v2816 = vunpack.c.l.b16 %v2292
    %v2817 = vunpack.c.h.b16 %v2292
    %v2818 = vunpack.c.l.b16 %v2293
    %v2819 = vunpack.c.h.b16 %v2293
    %v2820 = vunpack.c.l.b16 %v2294
    %v2821 = vunpack.c.h.b16 %v2294
    %v2822 = vunpack.c.l.b16 %v2295
    %v2823 = vunpack.c.l.b16 %v2296
    %v2824 = vunpack.c.h.b16 %v2296
    %v2825 = vunpack.c.l.b16 %v2297
    %v2826 = vunpack.c.h.b16 %v2297
    %v2827 = vunpack.c.l.b16 %v2298
    %v2828 = vunpack.c.h.b16 %v2298
    %v2829 = vunpack.c.l.b16 %v2299
    %v2830 = vunpack.c.l.b16 %v2300
    %v2831 = vunpack.c.h.b16 %v2300
    %v2832 = vunpack.c.l.b16 %v2301
    %v2833 = vunpack.c.h.b16 %v2301
    %v2834 = vunpack.c.l.b16 %v2302
    %v2835 = vunpack.c.h.b16 %v2302
    %v2836 = vunpack.c.l.b16 %v2303
    %v2837 = vunpack.c.l.b16 %v2304
    %v2838 = vunpack.c.h.b16 %v2304
    %v2839 = vunpack.c.l.b16 %v2305
    %v2840 = vunpack.c.h.b16 %v2305
    %v2841 = vunpack.c.l.b16 %v2306
    %v2842 = vunpack.c.h.b16 %v2306
    %v2843 = vunpack.c.l.b16 %v2307
    %v2844 = vunpack.c.l.b16 %v2308
    %v2845 = vunpack.c.h.b16 %v2308
    %v2846 = vunpack.c.l.b16 %v2309
    %v2847 = vunpack.c.h.b16 %v2309
    %v2848 = vunpack.c.l.b16 %v2310
    %v2849 = vunpack.c.h.b16 %v2310
    %v2850 = vunpack.c.l.b16 %v2311
    %v2851 = vunpack.c.l.b16 %v2312
    %v2852 = vunpack.c.h.b16 %v2312
    %v2853 = vunpack.c.l.b16 %v2313
    %v2854 = vunpack.c.h.b16 %v2313
    %v2855 = vunpack.c.l.b16 %v2314
    %v2856 = vunpack.c.h.b16 %v2314
    %v2857 = vunpack.c.l.b16 %v2315
    %v2858 = vunpack.c.l.b16 %v2316
    %v2859 = vunpack.c.h.b16 %v2316
    %v2860 = vunpack.c.l.b16 %v2317
    %v2861 = vunpack.c.h.b16 %v2317
    %v2862 = vunpack.c.l.b16 %v2318
    %v2863 = vunpack.c.h.b16 %v2318
    %v2864 = vunpack.c.l.b16 %v2319
    %v2865 = vunpack.c.l.b16 %v2320
    %v2866 = vunpack.c.h.b16 %v2320
    %v2867 = vunpack.c.l.b16 %v2321
    %v2868 = vunpack.c.h.b16 %v2321
    %v2869 = vunpack.c.l.b16 %v2322
    %v2870 = vunpack.c.h.b16 %v2322
    %v2871 = vunpack.c.l.b16 %v2323
    %v2872 = vunpack.c.l.b16 %v2324
    %v2873 = vunpack.c.h.b16 %v2324
    %v2874 = vunpack.c.l.b16 %v2325
    %v2875 = vunpack.c.h.b16 %v2325
    %v2876 = vunpack.c.l.b16 %v2326
    %v2877 = vunpack.c.h.b16 %v2326
    %v2878 = vunpack.c.l.b16 %v2327
    %v2879 = vunpack.c.l.b16 %v2328
    %v2880 = vunpack.c.h.b16 %v2328
    %v2881 = vunpack.c.l.b16 %v2329
    %v2882 = vunpack.c.h.b16 %v2329
    %v2883 = vunpack.c.l.b16 %v2330
    %v2884 = vunpack.c.h.b16 %v2330
    %v2885 = vunpack.c.l.b16 %v2331
    %v2886 = vunpack.c.l.b16 %v2332
    %v2887 = vunpack.c.h.b16 %v2332
    %v2888 = vunpack.c.l.b16 %v2333
    %v2889 = vunpack.c.h.b16 %v2333
    %v2890 = vunpack.c.l.b16 %v2334
    %v2891 = vunpack.c.h.b16 %v2334
    %v2892 = vunpack.c.l.b16 %v2335
    %v2893 = vunpack.c.l.b16 %v2336
    %v2894 = vunpack.c.h.b16 %v2336
    %v2895 = vunpack.c.l.b16 %v2337
    %v2896 = vunpack.c.h.b16 %v2337
    %v2897 = vunpack.c.l.b16 %v2338
    %v2898 = vunpack.c.h.b16 %v2338
    %v2899 = vunpack.c.l.b16 %v2339
    %v2900 = vunpack.c.l.b16 %v2340
    %v2901 = vunpack.c.h.b16 %v2340
    %v2902 = vunpack.c.l.b16 %v2341
    %v2903 = vunpack.c.h.b16 %v2341
    %v2904 = vunpack.c.l.b16 %v2342
    %v2905 = vunpack.c.h.b16 %v2342
    %v2906 = vunpack.c.l.b16 %v2343
    %v2907 = vunpack.c.l.b16 %v2344
    %v2908 = vunpack.c.h.b16 %v2344
    %v2909 = vunpack.c.l.b16 %v2345
    %v2910 = vunpack.c.h.b16 %v2345
    %v2911 = vunpack.c.l.b16 %v2346
    %v2912 = vunpack.c.h.b16 %v2346
    %v2913 = vunpack.c.l.b16 %v2347
    %v2914 = vunpack.c.l.b16 %v2348
    %v2915 = vunpack.c.h.b16 %v2348
    %v2916 = vunpack.c.l.b16 %v2349
    %v2917 = vunpack.c.h.b16 %v2349
    %v2918 = vunpack.c.l.b16 %v2350
    %v2919 = vunpack.c.h.b16 %v2350
    %v2920 = vunpack.c.l.b16 %v2351
    %v2921 = vunpack.c.l.b16 %v2352
    %v2922 = vunpack.c.h.b16 %v2352
    %v2923 = vunpack.c.l.b16 %v2353
    %v2924 = vunpack.c.h.b16 %v2353
    %v2925 = vunpack.c.l.b16 %v2354
    %v2926 = vunpack.c.h.b16 %v2354
    %v2927 = vunpack.c.l.b16 %v2355
    %v2928 = vunpack.c.l.b16 %v2356
    %v2929 = vunpack.c.h.b16 %v2356
    %v2930 = vunpack.c.l.b16 %v2357
    %v2931 = vunpack.c.h.b16 %v2357
    %v2932 = vunpack.c.l.b16 %v2358
    %v2933 = vunpack.c.h.b16 %v2358
    %v2934 = vunpack.c.l.b16 %v2359
    %v2935 = vunpack.c.l.b16 %v2360
    %v2936 = vunpack.c.h.b16 %v2360
    %v2937 = vunpack.c.l.b16 %v2361
    %v2938 = vunpack.c.h.b16 %v2361
    %v2939 = vunpack.c.l.b16 %v2362
    %v2940 = vunpack.c.h.b16 %v2362
    %v2941 = vunpack.c.l.b16 %v2363
    %v2942 = vunpack.c.l.b16 %v2364
    %v2943 = vunpack.c.h.b16 %v2364
    %v2944 = vunpack.c.l.b16 %v2365
    %v2945 = vunpack.c.h.b16 %v2365
    %v2946 = vunpack.c.l.b16 %v2366
    %v2947 = vunpack.c.h.b16 %v2366
    %v2948 = vunpack.c.l.b16 %v2367
    %v2949 = vunpack.c.l.b16 %v2368
    %v2950 = vunpack.c.h.b16 %v2368
    %v2951 = vunpack.c.l.b16 %v2369
    %v2952 = vunpack.c.h.b16 %v2369
    %v2953 = vunpack.c.l.b16 %v2370
    %v2954 = vunpack.c.h.b16 %v2370
    %v2955 = vunpack.c.l.b16 %v2371
    %v2956 = vunpack.c.l.b16 %v2372
    %v2957 = vunpack.c.h.b16 %v2372
    %v2958 = vunpack.c.l.b16 %v2373
    %v2959 = vunpack.c.h.b16 %v2373
    %v2960 = vunpack.c.l.b16 %v2374
    %v2961 = vunpack.c.h.b16 %v2374
    %v2962 = vunpack.c.l.b16 %v2375
    %v2963 = vpack.c.b16 %v2620, %v2613
    %v2964 = vpack.c.b16 %v2621, %v2614
    %v2965 = vpack.c.b16 %v2622, %v2615
    %v2966 = vpack.c.b16 %v2623, %v2616
    %v2967 = vpack.c.b16 %v2624, %v2617
    %v2968 = vpack.c.b16 %v2625, %v2618
    %v2969 = vpack.c.b16 %v2626, %v2619
    %v2970 = vpack.c.b16 %v2634, %v2627
    %v2971 = vpack.c.b16 %v2635, %v2628
    %v2972 = vpack.c.b16 %v2636, %v2629
    %v2973 = vpack.c.b16 %v2637, %v2630
    %v2974 = vpack.c.b16 %v2638, %v2631
    %v2975 = vpack.c.b16 %v2639, %v2632
    %v2976 = vpack.c.b16 %v2640, %v2633
    %v2977 = vpack.c.b16 %v2648, %v2641
    %v2978 = vpack.c.b16 %v2649, %v2642
    %v2979 = vpack.c.b16 %v2650, %v2643
    %v2980 = vpack.c.b16 %v2651, %v2644
    %v2981 = vpack.c.b16 %v2652, %v2645
    %v2982 = vpack.c.b16 %v2653, %v2646
    %v2983 = vpack.c.b16 %v2654, %v2647
    %v2984 = vpack.c.b16 %v2662, %v2655
    %v2985 = vpack.c.b16 %v2663, %v2656
    %v2986 = vpack.c.b16 %v2664, %v2657
    %v2987 = vpack.c.b16 %v2665, %v2658
    %v2988 = vpack.c.b16 %v2666, %v2659
    %v2989 = vpack.c.b16 %v2667, %v2660
    %v2990 = vpack.c.b16 %v2668, %v2661
    %v2991 = vpack.c.b16 %v2676, %v2669
    %v2992 = vpack.c.b16 %v2677, %v2670
    %v2993 = vpack.c.b16 %v2678, %v2671
    %v2994 = vpack.c.b16 %v2679, %v2672
    %v2995 = vpack.c.b16 %v2680, %v2673
    %v2996 = vpack.c.b16 %v2681, %v2674
    %v2997 = vpack.c.b16 %v2682, %v2675
    %v2998 = vpack.c.b16 %v2690, %v2683
    %v2999 = vpack.c.b16 %v2691, %v2684
    %v3000 = vpack.c.b16 %v2692, %v2685
    %v3001 = vpack.c.b16 %v2693, %v2686
    %v3002 = vpack.c.b16 %v2694, %v2687
    %v3003 = vpack.c.b16 %v2695, %v2688
    %v3004 = vpack.c.b16 %v2696, %v2689
    %v3005 = vpack.c.b16 %v2704, %v2697
    %v3006 = vpack.c.b16 %v2705, %v2698
    %v3007 = vpack.c.b16 %v2706, %v2699
    %v3008 = vpack.c.b16 %v2707, %v2700
    %v3009 = vpack.c.b16 %v2708, %v2701
    %v3010 = vpack.c.b16 %v2709, %v2702
    %v3011 = vpack.c.b16 %v2710, %v2703
    %v3012 = vpack.c.b16 %v2718, %v2711
    %v3013 = vpack.c.b16 %v2719, %v2712
    %v3014 = vpack.c.b16 %v2720, %v2713
    %v3015 = vpack.c.b16 %v2721, %v2714
    %v3016 = vpack.c.b16 %v2722, %v2715
    %v3017 = vpack.c.b16 %v2723, %v2716
    %v3018 = vpack.c.b16 %v2724, %v2717
    %v3019 = vpack.c.b16 %v2732, %v2725
    %v3020 = vpack.c.b16 %v2733, %v2726
    %v3021 = vpack.c.b16 %v2734, %v2727
    %v3022 = vpack.c.b16 %v2735, %v2728
    %v3023 = vpack.c.b16 %v2736, %v2729
    %v3024 = vpack.c.b16 %v2737, %v2730
    %v3025 = vpack.c.b16 %v2738, %v2731
    %v3026 = vpack.c.b16 %v2746, %v2739
    %v3027 = vpack.c.b16 %v2747, %v2740
    %v3028 = vpack.c.b16 %v2748, %v2741
    %v3029 = vpack.c.b16 %v2749, %v2742
    %v3030 = vpack.c.b16 %v2750, %v2743
    %v3031 = vpack.c.b16 %v2751, %v2744
    %v3032 = vpack.c.b16 %v2752, %v2745
    %v3033 = vpack.c.b16 %v2760, %v2753
    %v3034 = vpack.c.b16 %v2761, %v2754
    %v3035 = vpack.c.b16 %v2762, %v2755
    %v3036 = vpack.c.b16 %v2763, %v2756
    %v3037 = vpack.c.b16 %v2764, %v2757
    %v3038 = vpack.c.b16 %v2765, %v2758
    %v3039 = vpack.c.b16 %v2766, %v2759
    %v3040 = vpack.c.b16 %v2774, %v2767
    %v3041 = vpack.c.b16 %v2775, %v2768
    %v3042 = vpack.c.b16 %v2776, %v2769
    %v3043 = vpack.c.b16 %v2777, %v2770
    %v3044 = vpack.c.b16 %v2778, %v2771
    %v3045 = vpack.c.b16 %v2779, %v2772
    %v3046 = vpack.c.b16 %v2780, %v2773
    %v3047 = vpack.c.b16 %v2788, %v2781
    %v3048 = vpack.c.b16 %v2789, %v2782
    %v3049 = vpack.c.b16 %v2790, %v2783
    %v3050 = vpack.c.b16 %v2791, %v2784
    %v3051 = vpack.c.b16 %v2792, %v2785
    %v3052 = vpack.c.b16 %v2793, %v2786
    %v3053 = vpack.c.b16 %v2794, %v2787
    %v3054 = vpack.c.b16 %v2802, %v2795
    %v3055 = vpack.c.b16 %v2803, %v2796
    %v3056 = vpack.c.b16 %v2804, %v2797
    %v3057 = vpack.c.b16 %v2805, %v2798
    %v3058 = vpack.c.b16 %v2806, %v2799
    %v3059 = vpack.c.b16 %v2807, %v2800
    %v3060 = vpack.c.b16 %v2808, %v2801
    %v3061 = vpack.c.b16 %v2816, %v2809
    %v3062 = vpack.c.b16 %v2817, %v2810
    %v3063 = vpack.c.b16 %v2818, %v2811
    %v3064 = vpack.c.b16 %v2819, %v2812
    %v3065 = vpack.c.b16 %v2820, %v2813
    %v3066 = vpack.c.b16 %v2821, %v2814
    %v3067 = vpack.c.b16 %v2822, %v2815
    %v3068 = vpack.c.b16 %v2830, %v2823
    %v3069 = vpack.c.b16 %v2831, %v2824
    %v3070 = vpack.c.b16 %v2832, %v2825
    %v3071 = vpack.c.b16 %v2833, %v2826
    %v3072 = vpack.c.b16 %v2834, %v2827
    %v3073 = vpack.c.b16 %v2835, %v2828
    %v3074 = vpack.c.b16 %v2836, %v2829
    %v3075 = vpack.c.b16 %v2844, %v2837
    %v3076 = vpack.c.b16 %v2845, %v2838
    %v3077 = vpack.c.b16 %v2846, %v2839
    %v3078 = vpack.c.b16 %v2847, %v2840
    %v3079 = vpack.c.b16 %v2848, %v2841
    %v3080 = vpack.c.b16 %v2849, %v2842
    %v3081 = vpack.c.b16 %v2850, %v2843
    %v3082 = vpack.c.b16 %v2858, %v2851
    %v3083 = vpack.c.b16 %v2859, %v2852
    %v3084 = vpack.c.b16 %v2860, %v2853
    %v3085 = vpack.c.b16 %v2861, %v2854
    %v3086 = vpack.c.b16 %v2862, %v2855
    %v3087 = vpack.c.b16 %v2863, %v2856
    %v3088 = vpack.c.b16 %v2864, %v2857
    %v3089 = vpack.c.b16 %v2872, %v2865
    %v3090 = vpack.c.b16 %v2873, %v2866
    %v3091 = vpack.c.b16 %v2874, %v2867
    %v3092 = vpack.c.b16 %v2875, %v2868
    %v3093 = vpack.c.b16 %v2876, %v2869
    %v3094 = vpack.c.b16 %v2877, %v2870
    %v3095 = vpack.c.b16 %v2878, %v2871
    %v3096 = vpack.c.b16 %v2886, %v2879
    %v3097 = vpack.c.b16 %v2887, %v2880
    %v3098 = vpack.c.b16 %v2888, %v2881
    %v3099 = vpack.c.b16 %v2889, %v2882
    %v3100 = vpack.c.b16 %v2890, %v2883
    %v3101 = vpack.c.b16 %v2891, %v2884
    %v3102 = vpack.c.b16 %v2892, %v2885
    %v3103 = vpack.c.b16 %v2900, %v2893
    %v3104 = vpack.c.b16 %v2901, %v2894
    %v3105 = vpack.c.b16 %v2902, %v2895
    %v3106 = vpack.c.b16 %v2903, %v2896
    %v3107 = vpack.c.b16 %v2904, %v2897
    %v3108 = vpack.c.b16 %v2905, %v2898
    %v3109 = vpack.c.b16 %v2906, %v2899
    %v3110 = vpack.c.b16 %v2914, %v2907
    %v3111 = vpack.c.b16 %v2915, %v2908
    %v3112 = vpack.c.b16 %v2916, %v2909
    %v3113 = vpack.c.b16 %v2917, %v2910
    %v3114 = vpack.c.b16 %v2918, %v2911
    %v3115 = vpack.c.b16 %v2919, %v2912
    %v3116 = vpack.c.b16 %v2920, %v2913
    %v3117 = vpack.c.b16 %v2928, %v2921
    %v3118 = vpack.c.b16 %v2929, %v2922
    %v3119 = vpack.c.b16 %v2930, %v2923
    %v3120 = vpack.c.b16 %v2931, %v2924
    %v3121 = vpack.c.b16 %v2932, %v2925
    %v3122 = vpack.c.b16 %v2933, %v2926
    %v3123 = vpack.c.b16 %v2934, %v2927
    %v3124 = vpack.c.b16 %v2942, %v2935
    %v3125 = vpack.c.b16 %v2943, %v2936
    %v3126 = vpack.c.b16 %v2944, %v2937
    %v3127 = vpack.c.b16 %v2945, %v2938
    %v3128 = vpack.c.b16 %v2946, %v2939
    %v3129 = vpack.c.b16 %v2947, %v2940
    %v3130 = vpack.c.b16 %v2948, %v2941
    %v3131 = vpack.c.b16 %v2956, %v2949
    %v3132 = vpack.c.b16 %v2957, %v2950
    %v3133 = vpack.c.b16 %v2958, %v2951
    %v3134 = vpack.c.b16 %v2959, %v2952
    %v3135 = vpack.c.b16 %v2960, %v2953
    %v3136 = vpack.c.b16 %v2961, %v2954
    %v3137 = vpack.c.b16 %v2962, %v2955
    %v3314 = vsel %vm1267, %v2175, 0
    %3316 = vmatprep.subr.bf16.mxu0 %v2964
    %3317 = vmatpush1.bf16.msra.mxu0 %v2963
    %3318 = vmatprep.subr.bf16.mxu0 %v2971
    %3319 = vmatpush1.bf16.msra.mxu0 %v2970
    %3320 = vmatprep.subr.bf16.mxu0 %v2978
    %3321 = vmatpush1.bf16.msra.mxu0 %v2977
    %3322 = vmatprep.subr.bf16.mxu0 %v2985
    %3323 = vmatpush1.bf16.msra.mxu0 %v2984
    %3324 = vmatprep.subr.bf16.mxu0 %v2992
    %3325 = vmatpush1.bf16.msra.mxu0 %v2991
    %3326 = vmatprep.subr.bf16.mxu0 %v2999
    %3327 = vmatpush1.bf16.msra.mxu0 %v2998
    %3328 = vmatprep.subr.bf16.mxu0 %v3006
    %3329 = vmatpush1.bf16.msra.mxu0 %v3005
    %3330 = vmatprep.subr.bf16.mxu0 %v3013
    %3331 = vmatpush1.bf16.msra.mxu0 %v3012
    %3332 = vmatprep.subr.bf16.mxu0 %v3020
    %3333 = vmatpush1.bf16.msra.mxu0 %v3019
    %3334 = vmatprep.subr.bf16.mxu0 %v3027
    %3335 = vmatpush1.bf16.msra.mxu0 %v3026
    %3336 = vmatprep.subr.bf16.mxu0 %v3034
    %3337 = vmatpush1.bf16.msra.mxu0 %v3033
    %3338 = vmatprep.subr.bf16.mxu0 %v3041
    %3339 = vmatpush1.bf16.msra.mxu0 %v3040
    %3340 = vmatprep.subr.bf16.mxu0 %v3048
    %3341 = vmatpush1.bf16.msra.mxu0 %v3047
    %3342 = vmatprep.subr.bf16.mxu0 %v3055
    %3343 = vmatpush1.bf16.msra.mxu0 %v3054
    %3344 = vmatprep.subr.bf16.mxu0 %v3062
    %3345 = vmatpush1.bf16.msra.mxu0 %v3061
    %3346 = vmatprep.subr.bf16.mxu0 %v3069
    %3347 = vmatpush1.bf16.msra.mxu0 %v3068
    %3348 = vmatprep.mubr.bf16.mxu0 %v2173
    %3349 = vmatmul.mubr.bf16.gmra.mrb[0].mxu0 %v2172
    %v3350 = vpop.f32.mrb[0].mxu0
    %v3351 = vadd.f32 %v2381, %v3350
    %v3352 = vpop.f32.mrb[0].mxu0
    %v3353 = vadd.f32 %v2385, %v3352
    %v3354 = vpop.f32.mrb[0].mxu0
    %v3355 = vpop.f32.mrb[0].mxu0
    %3356 = vdwg.mxu0
    %3357 = vmatprep.subr.bf16.mxu0 %v3076
    %3358 = vmatpush1.bf16.msra.mxu0 %v3075
    %3359 = vmatprep.subr.bf16.mxu0 %v3083
    %3360 = vmatpush1.bf16.msra.mxu0 %v3082
    %3361 = vmatprep.subr.bf16.mxu0 %v3090
    %3362 = vmatpush1.bf16.msra.mxu0 %v3089
    %3363 = vmatprep.subr.bf16.mxu0 %v3097
    %3364 = vmatpush1.bf16.msra.mxu0 %v3096
    %3365 = vmatprep.subr.bf16.mxu0 %v3104
    %3366 = vmatpush1.bf16.msra.mxu0 %v3103
    %3367 = vmatprep.subr.bf16.mxu0 %v3111
    %3368 = vmatpush1.bf16.msra.mxu0 %v3110
    %3369 = vmatprep.subr.bf16.mxu0 %v3118
    %3370 = vmatpush1.bf16.msra.mxu0 %v3117
    %3371 = vmatprep.subr.bf16.mxu0 %v3125
    %3372 = vmatpush1.bf16.msra.mxu0 %v3124
    %3373 = vmatprep.subr.bf16.mxu0 %v3132
    %3374 = vmatpush1.bf16.msra.mxu0 %v3131
    %3375 = vmatprep.subr.bf16.mxu0 0
    %3376 = vmatpush1.bf16.msra.mxu0 0
    %3377 = vmatprep.subr.bf16.mxu0 0
    %3378 = vmatpush1.bf16.msra.mxu0 0
    %3379 = vmatprep.subr.bf16.mxu0 0
    %3380 = vmatpush1.bf16.msra.mxu0 0
    %3381 = vmatprep.subr.bf16.mxu0 0
    %3382 = vmatpush1.bf16.msra.mxu0 0
    %3383 = vmatprep.subr.bf16.mxu0 0
    %3384 = vmatpush1.bf16.msra.mxu0 0
    %3385 = vmatprep.subr.bf16.mxu0 0
    %3386 = vmatpush1.bf16.msra.mxu0 0
    %3387 = vmatprep.subr.bf16.mxu0 0
    %3388 = vmatpush1.bf16.msra.mxu0 0
    %3389 = vmatprep.mubr.bf16.mxu0 %v3314
    %3390 = vmatmul.mubr.bf16.gmra.mrb[0].mxu0 %v2174
    %v3391 = vpop.f32.mrb[0].mxu0
    %v3392 = vadd.f32 %v3351, %v3391
    %v3393 = vpop.f32.mrb[0].mxu0
    %v3394 = vadd.f32 %v3353, %v3393
    %v3395 = vpop.f32.mrb[0].mxu0
    %v3396 = vpop.f32.mrb[0].mxu0
    %3397 = vdwg.mxu0
    %3398 = vmatprep.subr.bf16.mxu0 %v2966
    %3399 = vmatpush1.bf16.msra.mxu0 %v2965
    %3400 = vmatprep.subr.bf16.mxu0 %v2973
    %3401 = vmatpush1.bf16.msra.mxu0 %v2972
    %3402 = vmatprep.subr.bf16.mxu0 %v2980
    %3403 = vmatpush1.bf16.msra.mxu0 %v2979
    %3404 = vmatprep.subr.bf16.mxu0 %v2987
    %3405 = vmatpush1.bf16.msra.mxu0 %v2986
    %3406 = vmatprep.subr.bf16.mxu0 %v2994
    %3407 = vmatpush1.bf16.msra.mxu0 %v2993
    %3408 = vmatprep.subr.bf16.mxu0 %v3001
    %3409 = vmatpush1.bf16.msra.mxu0 %v3000
    %3410 = vmatprep.subr.bf16.mxu0 %v3008
    %3411 = vmatpush1.bf16.msra.mxu0 %v3007
    %3412 = vmatprep.subr.bf16.mxu0 %v3015
    %3413 = vmatpush1.bf16.msra.mxu0 %v3014
    %3414 = vmatprep.subr.bf16.mxu0 %v3022
    %3415 = vmatpush1.bf16.msra.mxu0 %v3021
    %3416 = vmatprep.subr.bf16.mxu0 %v3029
    %3417 = vmatpush1.bf16.msra.mxu0 %v3028
    %3418 = vmatprep.subr.bf16.mxu0 %v3036
    %3419 = vmatpush1.bf16.msra.mxu0 %v3035
    %3420 = vmatprep.subr.bf16.mxu0 %v3043
    %3421 = vmatpush1.bf16.msra.mxu0 %v3042
    %3422 = vmatprep.subr.bf16.mxu0 %v3050
    %3423 = vmatpush1.bf16.msra.mxu0 %v3049
    %3424 = vmatprep.subr.bf16.mxu0 %v3057
    %3425 = vmatpush1.bf16.msra.mxu0 %v3056
    %3426 = vmatprep.subr.bf16.mxu0 %v3064
    %3427 = vmatpush1.bf16.msra.mxu0 %v3063
    %3428 = vmatprep.subr.bf16.mxu0 %v3071
    %3429 = vmatpush1.bf16.msra.mxu0 %v3070
    %3430 = vmatprep.mubr.bf16.mxu0 %v2173
    %3431 = vmatmul.mubr.bf16.gmra.mrb[0].mxu0 %v2172
    %v3432 = vpop.f32.mrb[0].mxu0
    %v3433 = vadd.f32 %v2389, %v3432
    %v3434 = vpop.f32.mrb[0].mxu0
    %v3435 = vadd.f32 %v2393, %v3434
    %v3436 = vpop.f32.mrb[0].mxu0
    %v3437 = vpop.f32.mrb[0].mxu0
    %3438 = vdwg.mxu0
    %3439 = vmatprep.subr.bf16.mxu0 %v3078
    %3440 = vmatpush1.bf16.msra.mxu0 %v3077
    %3441 = vmatprep.subr.bf16.mxu0 %v3085
    %3442 = vmatpush1.bf16.msra.mxu0 %v3084
    %3443 = vmatprep.subr.bf16.mxu0 %v3092
    %3444 = vmatpush1.bf16.msra.mxu0 %v3091
    %3445 = vmatprep.subr.bf16.mxu0 %v3099
    %3446 = vmatpush1.bf16.msra.mxu0 %v3098
    %3447 = vmatprep.subr.bf16.mxu0 %v3106
    %3448 = vmatpush1.bf16.msra.mxu0 %v3105
    %3449 = vmatprep.subr.bf16.mxu0 %v3113
    %3450 = vmatpush1.bf16.msra.mxu0 %v3112
    %3451 = vmatprep.subr.bf16.mxu0 %v3120
    %3452 = vmatpush1.bf16.msra.mxu0 %v3119
    %3453 = vmatprep.subr.bf16.mxu0 %v3127
    %3454 = vmatpush1.bf16.msra.mxu0 %v3126
    %3455 = vmatprep.subr.bf16.mxu0 %v3134
    %3456 = vmatpush1.bf16.msra.mxu0 %v3133
    %3457 = vmatprep.subr.bf16.mxu0 0
    %3458 = vmatpush1.bf16.msra.mxu0 0
    %3459 = vmatprep.subr.bf16.mxu0 0
    %3460 = vmatpush1.bf16.msra.mxu0 0
    %3461 = vmatprep.subr.bf16.mxu0 0
    %3462 = vmatpush1.bf16.msra.mxu0 0
    %3463 = vmatprep.subr.bf16.mxu0 0
    %3464 = vmatpush1.bf16.msra.mxu0 0
    %3465 = vmatprep.subr.bf16.mxu0 0
    %3466 = vmatpush1.bf16.msra.mxu0 0
    %3467 = vmatprep.subr.bf16.mxu0 0
    %3468 = vmatpush1.bf16.msra.mxu0 0
    %3469 = vmatprep.subr.bf16.mxu0 0
    %3470 = vmatpush1.bf16.msra.mxu0 0
    %3471 = vmatprep.mubr.bf16.mxu0 %v3314
    %3472 = vmatmul.mubr.bf16.gmra.mrb[0].mxu0 %v2174
    %v3473 = vpop.f32.mrb[0].mxu0
    %v3474 = vadd.f32 %v3433, %v3473
    %v3475 = vpop.f32.mrb[0].mxu0
    %v3476 = vadd.f32 %v3435, %v3475
    %v3477 = vpop.f32.mrb[0].mxu0
    %v3478 = vpop.f32.mrb[0].mxu0
    %3479 = vdwg.mxu0
    %3480 = vmatprep.subr.bf16.mxu0 %v2968
    %3481 = vmatpush1.bf16.msra.mxu0 %v2967
    %3482 = vmatprep.subr.bf16.mxu0 %v2975
    %3483 = vmatpush1.bf16.msra.mxu0 %v2974
    %3484 = vmatprep.subr.bf16.mxu0 %v2982
    %3485 = vmatpush1.bf16.msra.mxu0 %v2981
    %3486 = vmatprep.subr.bf16.mxu0 %v2989
    %3487 = vmatpush1.bf16.msra.mxu0 %v2988
    %3488 = vmatprep.subr.bf16.mxu0 %v2996
    %3489 = vmatpush1.bf16.msra.mxu0 %v2995
    %3490 = vmatprep.subr.bf16.mxu0 %v3003
    %3491 = vmatpush1.bf16.msra.mxu0 %v3002
    %3492 = vmatprep.subr.bf16.mxu0 %v3010
    %3493 = vmatpush1.bf16.msra.mxu0 %v3009
    %3494 = vmatprep.subr.bf16.mxu0 %v3017
    %3495 = vmatpush1.bf16.msra.mxu0 %v3016
    %3496 = vmatprep.subr.bf16.mxu0 %v3024
    %3497 = vmatpush1.bf16.msra.mxu0 %v3023
    %3498 = vmatprep.subr.bf16.mxu0 %v3031
    %3499 = vmatpush1.bf16.msra.mxu0 %v3030
    %3500 = vmatprep.subr.bf16.mxu0 %v3038
    %3501 = vmatpush1.bf16.msra.mxu0 %v3037
    %3502 = vmatprep.subr.bf16.mxu0 %v3045
    %3503 = vmatpush1.bf16.msra.mxu0 %v3044
    %3504 = vmatprep.subr.bf16.mxu0 %v3052
    %3505 = vmatpush1.bf16.msra.mxu0 %v3051
    %3506 = vmatprep.subr.bf16.mxu0 %v3059
    %3507 = vmatpush1.bf16.msra.mxu0 %v3058
    %3508 = vmatprep.subr.bf16.mxu0 %v3066
    %3509 = vmatpush1.bf16.msra.mxu0 %v3065
    %3510 = vmatprep.subr.bf16.mxu0 %v3073
    %3511 = vmatpush1.bf16.msra.mxu0 %v3072
    %3512 = vmatprep.mubr.bf16.mxu0 %v2173
    %3513 = vmatmul.mubr.bf16.gmra.mrb[0].mxu0 %v2172
    %v3514 = vpop.f32.mrb[0].mxu0
    %v3515 = vadd.f32 %v2397, %v3514
    %v3516 = vpop.f32.mrb[0].mxu0
    %v3517 = vadd.f32 %v2401, %v3516
    %v3518 = vpop.f32.mrb[0].mxu0
    %v3519 = vpop.f32.mrb[0].mxu0
    %3520 = vdwg.mxu0
    %3521 = vmatprep.subr.bf16.mxu0 %v3080
    %3522 = vmatpush1.bf16.msra.mxu0 %v3079
    %3523 = vmatprep.subr.bf16.mxu0 %v3087
    %3524 = vmatpush1.bf16.msra.mxu0 %v3086
    %3525 = vmatprep.subr.bf16.mxu0 %v3094
    %3526 = vmatpush1.bf16.msra.mxu0 %v3093
    %3527 = vmatprep.subr.bf16.mxu0 %v3101
    %3528 = vmatpush1.bf16.msra.mxu0 %v3100
    %3529 = vmatprep.subr.bf16.mxu0 %v3108
    %3530 = vmatpush1.bf16.msra.mxu0 %v3107
    %3531 = vmatprep.subr.bf16.mxu0 %v3115
    %3532 = vmatpush1.bf16.msra.mxu0 %v3114
    %3533 = vmatprep.subr.bf16.mxu0 %v3122
    %3534 = vmatpush1.bf16.msra.mxu0 %v3121
    %3535 = vmatprep.subr.bf16.mxu0 %v3129
    %3536 = vmatpush1.bf16.msra.mxu0 %v3128
    %3537 = vmatprep.subr.bf16.mxu0 %v3136
    %3538 = vmatpush1.bf16.msra.mxu0 %v3135
    %3539 = vmatprep.subr.bf16.mxu0 0
    %3540 = vmatpush1.bf16.msra.mxu0 0
    %3541 = vmatprep.subr.bf16.mxu0 0
    %3542 = vmatpush1.bf16.msra.mxu0 0
    %3543 = vmatprep.subr.bf16.mxu0 0
    %3544 = vmatpush1.bf16.msra.mxu0 0
    %3545 = vmatprep.subr.bf16.mxu0 0
    %3546 = vmatpush1.bf16.msra.mxu0 0
    %3547 = vmatprep.subr.bf16.mxu0 0
    %3548 = vmatpush1.bf16.msra.mxu0 0
    %3549 = vmatprep.subr.bf16.mxu0 0
    %3550 = vmatpush1.bf16.msra.mxu0 0
    %3551 = vmatprep.subr.bf16.mxu0 0
    %3552 = vmatpush1.bf16.msra.mxu0 0
    %3553 = vmatprep.mubr.bf16.mxu0 %v3314
    %3554 = vmatmul.mubr.bf16.gmra.mrb[0].mxu0 %v2174
    %v3555 = vpop.f32.mrb[0].mxu0
    %v3556 = vadd.f32 %v3515, %v3555
    %v3557 = vpop.f32.mrb[0].mxu0
    %v3558 = vadd.f32 %v3517, %v3557
    %v3559 = vpop.f32.mrb[0].mxu0
    %v3560 = vpop.f32.mrb[0].mxu0
    %3561 = vdwg.mxu0
    %3562 = vmatprep.subr.bf16.mxu0 0
    %3563 = vmatpush1.bf16.msra.mxu0 %v2969
    %3564 = vmatprep.subr.bf16.mxu0 0
    %3565 = vmatpush1.bf16.msra.mxu0 %v2976
    %3566 = vmatprep.subr.bf16.mxu0 0
    %3567 = vmatpush1.bf16.msra.mxu0 %v2983
    %3568 = vmatprep.subr.bf16.mxu0 0
    %3569 = vmatpush1.bf16.msra.mxu0 %v2990
    %3570 = vmatprep.subr.bf16.mxu0 0
    %3571 = vmatpush1.bf16.msra.mxu0 %v2997
    %3572 = vmatprep.subr.bf16.mxu0 0
    %3573 = vmatpush1.bf16.msra.mxu0 %v3004
    %3574 = vmatprep.subr.bf16.mxu0 0
    %3575 = vmatpush1.bf16.msra.mxu0 %v3011
    %3576 = vmatprep.subr.bf16.mxu0 0
    %3577 = vmatpush1.bf16.msra.mxu0 %v3018
    %3578 = vmatprep.subr.bf16.mxu0 0
    %3579 = vmatpush1.bf16.msra.mxu0 %v3025
    %3580 = vmatprep.subr.bf16.mxu0 0
    %3581 = vmatpush1.bf16.msra.mxu0 %v3032
    %3582 = vmatprep.subr.bf16.mxu0 0
    %3583 = vmatpush1.bf16.msra.mxu0 %v3039
    %3584 = vmatprep.subr.bf16.mxu0 0
    %3585 = vmatpush1.bf16.msra.mxu0 %v3046
    %3586 = vmatprep.subr.bf16.mxu0 0
    %3587 = vmatpush1.bf16.msra.mxu0 %v3053
    %3588 = vmatprep.subr.bf16.mxu0 0
    %3589 = vmatpush1.bf16.msra.mxu0 %v3060
    %3590 = vmatprep.subr.bf16.mxu0 0
    %3591 = vmatpush1.bf16.msra.mxu0 %v3067
    %3592 = vmatprep.subr.bf16.mxu0 0
    %3593 = vmatpush1.bf16.msra.mxu0 %v3074
    %3594 = vmatprep.mubr.bf16.mxu0 %v2173
    %3595 = vmatmul.mubr.bf16.gmra.mrb[0].mxu0 %v2172
    %v3596 = vpop.f32.mrb[0].mxu0
    %v3597 = vadd.f32 %v2405, %v3596
    %v3598 = vpop.f32.mrb[0].mxu0
    %v3599 = vpop.f32.mrb[0].mxu0
    %v3600 = vpop.f32.mrb[0].mxu0
    %3601 = vdwg.mxu0
    %3602 = vmatprep.subr.bf16.mxu0 0
    %3603 = vmatpush1.bf16.msra.mxu0 %v3081
    %3604 = vmatprep.subr.bf16.mxu0 0
    %3605 = vmatpush1.bf16.msra.mxu0 %v3088
    %3606 = vmatprep.subr.bf16.mxu0 0
    %3607 = vmatpush1.bf16.msra.mxu0 %v3095
    %3608 = vmatprep.subr.bf16.mxu0 0
    %3609 = vmatpush1.bf16.msra.mxu0 %v3102
    %3610 = vmatprep.subr.bf16.mxu0 0
    %3611 = vmatpush1.bf16.msra.mxu0 %v3109
    %3612 = vmatprep.subr.bf16.mxu0 0
    %3613 = vmatpush1.bf16.msra.mxu0 %v3116
    %3614 = vmatprep.subr.bf16.mxu0 0
    %3615 = vmatpush1.bf16.msra.mxu0 %v3123
    %3616 = vmatprep.subr.bf16.mxu0 0
    %3617 = vmatpush1.bf16.msra.mxu0 %v3130
    %3618 = vmatprep.subr.bf16.mxu0 0
    %3619 = vmatpush1.bf16.msra.mxu0 %v3137
    %3620 = vmatprep.subr.bf16.mxu0 0
    %3621 = vmatpush1.bf16.msra.mxu0 0
    %3622 = vmatprep.subr.bf16.mxu0 0
    %3623 = vmatpush1.bf16.msra.mxu0 0
    %3624 = vmatprep.subr.bf16.mxu0 0
    %3625 = vmatpush1.bf16.msra.mxu0 0
    %3626 = vmatprep.subr.bf16.mxu0 0
    %3627 = vmatpush1.bf16.msra.mxu0 0
    %3628 = vmatprep.subr.bf16.mxu0 0
    %3629 = vmatpush1.bf16.msra.mxu0 0
    %3630 = vmatprep.subr.bf16.mxu0 0
    %3631 = vmatpush1.bf16.msra.mxu0 0
    %3632 = vmatprep.subr.bf16.mxu0 0
    %3633 = vmatpush1.bf16.msra.mxu0 0
    %3634 = vmatprep.mubr.bf16.mxu0 %v3314
    %3635 = vmatmul.mubr.bf16.gmra.mrb[0].mxu0 %v2174
    %v3636 = vpop.f32.mrb[0].mxu0
    %v3637 = vadd.f32 %v3597, %v3636
    %v3638 = vpop.f32.mrb[0].mxu0
    %v3639 = vpop.f32.mrb[0].mxu0
    %v3640 = vpop.f32.mrb[0].mxu0
    %3641 = vdwg.mxu0
    %v3642 = vsub.f32 0.0, %v3392
    %v3643 = vsub.f32 0.0, %v3394
    %v3644 = vsub.f32 0.0, %v3474
    %v3645 = vsub.f32 0.0, %v3476
    %v3646 = vsub.f32 0.0, %v3556
    %v3647 = vsub.f32 0.0, %v3558
    %v3648 = vsub.f32 0.0, %v3637
    %v3649 = vmul.f32 %v3642, 1.442695
    %v3650 = vpow.pop %v3649
    %v3651 = vmul.f32 %v3643, 1.442695
    %v3652 = vpow.pop %v3651
    %v3653 = vmul.f32 %v3644, 1.442695
    %v3654 = vpow.pop %v3653
    %v3655 = vmul.f32 %v3645, 1.442695
    %v3656 = vpow.pop %v3655
    %v3657 = vmul.f32 %v3646, 1.442695
    %v3658 = vpow.pop %v3657
    %v3659 = vmul.f32 %v3647, 1.442695
    %v3660 = vpow.pop %v3659
    %v3661 = vmul.f32 %v3648, 1.442695
    %v3662 = vpow.pop %v3661
    %v3663 = vadd.f32 %v3650, 1.0
    %v3664 = vadd.f32 %v3652, 1.0
    %v3665 = vadd.f32 %v3654, 1.0
    %v3666 = vadd.f32 %v3656, 1.0
    %v3667 = vadd.f32 %v3658, 1.0
    %v3668 = vadd.f32 %v3660, 1.0
    %v3669 = vadd.f32 %v3662, 1.0
    %v3670 = vrcp.pop %v3663
    %v3671 = vrcp.pop %v3664
    %v3672 = vrcp.pop %v3665
    %v3673 = vrcp.pop %v3666
    %v3674 = vrcp.pop %v3667
    %v3675 = vrcp.pop %v3668
    %v3676 = vrcp.pop %v3669
    %3677 = vst [vmem:[#allocation2] sm:$0xff] %v3670
    %3678 = vst [vmem:[#allocation2 + $0x8] sm:$0xff] %v3671
    %3679 = vst [vmem:[#allocation2 + $0x10] sm:$0xff] %v3672
    %3680 = vst [vmem:[#allocation2 + $0x18] sm:$0xff] %v3673
    %3681 = vst [vmem:[#allocation2 + $0x20] sm:$0xff] %v3674
    %3682 = vst [vmem:[#allocation2 + $0x28] sm:$0xff] %v3675
    %3683 = vst.msk [vmem:[#allocation2 + $0x30] sm:$0xff] %vm1267, %v3676
    %3684 = vst.msk [vmem:[#allocation4] sm:$0xff] %vm2069, %v1998
    %3685 = vst.msk [vmem:[#allocation6] sm:$0xff] %vm2069, %v2000
    // Predicated region
    $region42: #{vae_forward.1} parent=1 // pred_check
      _
    $region43: #{vae_forward.1} parent=1 // pred_check_branch
      %3687 = sbr.rel (0) target = $region45
    $region44: #{vae_forward.1} parent=1 // pred_region
      %s3689 = ssub.s32 896, 896
      %3690 = vsyncadd [#allocation3], %s3689
      %s3692 = sshll.u32 [#allocation2], 4
      %s3693 = int_to_ptr.vmem [resolvable:$true] %s3692
      %3695 = dma.vmem_to_hbm [thread:$0]  %s3693, 896, %s10, [#allocation3]
    $region45: #{vae_forward.1} parent=1 // pred_fallthru
      _
    // Predicated region
    $region46: #{vae_forward.1} parent=1 // pred_check
      _
    $region47: #{vae_forward.1} parent=1 // pred_check_branch
      %3697 = sbr.rel (0) target = $region49
    $region48: #{vae_forward.1} parent=1 // pred_region
      %s3699 = ssub.s32 128, 128
      %3700 = vsyncadd [#allocation5], %s3699
      %s3702 = sshll.u32 [#allocation4], 4
      %s3703 = int_to_ptr.vmem [resolvable:$true] %s3702
      %3705 = dma.vmem_to_hbm [thread:$0]  %s3703, 128, %s11, [#allocation5]
    $region49: #{vae_forward.1} parent=1 // pred_fallthru
      _
    // Predicated region
    $region50: #{vae_forward.1} parent=1 // pred_check
      _
    $region51: #{vae_forward.1} parent=1 // pred_check_branch
      %3707 = sbr.rel (0) target = $region53
    $region52: #{vae_forward.1} parent=1 // pred_region
      %s3709 = ssub.s32 128, 128
      %3710 = vsyncadd [#allocation5], %s3709
      %s3712 = sshll.u32 [#allocation6], 4
      %s3713 = int_to_ptr.vmem [resolvable:$true] %s3712
      %3715 = dma.vmem_to_hbm [thread:$0]  %s3713, 128, %s12, [#allocation5]
    $region53: #{vae_forward.1} parent=1 // pred_fallthru
      _
    // Predicated region
    $region54: #{vae_forward.1} parent=1 // pred_check
      _
    $region55: #{vae_forward.1} parent=1 // pred_check_branch
      %3717 = sbr.rel (0) target = $region57
    $region56: #{vae_forward.1} parent=1 // pred_region
      %3718 = dma.done [#allocation3], 896
    $region57: #{vae_forward.1} parent=1 // pred_fallthru
      _
    // Predicated region
    $region58: #{vae_forward.1} parent=1 // pred_check
      _
    $region59: #{vae_forward.1} parent=1 // pred_check_branch
      %3720 = sbr.rel (0) target = $region61
    $region60: #{vae_forward.1} parent=1 // pred_region
      %3721 = dma.done [#allocation5], 128
    $region61: #{vae_forward.1} parent=1 // pred_fallthru
      _
    // Predicated region
    $region62: #{vae_forward.1} parent=1 // pred_check
      _
    $region63: #{vae_forward.1} parent=1 // pred_check_branch
      %3723 = sbr.rel (0) target = $region65
    $region64: #{vae_forward.1} parent=1 // pred_region
      %3724 = dma.done [#allocation5], 128
    $region65: #{vae_forward.1} parent=1 // pred_fallthru
      _
    %3725 = vsyncpa [#allocation3], 1
    %3726 = vsyncpa [#allocation5], 1

</llo_original>
